<compile_context>
chip_gen: v5e
topology: v5e:2x2
jax: 0.10.0
libtpu: 0.0.40
codegen_flags: <defaults>
</compile_context>

<pallas_src>
import functools
import math

import jax
import jax.numpy as jnp
from jax.experimental import pallas as pl
from jax.experimental.pallas import tpu as pltpu

_SQRT_HALF = 1.0 / math.sqrt(2.0)


def _vmem_limit_bytes():
    # Per-generation scoped-VMEM limit (don't hard-code the v7x-safe 32 MiB).
    try:
        cap = int(pltpu.get_tpu_info().vmem_capacity_bytes)
    except Exception:
        return 32 * 1024 * 1024
    return int(min(cap * 3 // 4, 96 * 1024 * 1024))


# ----------------------------- in-kernel helpers ----------------------------

def _gelu(x):
    # exact (erf-based) GELU, matching torch.nn.GELU() default — f32 math
    return 0.5 * x * (1.0 + jax.lax.erf(x * _SQRT_HALF))


def _layernorm(x, g, b, eps):
    mu = jnp.mean(x, axis=-1, keepdims=True)
    xc = x - mu
    var = jnp.mean(xc * xc, axis=-1, keepdims=True)
    return xc * jax.lax.rsqrt(var + eps) * g + b


# ------------------------------ fused ViT kernel -----------------------------

def _vit_kernel(patches_ref, w_patch_ref, b_patch_ref, cls_ref, pos_ref,
                hsel_ref, hselT_ref,
                ln1_g_ref, ln1_b_ref, w_in_ref, b_in_ref,
                w_out_ref, b_out_ref,
                ln2_g_ref, ln2_b_ref, w1_ref, b1_ref, w2_ref, b2_ref,
                ln_g_ref, ln_b_ref, w_fc_ref, b_fc_ref,
                o_ref, tok_ref,
                *, B, Tp, P, D, H, scale, eps):
    layer = pl.program_id(0)

    # ---------------- embed (only at layer 0) ----------------
    @pl.when(layer == 0)
    def _embed():
        # One (B*P, K) x (K, D) GEMM for all batches (bf16 MXU, f32 acc).
        emb = jnp.dot(patches_ref[...].astype(jnp.bfloat16), w_patch_ref[...],
                      preferred_element_type=jnp.float32) + b_patch_ref[...]
        cls_row = cls_ref[...]                       # (1, D)
        pos = pos_ref[...]                           # (Tp, D), pad rows are 0
        for b in range(B):
            pieces = [cls_row, emb[b * P:(b + 1) * P]]
            if Tp - 1 - P > 0:
                pieces.append(jnp.zeros((Tp - 1 - P, D), jnp.float32))
            blk = jnp.concatenate(pieces, axis=0)    # (Tp, D)
            # aligned store (b*Tp is a multiple of 8)
            tok_ref[pl.ds(b * Tp, Tp), :] = blk + pos

    # ---------------- encoder layer (every grid step) ----------------
    x = tok_ref[...]                                 # (B*Tp, D) f32

    # LN1 -> QKV (single GEMM over all B*Tp rows)
    h = _layernorm(x, ln1_g_ref[...], ln1_b_ref[...], eps)
    qkv = jnp.dot(h.astype(jnp.bfloat16), w_in_ref[...],
                  preferred_element_type=jnp.float32) + b_in_ref[...]  # (B*Tp,3D)
    q = qkv[:, :D] * scale                           # lane-aligned slices
    k = qkv[:, D:2 * D]
    v = qkv[:, 2 * D:3 * D]
    q3 = q.reshape(B, Tp, D)
    k3 = k.reshape(B, Tp, D)
    v3 = v.reshape(B, Tp, D)

    # Attention over the batch axis (batch_first=False reproduction):
    # stacked head-selector scores — one (B*B*Tp, D) x (D, H) GEMM.
    prod = (q3[:, None] * k3[None, :]).reshape(B * B * Tp, D)
    s = jnp.dot(prod.astype(jnp.bfloat16), hsel_ref[...],
                preferred_element_type=jnp.float32).reshape(B, B, Tp, H)
    m = jnp.max(s, axis=1, keepdims=True)            # softmax over key-batch axis
    e = jnp.exp(s - m)
    denom = jnp.sum(e, axis=1, keepdims=True)
    p = e * pl.reciprocal(denom, approx=True)        # (B, B, Tp, H) f32
    # Broadcast per-head weights back to the lane axis — one
    # (B*B*Tp, H) x (H, D) GEMM.
    wfull = jnp.dot(p.reshape(B * B * Tp, H).astype(jnp.bfloat16), hselT_ref[...],
                    preferred_element_type=jnp.float32).reshape(B, B, Tp, D)
    ctx = jnp.sum(wfull * v3[None, :], axis=1).reshape(B * Tp, D)

    # out-projection + residual (single GEMM)
    proj = jnp.dot(ctx.astype(jnp.bfloat16), w_out_ref[...],
                   preferred_element_type=jnp.float32) + b_out_ref[...]
    x = x + proj

    # LN2 -> MLP (two GEMMs over all B*Tp rows) + residual
    h2 = _layernorm(x, ln2_g_ref[...], ln2_b_ref[...], eps)
    m1 = jnp.dot(h2.astype(jnp.bfloat16), w1_ref[...],
                 preferred_element_type=jnp.float32) + b1_ref[...]
    m1 = _gelu(m1)
    m2 = jnp.dot(m1.astype(jnp.bfloat16), w2_ref[...],
                 preferred_element_type=jnp.float32) + b2_ref[...]
    x = x + m2
    tok_ref[...] = x

    # ---------------- head (only at last layer) ----------------
    @pl.when(layer == pl.num_programs(0) - 1)
    def _head():
        cls_tok = jnp.concatenate(
            [tok_ref[pl.ds(b * Tp, 1), :] for b in range(B)], axis=0)  # (B, D)
        hh = _layernorm(cls_tok, ln_g_ref[...], ln_b_ref[...], eps)
        o_ref[...] = jnp.dot(hh.astype(jnp.bfloat16), w_fc_ref[...],
                             preferred_element_type=jnp.float32) + b_fc_ref[...]


# ------------------------------ model wrapper --------------------------------

def vit_forward(x, params, *, patch_size, num_heads, num_classes):
    B, C, Himg, Wimg = x.shape
    ps = patch_size
    hp, wp = Himg // ps, Wimg // ps
    P = hp * wp
    K = C * ps * ps
    D = params["w_patch"].shape[1]
    F = params["w1"].shape[2]
    L = params["w_in"].shape[0]
    nH = num_heads
    T = P + 1
    Tp = ((T + 7) // 8) * 8
    Npad = params["w_fc"].shape[1]
    scale = 1.0 / math.sqrt(D // nH)

    # im2col for the stride==kernel Conv2d; flatten order (C, kh, kw) matches
    # conv_weight.reshape(D, C*ps*ps). Flattened to (B*P, K) so the patch
    # projection is a single GEMM for all batches.
    patches = (x.reshape(B, C, hp, ps, wp, ps)
                 .transpose(0, 2, 4, 1, 3, 5)
                 .reshape(B * P, K))

    const2 = lambda i: (0, 0)
    layer3 = lambda i: (i, 0, 0)

    in_specs = [
        pl.BlockSpec((B * P, K), const2),            # patches
        pl.BlockSpec((K, D), const2),                # w_patch
        pl.BlockSpec((1, D), const2),                # b_patch
        pl.BlockSpec((1, D), const2),                # cls
        pl.BlockSpec((Tp, D), const2),               # pos (padded to Tp)
        pl.BlockSpec((D, nH), const2),               # hsel
        pl.BlockSpec((nH, D), const2),               # hselT
        pl.BlockSpec((None, 1, D), layer3),          # ln1_g
        pl.BlockSpec((None, 1, D), layer3),          # ln1_b
        pl.BlockSpec((None, D, 3 * D), layer3),      # w_in
        pl.BlockSpec((None, 1, 3 * D), layer3),      # b_in
        pl.BlockSpec((None, D, D), layer3),          # w_out
        pl.BlockSpec((None, 1, D), layer3),          # b_out
        pl.BlockSpec((None, 1, D), layer3),          # ln2_g
        pl.BlockSpec((None, 1, D), layer3),          # ln2_b
        pl.BlockSpec((None, D, F), layer3),          # w1
        pl.BlockSpec((None, 1, F), layer3),          # b1
        pl.BlockSpec((None, F, D), layer3),          # w2
        pl.BlockSpec((None, 1, D), layer3),          # b2
        pl.BlockSpec((1, D), const2),                # ln_g
        pl.BlockSpec((1, D), const2),                # ln_b
        pl.BlockSpec((D, Npad), const2),             # w_fc
        pl.BlockSpec((1, Npad), const2),             # b_fc
    ]

    kernel = functools.partial(_vit_kernel, B=B, Tp=Tp, P=P, D=D, H=nH,
                               scale=scale, eps=1e-5)

    logits_pad = pl.pallas_call(
        kernel,
        grid=(L,),
        in_specs=in_specs,
        out_specs=pl.BlockSpec((B, Npad), const2),
        out_shape=jax.ShapeDtypeStruct((B, Npad), jnp.float32),
        scratch_shapes=[pltpu.VMEM((B * Tp, D), jnp.float32)],
        compiler_params=pltpu.CompilerParams(
            dimension_semantics=("arbitrary",),      # layers are sequential
            vmem_limit_bytes=_vmem_limit_bytes()),
    )(patches, params["w_patch"], params["b_patch"], params["cls"],
      params["pos"], params["hsel"], params["hselT"],
      params["ln1_g"], params["ln1_b"], params["w_in"], params["b_in"],
      params["w_out"], params["b_out"],
      params["ln2_g"], params["ln2_b"], params["w1"], params["b1"],
      params["w2"], params["b2"],
      params["ln_g"], params["ln_b"], params["w_fc"], params["b_fc"])

    return logits_pad[:, :num_classes]


# ------------------------------ parameter init -------------------------------

def init_params(key, *, in_channels, patch_size, img_size, embed_dim,
                mlp_dim, num_layers, num_classes, num_heads):
    P = (img_size // patch_size) ** 2
    T = P + 1
    Tp = ((T + 7) // 8) * 8
    n_pad = ((num_classes + 127) // 128) * 128
    D, F, L = embed_dim, mlp_dim, num_layers
    bf = jnp.bfloat16
    keys = iter(jax.random.split(key, 32))

    def nrm(shape, dtype=jnp.float32, scale=0.02):
        v = scale * jax.random.normal(next(keys), shape, dtype=jnp.float32)
        return v.astype(dtype)

    hd = D // num_heads
    # exact 0/1 head-selector matrices (bf16-exact)
    hsel = (jnp.arange(D)[:, None] // hd ==
            jnp.arange(num_heads)[None, :]).astype(bf)            # (D, H)
    hselT = jnp.transpose(hsel)                                   # (H, D)

    pos = jnp.zeros((Tp, D), jnp.float32).at[:T].set(nrm((T, D)))

    params = {
        # matmul weights stored bf16 once; biases / LN params in f32
        "w_patch": nrm((in_channels * patch_size * patch_size, D), bf),
        "b_patch": nrm((1, D)),
        "cls": nrm((1, D)),
        "pos": pos,
        "hsel": hsel,
        "hselT": hselT,
        # per-layer weights stacked along a leading layer axis (streamed by
        # the grid with double-buffered DMA)
        "ln1_g": jnp.ones((L, 1, D), jnp.float32),
        "ln1_b": jnp.zeros((L, 1, D), jnp.float32),
        "w_in": nrm((L, D, 3 * D), bf),     # QKV in_proj, laid out for x @ W
        "b_in": nrm((L, 1, 3 * D)),
        "w_out": nrm((L, D, D), bf),
        "b_out": nrm((L, 1, D)),
        "ln2_g": jnp.ones((L, 1, D), jnp.float32),
        "ln2_b": jnp.zeros((L, 1, D), jnp.float32),
        "w1": nrm((L, D, F), bf),
        "b1": nrm((L, 1, F)),
        "w2": nrm((L, F, D), bf),
        "b2": nrm((L, 1, D)),
        "ln_g": jnp.ones((1, D), jnp.float32),
        "ln_b": jnp.zeros((1, D), jnp.float32),
        # classifier padded to a lane-dense 128-multiple; sliced in glue
        "w_fc": jnp.zeros((D, n_pad), bf).at[:, :num_classes].set(
            nrm((D, num_classes), bf)),
        "b_fc": jnp.zeros((1, n_pad), jnp.float32).at[:, :num_classes].set(
            nrm((1, num_classes))),
    }
    return params


# ----------------------------------- main ------------------------------------

if __name__ == "__main__":
    # Small shapes consistent with the module's forward.
    B, C, IMG, PS = 2, 3, 16, 4          # -> 16 patches, 17 tokens (padded to 24)
    D, HEADS, MLP, LAYERS, CLASSES = 128, 4, 256, 2, 16

    key = jax.random.PRNGKey(0)
    kx, kp = jax.random.split(key)
    x = jax.random.normal(kx, (B, C, IMG, IMG), dtype=jnp.float32)
    params = init_params(kp, in_channels=C, patch_size=PS, img_size=IMG,
                         embed_dim=D, mlp_dim=MLP, num_layers=LAYERS,
                         num_classes=CLASSES, num_heads=HEADS)

    fwd = jax.jit(functools.partial(vit_forward, patch_size=PS,
                                    num_heads=HEADS, num_classes=CLASSES))
    logits = fwd(x, params)
    jax.block_until_ready(logits)

    assert logits.shape == (B, CLASSES), logits.shape
    assert bool(jnp.all(jnp.isfinite(logits)))
    print("KERNEL_OK")
</pallas_src>

<mosaic_0001>
module attributes {stable_mosaic.version = 11 : i64} {
  func.func @_vit_kernel(%arg0: i32, %arg1: memref<32x48xf32, #tpu.memory_space<vmem>>, %arg2: memref<48x128xbf16, #tpu.memory_space<vmem>>, %arg3: memref<1x128xf32, #tpu.memory_space<vmem>>, %arg4: memref<1x128xf32, #tpu.memory_space<vmem>>, %arg5: memref<24x128xf32, #tpu.memory_space<vmem>>, %arg6: memref<128x4xbf16, #tpu.memory_space<vmem>>, %arg7: memref<4x128xbf16, #tpu.memory_space<vmem>>, %arg8: memref<1x1x128xf32, #tpu.memory_space<vmem>>, %arg9: memref<1x1x128xf32, #tpu.memory_space<vmem>>, %arg10: memref<1x128x384xbf16, #tpu.memory_space<vmem>>, %arg11: memref<1x1x384xf32, #tpu.memory_space<vmem>>, %arg12: memref<1x128x128xbf16, #tpu.memory_space<vmem>>, %arg13: memref<1x1x128xf32, #tpu.memory_space<vmem>>, %arg14: memref<1x1x128xf32, #tpu.memory_space<vmem>>, %arg15: memref<1x1x128xf32, #tpu.memory_space<vmem>>, %arg16: memref<1x128x256xbf16, #tpu.memory_space<vmem>>, %arg17: memref<1x1x256xf32, #tpu.memory_space<vmem>>, %arg18: memref<1x256x128xbf16, #tpu.memory_space<vmem>>, %arg19: memref<1x1x128xf32, #tpu.memory_space<vmem>>, %arg20: memref<1x128xf32, #tpu.memory_space<vmem>>, %arg21: memref<1x128xf32, #tpu.memory_space<vmem>>, %arg22: memref<128x128xbf16, #tpu.memory_space<vmem>>, %arg23: memref<1x128xf32, #tpu.memory_space<vmem>>, %arg24: memref<2x128xf32, #tpu.memory_space<vmem>>, %arg25: memref<48x128xf32, #tpu.memory_space<vmem>>) attributes {dimension_semantics = [#tpu.dimension_semantics<arbitrary>], iteration_bounds = array<i64: 2>, scalar_prefetch = 0 : i64, scratch_operands = 1 : i64, tpu.core_type = #tpu.core_type<tc>, window_params = [{pipeline_mode = #tpu.pipeline_mode<synchronous>, transform_indices = @transform_0, window_bounds = array<i64: 32, 48>}, {pipeline_mode = #tpu.pipeline_mode<synchronous>, transform_indices = @transform_1, window_bounds = array<i64: 48, 128>}, {pipeline_mode = #tpu.pipeline_mode<synchronous>, transform_indices = @transform_2, window_bounds = array<i64: 1, 128>}, {pipeline_mode = #tpu.pipeline_mode<synchronous>, transform_indices = @transform_3, window_bounds = array<i64: 1, 128>}, {pipeline_mode = #tpu.pipeline_mode<synchronous>, transform_indices = @transform_4, window_bounds = array<i64: 24, 128>}, {pipeline_mode = #tpu.pipeline_mode<synchronous>, transform_indices = @transform_5, window_bounds = array<i64: 128, 4>}, {pipeline_mode = #tpu.pipeline_mode<synchronous>, transform_indices = @transform_6, window_bounds = array<i64: 4, 128>}, {transform_indices = @transform_7, window_bounds = array<i64: 1, 1, 128>}, {transform_indices = @transform_8, window_bounds = array<i64: 1, 1, 128>}, {transform_indices = @transform_9, window_bounds = array<i64: 1, 128, 384>}, {transform_indices = @transform_10, window_bounds = array<i64: 1, 1, 384>}, {transform_indices = @transform_11, window_bounds = array<i64: 1, 128, 128>}, {transform_indices = @transform_12, window_bounds = array<i64: 1, 1, 128>}, {transform_indices = @transform_13, window_bounds = array<i64: 1, 1, 128>}, {transform_indices = @transform_14, window_bounds = array<i64: 1, 1, 128>}, {transform_indices = @transform_15, window_bounds = array<i64: 1, 128, 256>}, {transform_indices = @transform_16, window_bounds = array<i64: 1, 1, 256>}, {transform_indices = @transform_17, window_bounds = array<i64: 1, 256, 128>}, {transform_indices = @transform_18, window_bounds = array<i64: 1, 1, 128>}, {pipeline_mode = #tpu.pipeline_mode<synchronous>, transform_indices = @transform_19, window_bounds = array<i64: 1, 128>}, {pipeline_mode = #tpu.pipeline_mode<synchronous>, transform_indices = @transform_20, window_bounds = array<i64: 1, 128>}, {pipeline_mode = #tpu.pipeline_mode<synchronous>, transform_indices = @transform_21, window_bounds = array<i64: 128, 128>}, {pipeline_mode = #tpu.pipeline_mode<synchronous>, transform_indices = @transform_22, window_bounds = array<i64: 1, 128>}, {pipeline_mode = #tpu.pipeline_mode<synchronous>, transform_indices = @transform_23, window_bounds = array<i64: 2, 128>}]} {
    %c0_i32 = arith.constant 0 : i32
    %0 = arith.cmpi eq, %arg0, %c0_i32 : i32
    %1 = arith.extui %0 : i1 to i32
    %c0_i32_0 = arith.constant 0 : i32
    %2 = arith.cmpi ne, %1, %c0_i32_0 : i32
    scf.if %2 {
      %c0_67 = arith.constant 0 : index
      %c0_68 = arith.constant 0 : index
      %136 = vector.load %arg1[%c0_67, %c0_68] : memref<32x48xf32, #tpu.memory_space<vmem>>, vector<32x48xf32>
      %137 = arith.truncf %136 : vector<32x48xf32> to vector<32x48xbf16>
      %c0_69 = arith.constant 0 : index
      %c0_70 = arith.constant 0 : index
      %138 = vector.load %arg2[%c0_69, %c0_70] : memref<48x128xbf16, #tpu.memory_space<vmem>>, vector<48x128xbf16>
      %cst_71 = arith.constant dense<0.000000e+00> : vector<32x128xf32>
      %139 = tpu.matmul %137, %138, %cst_71 {dimension_numbers = #tpu.dot_dimension_numbers<[1], [0], [0], [1], [0, 0, 1, 1], [], []>} : vector<32x48xbf16>, vector<48x128xbf16>, vector<32x128xf32> -> vector<32x128xf32>
      %c0_72 = arith.constant 0 : index
      %c0_73 = arith.constant 0 : index
      %140 = vector.load %arg3[%c0_72, %c0_73] : memref<1x128xf32, #tpu.memory_space<vmem>>, vector<1x128xf32>
      %141 = vector.broadcast %140 : vector<1x128xf32> to vector<32x128xf32>
      %142 = arith.addf %139, %141 : vector<32x128xf32>
      %c0_74 = arith.constant 0 : index
      %c0_75 = arith.constant 0 : index
      %143 = vector.load %arg4[%c0_74, %c0_75] : memref<1x128xf32, #tpu.memory_space<vmem>>, vector<1x128xf32>
      %c0_76 = arith.constant 0 : index
      %c0_77 = arith.constant 0 : index
      %144 = vector.load %arg5[%c0_76, %c0_77] : memref<24x128xf32, #tpu.memory_space<vmem>>, vector<24x128xf32>
      %145 = vector.extract_strided_slice %142 {offsets = [0, 0], sizes = [16, 128], strides = [1, 1]} : vector<32x128xf32> to vector<16x128xf32>
      %cst_78 = arith.constant 0.000000e+00 : f32
      %146 = vector.broadcast %cst_78 : f32 to vector<7x128xf32>
      %147 = tpu.concatenate %143, %145, %146 in 0 : vector<1x128xf32>, vector<16x128xf32>, vector<7x128xf32> -> vector<24x128xf32>
      %148 = arith.addf %147, %144 : vector<24x128xf32>
      %c0_79 = arith.constant 0 : index
      %c0_80 = arith.constant 0 : index
      %149 = vector.load %arg25[%c0_79, %c0_80] : memref<48x128xf32, #tpu.memory_space<vmem>>, vector<24x128xf32>
      tpu.vector_store %arg25[%c0_79, %c0_80], %148 {strides = array<i32>} : memref<48x128xf32, #tpu.memory_space<vmem>>, vector<24x128xf32>,
      %150 = vector.extract_strided_slice %142 {offsets = [16, 0], sizes = [16, 128], strides = [1, 1]} : vector<32x128xf32> to vector<16x128xf32>
      %cst_81 = arith.constant 0.000000e+00 : f32
      %151 = vector.broadcast %cst_81 : f32 to vector<7x128xf32>
      %152 = tpu.concatenate %143, %150, %151 in 0 : vector<1x128xf32>, vector<16x128xf32>, vector<7x128xf32> -> vector<24x128xf32>
      %153 = arith.addf %152, %144 : vector<24x128xf32>
      %c24 = arith.constant 24 : index
      %c0_82 = arith.constant 0 : index
      %154 = vector.load %arg25[%c24, %c0_82] : memref<48x128xf32, #tpu.memory_space<vmem>>, vector<24x128xf32>
      tpu.vector_store %arg25[%c24, %c0_82], %153 {strides = array<i32>} : memref<48x128xf32, #tpu.memory_space<vmem>>, vector<24x128xf32>,
    } else {
    }
    %c0 = arith.constant 0 : index
    %c0_1 = arith.constant 0 : index
    %3 = vector.load %arg25[%c0, %c0_1] : memref<48x128xf32, #tpu.memory_space<vmem>>, vector<48x128xf32>
    %c0_2 = arith.constant 0 : index
    %c0_3 = arith.constant 0 : index
    %c0_4 = arith.constant 0 : index
    %4 = vector.load %arg8[%c0_2, %c0_3, %c0_4] : memref<1x1x128xf32, #tpu.memory_space<vmem>>, vector<1x1x128xf32>
    %5 = vector.shape_cast %4 : vector<1x1x128xf32> to vector<1x128xf32>
    %c0_5 = arith.constant 0 : index
    %c0_6 = arith.constant 0 : index
    %c0_7 = arith.constant 0 : index
    %6 = vector.load %arg9[%c0_5, %c0_6, %c0_7] : memref<1x1x128xf32, #tpu.memory_space<vmem>>, vector<1x1x128xf32>
    %7 = vector.shape_cast %6 : vector<1x1x128xf32> to vector<1x128xf32>
    %cst = arith.constant dense<0.000000e+00> : vector<48xf32>
    %8 = vector.multi_reduction <add>, %3, %cst [1] : vector<48x128xf32> to vector<48xf32>
    %9 = vector.shape_cast %8 : vector<48xf32> to vector<48x1xf32>
    %cst_8 = arith.constant 1.280000e+02 : f32
    %10 = vector.broadcast %cst_8 : f32 to vector<48x1xf32>
    %11 = arith.divf %9, %10 : vector<48x1xf32>
    %12 = vector.broadcast %11 : vector<48x1xf32> to vector<48x128xf32>
    %13 = arith.subf %3, %12 : vector<48x128xf32>
    %14 = arith.mulf %13, %13 : vector<48x128xf32>
    %cst_9 = arith.constant dense<0.000000e+00> : vector<48xf32>
    %15 = vector.multi_reduction <add>, %14, %cst_9 [1] : vector<48x128xf32> to vector<48xf32>
    %16 = vector.shape_cast %15 : vector<48xf32> to vector<48x1xf32>
    %cst_10 = arith.constant 1.280000e+02 : f32
    %17 = vector.broadcast %cst_10 : f32 to vector<48x1xf32>
    %18 = arith.divf %16, %17 : vector<48x1xf32>
    %cst_11 = arith.constant 9.99999974E-6 : f32
    %19 = vector.broadcast %cst_11 : f32 to vector<48x1xf32>
    %20 = arith.addf %18, %19 : vector<48x1xf32>
    %21 = math.rsqrt %20 : vector<48x1xf32>
    %22 = vector.broadcast %21 : vector<48x1xf32> to vector<48x128xf32>
    %23 = arith.mulf %13, %22 : vector<48x128xf32>
    %24 = vector.broadcast %5 : vector<1x128xf32> to vector<48x128xf32>
    %25 = arith.mulf %23, %24 : vector<48x128xf32>
    %26 = vector.broadcast %7 : vector<1x128xf32> to vector<48x128xf32>
    %27 = arith.addf %25, %26 : vector<48x128xf32>
    %28 = arith.truncf %27 : vector<48x128xf32> to vector<48x128xbf16>
    %c0_12 = arith.constant 0 : index
    %c0_13 = arith.constant 0 : index
    %c0_14 = arith.constant 0 : index
    %29 = vector.load %arg10[%c0_12, %c0_13, %c0_14] : memref<1x128x384xbf16, #tpu.memory_space<vmem>>, vector<1x128x384xbf16>
    %30 = vector.shape_cast %29 : vector<1x128x384xbf16> to vector<128x384xbf16>
    %cst_15 = arith.constant dense<0.000000e+00> : vector<48x384xf32>
    %31 = tpu.matmul %28, %30, %cst_15 {dimension_numbers = #tpu.dot_dimension_numbers<[1], [0], [0], [1], [0, 0, 1, 1], [], []>} : vector<48x128xbf16>, vector<128x384xbf16>, vector<48x384xf32> -> vector<48x384xf32>
    %c0_16 = arith.constant 0 : index
    %c0_17 = arith.constant 0 : index
    %c0_18 = arith.constant 0 : index
    %32 = vector.load %arg11[%c0_16, %c0_17, %c0_18] : memref<1x1x384xf32, #tpu.memory_space<vmem>>, vector<1x1x384xf32>
    %33 = vector.shape_cast %32 : vector<1x1x384xf32> to vector<1x384xf32>
    %34 = vector.broadcast %33 : vector<1x384xf32> to vector<48x384xf32>
    %35 = arith.addf %31, %34 : vector<48x384xf32>
    %36 = vector.extract_strided_slice %35 {offsets = [0, 0], sizes = [48, 128], strides = [1, 1]} : vector<48x384xf32> to vector<48x128xf32>
    %cst_19 = arith.constant 0.176776692 : f32
    %37 = vector.broadcast %cst_19 : f32 to vector<48x128xf32>
    %38 = arith.mulf %36, %37 : vector<48x128xf32>
    %39 = vector.extract_strided_slice %35 {offsets = [0, 128], sizes = [48, 128], strides = [1, 1]} : vector<48x384xf32> to vector<48x128xf32>
    %40 = vector.extract_strided_slice %35 {offsets = [0, 256], sizes = [48, 128], strides = [1, 1]} : vector<48x384xf32> to vector<48x128xf32>
    %41 = vector.shape_cast %38 : vector<48x128xf32> to vector<2x24x128xf32>
    %42 = vector.shape_cast %39 : vector<48x128xf32> to vector<2x24x128xf32>
    %43 = vector.shape_cast %40 : vector<48x128xf32> to vector<2x24x128xf32>
    %44 = vector.shape_cast %41 : vector<2x24x128xf32> to vector<2x1x24x128xf32>
    %45 = vector.shape_cast %42 : vector<2x24x128xf32> to vector<1x2x24x128xf32>
    %46 = vector.broadcast %44 : vector<2x1x24x128xf32> to vector<2x2x24x128xf32>
    %47 = vector.broadcast %45 : vector<1x2x24x128xf32> to vector<2x2x24x128xf32>
    %48 = arith.mulf %46, %47 : vector<2x2x24x128xf32>
    %49 = vector.shape_cast %48 : vector<2x2x24x128xf32> to vector<96x128xf32>
    %50 = arith.truncf %49 : vector<96x128xf32> to vector<96x128xbf16>
    %c0_20 = arith.constant 0 : index
    %c0_21 = arith.constant 0 : index
    %51 = vector.load %arg6[%c0_20, %c0_21] : memref<128x4xbf16, #tpu.memory_space<vmem>>, vector<128x4xbf16>
    %cst_22 = arith.constant dense<0.000000e+00> : vector<96x4xf32>
    %52 = tpu.matmul %50, %51, %cst_22 {dimension_numbers = #tpu.dot_dimension_numbers<[1], [0], [0], [1], [0, 0, 1, 1], [], []>} : vector<96x128xbf16>, vector<128x4xbf16>, vector<96x4xf32> -> vector<96x4xf32>
    %53 = vector.shape_cast %52 : vector<96x4xf32> to vector<2x2x24x4xf32>
    %cst_23 = arith.constant dense<0xFF800000> : vector<2x24x4xf32>
    %54 = vector.multi_reduction <maximumf>, %53, %cst_23 [1] : vector<2x2x24x4xf32> to vector<2x24x4xf32>
    %55 = vector.shape_cast %54 : vector<2x24x4xf32> to vector<2x1x24x4xf32>
    %56 = vector.broadcast %55 : vector<2x1x24x4xf32> to vector<2x2x24x4xf32>
    %57 = arith.subf %53, %56 : vector<2x2x24x4xf32>
    %58 = math.exp %57 : vector<2x2x24x4xf32>
    %cst_24 = arith.constant dense<0.000000e+00> : vector<2x24x4xf32>
    %59 = vector.multi_reduction <add>, %58, %cst_24 [1] : vector<2x2x24x4xf32> to vector<2x24x4xf32>
    %60 = vector.shape_cast %59 : vector<2x24x4xf32> to vector<2x1x24x4xf32>
    %61 = tpu.reciprocal %60 {approx = true} : vector<2x1x24x4xf32> -> vector<2x1x24x4xf32>
    %62 = vector.broadcast %61 : vector<2x1x24x4xf32> to vector<2x2x24x4xf32>
    %63 = arith.mulf %58, %62 : vector<2x2x24x4xf32>
    %64 = vector.shape_cast %63 : vector<2x2x24x4xf32> to vector<96x4xf32>
    %65 = arith.truncf %64 : vector<96x4xf32> to vector<96x4xbf16>
    %c0_25 = arith.constant 0 : index
    %c0_26 = arith.constant 0 : index
    %66 = vector.load %arg7[%c0_25, %c0_26] : memref<4x128xbf16, #tpu.memory_space<vmem>>, vector<4x128xbf16>
    %cst_27 = arith.constant dense<0.000000e+00> : vector<96x128xf32>
    %67 = tpu.matmul %65, %66, %cst_27 {dimension_numbers = #tpu.dot_dimension_numbers<[1], [0], [0], [1], [0, 0, 1, 1], [], []>} : vector<96x4xbf16>, vector<4x128xbf16>, vector<96x128xf32> -> vector<96x128xf32>
    %68 = vector.shape_cast %67 : vector<96x128xf32> to vector<2x2x24x128xf32>
    %69 = vector.shape_cast %43 : vector<2x24x128xf32> to vector<1x2x24x128xf32>
    %70 = vector.broadcast %69 : vector<1x2x24x128xf32> to vector<2x2x24x128xf32>
    %71 = arith.mulf %68, %70 : vector<2x2x24x128xf32>
    %cst_28 = arith.constant dense<0.000000e+00> : vector<2x24x128xf32>
    %72 = vector.multi_reduction <add>, %71, %cst_28 [1] : vector<2x2x24x128xf32> to vector<2x24x128xf32>
    %73 = vector.shape_cast %72 : vector<2x24x128xf32> to vector<48x128xf32>
    %74 = arith.truncf %73 : vector<48x128xf32> to vector<48x128xbf16>
    %c0_29 = arith.constant 0 : index
    %c0_30 = arith.constant 0 : index
    %c0_31 = arith.constant 0 : index
    %75 = vector.load %arg12[%c0_29, %c0_30, %c0_31] : memref<1x128x128xbf16, #tpu.memory_space<vmem>>, vector<1x128x128xbf16>
    %76 = vector.shape_cast %75 : vector<1x128x128xbf16> to vector<128x128xbf16>
    %cst_32 = arith.constant dense<0.000000e+00> : vector<48x128xf32>
    %77 = tpu.matmul %74, %76, %cst_32 {dimension_numbers = #tpu.dot_dimension_numbers<[1], [0], [0], [1], [0, 0, 1, 1], [], []>} : vector<48x128xbf16>, vector<128x128xbf16>, vector<48x128xf32> -> vector<48x128xf32>
    %c0_33 = arith.constant 0 : index
    %c0_34 = arith.constant 0 : index
    %c0_35 = arith.constant 0 : index
    %78 = vector.load %arg13[%c0_33, %c0_34, %c0_35] : memref<1x1x128xf32, #tpu.memory_space<vmem>>, vector<1x1x128xf32>
    %79 = vector.shape_cast %78 : vector<1x1x128xf32> to vector<1x128xf32>
    %80 = vector.broadcast %79 : vector<1x128xf32> to vector<48x128xf32>
    %81 = arith.addf %77, %80 : vector<48x128xf32>
    %82 = arith.addf %3, %81 : vector<48x128xf32>
    %c0_36 = arith.constant 0 : index
    %c0_37 = arith.constant 0 : index
    %c0_38 = arith.constant 0 : index
    %83 = vector.load %arg14[%c0_36, %c0_37, %c0_38] : memref<1x1x128xf32, #tpu.memory_space<vmem>>, vector<1x1x128xf32>
    %84 = vector.shape_cast %83 : vector<1x1x128xf32> to vector<1x128xf32>
    %c0_39 = arith.constant 0 : index
    %c0_40 = arith.constant 0 : index
    %c0_41 = arith.constant 0 : index
    %85 = vector.load %arg15[%c0_39, %c0_40, %c0_41] : memref<1x1x128xf32, #tpu.memory_space<vmem>>, vector<1x1x128xf32>
    %86 = vector.shape_cast %85 : vector<1x1x128xf32> to vector<1x128xf32>
    %cst_42 = arith.constant dense<0.000000e+00> : vector<48xf32>
    %87 = vector.multi_reduction <add>, %82, %cst_42 [1] : vector<48x128xf32> to vector<48xf32>
    %88 = vector.shape_cast %87 : vector<48xf32> to vector<48x1xf32>
    %cst_43 = arith.constant 1.280000e+02 : f32
    %89 = vector.broadcast %cst_43 : f32 to vector<48x1xf32>
    %90 = arith.divf %88, %89 : vector<48x1xf32>
    %91 = vector.broadcast %90 : vector<48x1xf32> to vector<48x128xf32>
    %92 = arith.subf %82, %91 : vector<48x128xf32>
    %93 = arith.mulf %92, %92 : vector<48x128xf32>
    %cst_44 = arith.constant dense<0.000000e+00> : vector<48xf32>
    %94 = vector.multi_reduction <add>, %93, %cst_44 [1] : vector<48x128xf32> to vector<48xf32>
    %95 = vector.shape_cast %94 : vector<48xf32> to vector<48x1xf32>
    %cst_45 = arith.constant 1.280000e+02 : f32
    %96 = vector.broadcast %cst_45 : f32 to vector<48x1xf32>
    %97 = arith.divf %95, %96 : vector<48x1xf32>
    %cst_46 = arith.constant 9.99999974E-6 : f32
    %98 = vector.broadcast %cst_46 : f32 to vector<48x1xf32>
    %99 = arith.addf %97, %98 : vector<48x1xf32>
    %100 = math.rsqrt %99 : vector<48x1xf32>
    %101 = vector.broadcast %100 : vector<48x1xf32> to vector<48x128xf32>
    %102 = arith.mulf %92, %101 : vector<48x128xf32>
    %103 = vector.broadcast %84 : vector<1x128xf32> to vector<48x128xf32>
    %104 = arith.mulf %102, %103 : vector<48x128xf32>
    %105 = vector.broadcast %86 : vector<1x128xf32> to vector<48x128xf32>
    %106 = arith.addf %104, %105 : vector<48x128xf32>
    %107 = arith.truncf %106 : vector<48x128xf32> to vector<48x128xbf16>
    %c0_47 = arith.constant 0 : index
    %c0_48 = arith.constant 0 : index
    %c0_49 = arith.constant 0 : index
    %108 = vector.load %arg16[%c0_47, %c0_48, %c0_49] : memref<1x128x256xbf16, #tpu.memory_space<vmem>>, vector<1x128x256xbf16>
    %109 = vector.shape_cast %108 : vector<1x128x256xbf16> to vector<128x256xbf16>
    %cst_50 = arith.constant dense<0.000000e+00> : vector<48x256xf32>
    %110 = tpu.matmul %107, %109, %cst_50 {dimension_numbers = #tpu.dot_dimension_numbers<[1], [0], [0], [1], [0, 0, 1, 1], [], []>} : vector<48x128xbf16>, vector<128x256xbf16>, vector<48x256xf32> -> vector<48x256xf32>
    %c0_51 = arith.constant 0 : index
    %c0_52 = arith.constant 0 : index
    %c0_53 = arith.constant 0 : index
    %111 = vector.load %arg17[%c0_51, %c0_52, %c0_53] : memref<1x1x256xf32, #tpu.memory_space<vmem>>, vector<1x1x256xf32>
    %112 = vector.shape_cast %111 : vector<1x1x256xf32> to vector<1x256xf32>
    %113 = vector.broadcast %112 : vector<1x256xf32> to vector<48x256xf32>
    %114 = arith.addf %110, %113 : vector<48x256xf32>
    %cst_54 = arith.constant 5.000000e-01 : f32
    %115 = vector.broadcast %cst_54 : f32 to vector<48x256xf32>
    %116 = arith.mulf %115, %114 : vector<48x256xf32>
    %cst_55 = arith.constant 0.707106769 : f32
    %117 = vector.broadcast %cst_55 : f32 to vector<48x256xf32>
    %118 = arith.mulf %114, %117 : vector<48x256xf32>
    %119 = math.erf %118 : vector<48x256xf32>
    %cst_56 = arith.constant 1.000000e+00 : f32
    %120 = vector.broadcast %cst_56 : f32 to vector<48x256xf32>
    %121 = arith.addf %120, %119 : vector<48x256xf32>
    %122 = arith.mulf %116, %121 : vector<48x256xf32>
    %123 = arith.truncf %122 : vector<48x256xf32> to vector<48x256xbf16>
    %c0_57 = arith.constant 0 : index
    %c0_58 = arith.constant 0 : index
    %c0_59 = arith.constant 0 : index
    %124 = vector.load %arg18[%c0_57, %c0_58, %c0_59] : memref<1x256x128xbf16, #tpu.memory_space<vmem>>, vector<1x256x128xbf16>
    %125 = vector.shape_cast %124 : vector<1x256x128xbf16> to vector<256x128xbf16>
    %cst_60 = arith.constant dense<0.000000e+00> : vector<48x128xf32>
    %126 = tpu.matmul %123, %125, %cst_60 {dimension_numbers = #tpu.dot_dimension_numbers<[1], [0], [0], [1], [0, 0, 1, 1], [], []>} : vector<48x256xbf16>, vector<256x128xbf16>, vector<48x128xf32> -> vector<48x128xf32>
    %c0_61 = arith.constant 0 : index
    %c0_62 = arith.constant 0 : index
    %c0_63 = arith.constant 0 : index
    %127 = vector.load %arg19[%c0_61, %c0_62, %c0_63] : memref<1x1x128xf32, #tpu.memory_space<vmem>>, vector<1x1x128xf32>
    %128 = vector.shape_cast %127 : vector<1x1x128xf32> to vector<1x128xf32>
    %129 = vector.broadcast %128 : vector<1x128xf32> to vector<48x128xf32>
    %130 = arith.addf %126, %129 : vector<48x128xf32>
    %131 = arith.addf %82, %130 : vector<48x128xf32>
    %c0_64 = arith.constant 0 : index
    %c0_65 = arith.constant 0 : index
    %132 = vector.load %arg25[%c0_64, %c0_65] : memref<48x128xf32, #tpu.memory_space<vmem>>, vector<48x128xf32>
    tpu.vector_store %arg25[%c0_64, %c0_65], %131 {strides = array<i32>} : memref<48x128xf32, #tpu.memory_space<vmem>>, vector<48x128xf32>,
    %c1_i32 = arith.constant 1 : i32
    %133 = arith.cmpi eq, %arg0, %c1_i32 : i32
    %134 = arith.extui %133 : i1 to i32
    %c0_i32_66 = arith.constant 0 : i32
    %135 = arith.cmpi ne, %134, %c0_i32_66 : i32
    scf.if %135 {
      %c0_67 = arith.constant 0 : index
      %c0_68 = arith.constant 0 : index
      %136 = vector.load %arg25[%c0_67, %c0_68] : memref<48x128xf32, #tpu.memory_space<vmem>>, vector<1x128xf32>
      %c24 = arith.constant 24 : index
      %c0_69 = arith.constant 0 : index
      %137 = vector.load %arg25[%c24, %c0_69] : memref<48x128xf32, #tpu.memory_space<vmem>>, vector<1x128xf32>
      %138 = tpu.concatenate %136, %137 in 0 : vector<1x128xf32>, vector<1x128xf32> -> vector<2x128xf32>
      %c0_70 = arith.constant 0 : index
      %c0_71 = arith.constant 0 : index
      %139 = vector.load %arg20[%c0_70, %c0_71] : memref<1x128xf32, #tpu.memory_space<vmem>>, vector<1x128xf32>
      %c0_72 = arith.constant 0 : index
      %c0_73 = arith.constant 0 : index
      %140 = vector.load %arg21[%c0_72, %c0_73] : memref<1x128xf32, #tpu.memory_space<vmem>>, vector<1x128xf32>
      %cst_74 = arith.constant dense<0.000000e+00> : vector<2xf32>
      %141 = vector.multi_reduction <add>, %138, %cst_74 [1] : vector<2x128xf32> to vector<2xf32>
      %142 = vector.shape_cast %141 : vector<2xf32> to vector<2x1xf32>
      %cst_75 = arith.constant 1.280000e+02 : f32
      %143 = vector.broadcast %cst_75 : f32 to vector<2x1xf32>
      %144 = arith.divf %142, %143 : vector<2x1xf32>
      %145 = vector.broadcast %144 : vector<2x1xf32> to vector<2x128xf32>
      %146 = arith.subf %138, %145 : vector<2x128xf32>
      %147 = arith.mulf %146, %146 : vector<2x128xf32>
      %cst_76 = arith.constant dense<0.000000e+00> : vector<2xf32>
      %148 = vector.multi_reduction <add>, %147, %cst_76 [1] : vector<2x128xf32> to vector<2xf32>
      %149 = vector.shape_cast %148 : vector<2xf32> to vector<2x1xf32>
      %cst_77 = arith.constant 1.280000e+02 : f32
      %150 = vector.broadcast %cst_77 : f32 to vector<2x1xf32>
      %151 = arith.divf %149, %150 : vector<2x1xf32>
      %cst_78 = arith.constant 9.99999974E-6 : f32
      %152 = vector.broadcast %cst_78 : f32 to vector<2x1xf32>
      %153 = arith.addf %151, %152 : vector<2x1xf32>
      %154 = math.rsqrt %153 : vector<2x1xf32>
      %155 = vector.broadcast %154 : vector<2x1xf32> to vector<2x128xf32>
      %156 = arith.mulf %146, %155 : vector<2x128xf32>
      %157 = vector.broadcast %139 : vector<1x128xf32> to vector<2x128xf32>
      %158 = arith.mulf %156, %157 : vector<2x128xf32>
      %159 = vector.broadcast %140 : vector<1x128xf32> to vector<2x128xf32>
      %160 = arith.addf %158, %159 : vector<2x128xf32>
      %161 = arith.truncf %160 : vector<2x128xf32> to vector<2x128xbf16>
      %c0_79 = arith.constant 0 : index
      %c0_80 = arith.constant 0 : index
      %162 = vector.load %arg22[%c0_79, %c0_80] : memref<128x128xbf16, #tpu.memory_space<vmem>>, vector<128x128xbf16>
      %cst_81 = arith.constant dense<0.000000e+00> : vector<2x128xf32>
      %163 = tpu.matmul %161, %162, %cst_81 {dimension_numbers = #tpu.dot_dimension_numbers<[1], [0], [0], [1], [0, 0, 1, 1], [], []>} : vector<2x128xbf16>, vector<128x128xbf16>, vector<2x128xf32> -> vector<2x128xf32>
      %c0_82 = arith.constant 0 : index
      %c0_83 = arith.constant 0 : index
      %164 = vector.load %arg23[%c0_82, %c0_83] : memref<1x128xf32, #tpu.memory_space<vmem>>, vector<1x128xf32>
      %165 = vector.broadcast %164 : vector<1x128xf32> to vector<2x128xf32>
      %166 = arith.addf %163, %165 : vector<2x128xf32>
      %c0_84 = arith.constant 0 : index
      %c0_85 = arith.constant 0 : index
      %167 = vector.load %arg24[%c0_84, %c0_85] : memref<2x128xf32, #tpu.memory_space<vmem>>, vector<2x128xf32>
      tpu.vector_store %arg24[%c0_84, %c0_85], %166 {strides = array<i32>} : memref<2x128xf32, #tpu.memory_space<vmem>>, vector<2x128xf32>,
    } else {
    }
    return
  }
  func.func @transform_0(%arg0: i32) -> (i32, i32) {
    %c0_i32 = arith.constant 0 : i32
    %c0_i32_0 = arith.constant 0 : i32
    %c0_i32_1 = arith.constant 0 : i32
    return %c0_i32, %c0_i32_0 : i32, i32
  }
  func.func @transform_1(%arg0: i32) -> (i32, i32) {
    %c0_i32 = arith.constant 0 : i32
    %c0_i32_0 = arith.constant 0 : i32
    %c0_i32_1 = arith.constant 0 : i32
    return %c0_i32, %c0_i32_0 : i32, i32
  }
  func.func @transform_2(%arg0: i32) -> (i32, i32) {
    %c0_i32 = arith.constant 0 : i32
    %c0_i32_0 = arith.constant 0 : i32
    %c0_i32_1 = arith.constant 0 : i32
    return %c0_i32, %c0_i32_0 : i32, i32
  }
  func.func @transform_3(%arg0: i32) -> (i32, i32) {
    %c0_i32 = arith.constant 0 : i32
    %c0_i32_0 = arith.constant 0 : i32
    %c0_i32_1 = arith.constant 0 : i32
    return %c0_i32, %c0_i32_0 : i32, i32
  }
  func.func @transform_4(%arg0: i32) -> (i32, i32) {
    %c0_i32 = arith.constant 0 : i32
    %c0_i32_0 = arith.constant 0 : i32
    %c0_i32_1 = arith.constant 0 : i32
    return %c0_i32, %c0_i32_0 : i32, i32
  }
  func.func @transform_5(%arg0: i32) -> (i32, i32) {
    %c0_i32 = arith.constant 0 : i32
    %c0_i32_0 = arith.constant 0 : i32
    %c0_i32_1 = arith.constant 0 : i32
    return %c0_i32, %c0_i32_0 : i32, i32
  }
  func.func @transform_6(%arg0: i32) -> (i32, i32) {
    %c0_i32 = arith.constant 0 : i32
    %c0_i32_0 = arith.constant 0 : i32
    %c0_i32_1 = arith.constant 0 : i32
    return %c0_i32, %c0_i32_0 : i32, i32
  }
  func.func @transform_7(%arg0: i32) -> (i32, i32, i32) {
    %c0_i32 = arith.constant 0 : i32
    %c0_i32_0 = arith.constant 0 : i32
    %c0_i32_1 = arith.constant 0 : i32
    return %arg0, %c0_i32, %c0_i32_0 : i32, i32, i32
  }
  func.func @transform_8(%arg0: i32) -> (i32, i32, i32) {
    %c0_i32 = arith.constant 0 : i32
    %c0_i32_0 = arith.constant 0 : i32
    %c0_i32_1 = arith.constant 0 : i32
    return %arg0, %c0_i32, %c0_i32_0 : i32, i32, i32
  }
  func.func @transform_9(%arg0: i32) -> (i32, i32, i32) {
    %c0_i32 = arith.constant 0 : i32
    %c0_i32_0 = arith.constant 0 : i32
    %c0_i32_1 = arith.constant 0 : i32
    return %arg0, %c0_i32, %c0_i32_0 : i32, i32, i32
  }
  func.func @transform_10(%arg0: i32) -> (i32, i32, i32) {
    %c0_i32 = arith.constant 0 : i32
    %c0_i32_0 = arith.constant 0 : i32
    %c0_i32_1 = arith.constant 0 : i32
    return %arg0, %c0_i32, %c0_i32_0 : i32, i32, i32
  }
  func.func @transform_11(%arg0: i32) -> (i32, i32, i32) {
    %c0_i32 = arith.constant 0 : i32
    %c0_i32_0 = arith.constant 0 : i32
    %c0_i32_1 = arith.constant 0 : i32
    return %arg0, %c0_i32, %c0_i32_0 : i32, i32, i32
  }
  func.func @transform_12(%arg0: i32) -> (i32, i32, i32) {
    %c0_i32 = arith.constant 0 : i32
    %c0_i32_0 = arith.constant 0 : i32
    %c0_i32_1 = arith.constant 0 : i32
    return %arg0, %c0_i32, %c0_i32_0 : i32, i32, i32
  }
  func.func @transform_13(%arg0: i32) -> (i32, i32, i32) {
    %c0_i32 = arith.constant 0 : i32
    %c0_i32_0 = arith.constant 0 : i32
    %c0_i32_1 = arith.constant 0 : i32
    return %arg0, %c0_i32, %c0_i32_0 : i32, i32, i32
  }
  func.func @transform_14(%arg0: i32) -> (i32, i32, i32) {
    %c0_i32 = arith.constant 0 : i32
    %c0_i32_0 = arith.constant 0 : i32
    %c0_i32_1 = arith.constant 0 : i32
    return %arg0, %c0_i32, %c0_i32_0 : i32, i32, i32
  }
  func.func @transform_15(%arg0: i32) -> (i32, i32, i32) {
    %c0_i32 = arith.constant 0 : i32
    %c0_i32_0 = arith.constant 0 : i32
    %c0_i32_1 = arith.constant 0 : i32
    return %arg0, %c0_i32, %c0_i32_0 : i32, i32, i32
  }
  func.func @transform_16(%arg0: i32) -> (i32, i32, i32) {
    %c0_i32 = arith.constant 0 : i32
    %c0_i32_0 = arith.constant 0 : i32
    %c0_i32_1 = arith.constant 0 : i32
    return %arg0, %c0_i32, %c0_i32_0 : i32, i32, i32
  }
  func.func @transform_17(%arg0: i32) -> (i32, i32, i32) {
    %c0_i32 = arith.constant 0 : i32
    %c0_i32_0 = arith.constant 0 : i32
    %c0_i32_1 = arith.constant 0 : i32
    return %arg0, %c0_i32, %c0_i32_0 : i32, i32, i32
  }
  func.func @transform_18(%arg0: i32) -> (i32, i32, i32) {
    %c0_i32 = arith.constant 0 : i32
    %c0_i32_0 = arith.constant 0 : i32
    %c0_i32_1 = arith.constant 0 : i32
    return %arg0, %c0_i32, %c0_i32_0 : i32, i32, i32
  }
  func.func @transform_19(%arg0: i32) -> (i32, i32) {
    %c0_i32 = arith.constant 0 : i32
    %c0_i32_0 = arith.constant 0 : i32
    %c0_i32_1 = arith.constant 0 : i32
    return %c0_i32, %c0_i32_0 : i32, i32
  }
  func.func @transform_20(%arg0: i32) -> (i32, i32) {
    %c0_i32 = arith.constant 0 : i32
    %c0_i32_0 = arith.constant 0 : i32
    %c0_i32_1 = arith.constant 0 : i32
    return %c0_i32, %c0_i32_0 : i32, i32
  }
  func.func @transform_21(%arg0: i32) -> (i32, i32) {
    %c0_i32 = arith.constant 0 : i32
    %c0_i32_0 = arith.constant 0 : i32
    %c0_i32_1 = arith.constant 0 : i32
    return %c0_i32, %c0_i32_0 : i32, i32
  }
  func.func @transform_22(%arg0: i32) -> (i32, i32) {
    %c0_i32 = arith.constant 0 : i32
    %c0_i32_0 = arith.constant 0 : i32
    %c0_i32_1 = arith.constant 0 : i32
    return %c0_i32, %c0_i32_0 : i32, i32
  }
  func.func @transform_23(%arg0: i32) -> (i32, i32) {
    %c0_i32 = arith.constant 0 : i32
    %c0_i32_0 = arith.constant 0 : i32
    %c0_i32_1 = arith.constant 0 : i32
    return %c0_i32, %c0_i32_0 : i32, i32
  }
}

</mosaic_0001>

<llo_original>
// kernel: vit_forward.1
$region0: #{vit_forward.1}
  #allocation0 [shape = 'u32[]', space=smem, size = 0x4, offset = 0x4, fixed_abs, tag = 'smem constant byte address 0x4 - core index']
  #allocation1 [shape = 'u32[72,128]{1,0:T(1,128)}', space=vmem, size = 0x9000, scoped, tag = 'internal scratch']
  #allocation2 [shape = 'f32[48,128]{1,0:T(8,128)}', space=vmem, size = 0x6000, scoped, tag = 'scratch operand']
  %s0 = inlined_call_operand.vmem [shape: f32[32,48], index: 0, kind: input, shape index: {}]
  %s1 = inlined_call_operand.vmem [shape: bf16[48,128], index: 1, kind: input, shape index: {}]
  %s2 = inlined_call_operand.vmem [shape: f32[1,128], index: 2, kind: input, shape index: {}]
  %s3 = inlined_call_operand.vmem [shape: f32[1,128], index: 3, kind: input, shape index: {}]
  %s4 = inlined_call_operand.vmem [shape: f32[24,128], index: 4, kind: input, shape index: {}]
  %s5 = inlined_call_operand.vmem [shape: bf16[128,4], index: 5, kind: input, shape index: {}]
  %s6 = inlined_call_operand.vmem [shape: bf16[4,128], index: 6, kind: input, shape index: {}]
  %s7 = inlined_call_operand.vmem [shape: f32[2,1,128], index: 7, kind: input, shape index: {}]
  %s8 = inlined_call_operand.vmem [shape: f32[2,1,128], index: 8, kind: input, shape index: {}]
  %s9 = inlined_call_operand.vmem [shape: bf16[2,128,384], index: 9, kind: input, shape index: {}]
  %s10 = inlined_call_operand.vmem [shape: f32[2,1,384], index: 10, kind: input, shape index: {}]
  %s11 = inlined_call_operand.vmem [shape: bf16[2,128,128], index: 11, kind: input, shape index: {}]
  %s12 = inlined_call_operand.vmem [shape: f32[2,1,128], index: 12, kind: input, shape index: {}]
  %s13 = inlined_call_operand.vmem [shape: f32[2,1,128], index: 13, kind: input, shape index: {}]
  %s14 = inlined_call_operand.vmem [shape: f32[2,1,128], index: 14, kind: input, shape index: {}]
  %s15 = inlined_call_operand.vmem [shape: bf16[2,128,256], index: 15, kind: input, shape index: {}]
  %s16 = inlined_call_operand.vmem [shape: f32[2,1,256], index: 16, kind: input, shape index: {}]
  %s17 = inlined_call_operand.vmem [shape: bf16[2,256,128], index: 17, kind: input, shape index: {}]
  %s18 = inlined_call_operand.vmem [shape: f32[2,1,128], index: 18, kind: input, shape index: {}]
  %s19 = inlined_call_operand.vmem [shape: f32[1,128], index: 19, kind: input, shape index: {}]
  %s20 = inlined_call_operand.vmem [shape: f32[1,128], index: 20, kind: input, shape index: {}]
  %s21 = inlined_call_operand.vmem [shape: bf16[128,128], index: 21, kind: input, shape index: {}]
  %s22 = inlined_call_operand.vmem [shape: f32[1,128], index: 22, kind: input, shape index: {}]
  %s23 = inlined_call_operand.hbm [shape: f32[2,128], index: 23, kind: output, shape index: {}]
  %s24 = sld [smem:[#allocation0]]
  $region133: #{vit_forward.1} parent=0
    _
  %s26 = ssub.s32 1, %s24
  %s27 = scalar_select 0, %s26, %s24
  $region1: #{vit_forward.1} parent=0
    #allocation3 [shape = 'u8[1024]{0}', space=vmem, size = 0x400, scoped, tag = 'output window, operand 0, single buffered']
    #allocation4 [shape = 's32[2]{0}', space=sflag, size = 0x8, scoped, tag = 'scoped memory for vit_forward.1']
    %28 = vsyncpa [#allocation4], 0
    loop: start=0, step=1, limit=4
    $region2: #{vit_forward.1} parent=1 // loop_pre_header
      _
    $region3: #{vit_forward.1} parent=1 // loop_header
      %s30 = sphi 0, %s34
      %p31 = scmp.ge.s32.totalorder %s30, 4
      %s38 = sphi 0, %s38
      %s40 = sphi 0, %s38
      %s41 = sphi 0, %s40
      %s55 = sphi 0, %s41
      %s59 = sphi 0, %s59
      %s61 = sphi 0, %s59
      %s62 = sphi 0, %s61
      %s76 = sphi 0, %s62
      %s80 = sphi 0, %s80
      %s82 = sphi 0, %s80
      %s83 = sphi 0, %s82
      %s97 = sphi 0, %s83
      %s101 = sphi 0, %s101
      %s103 = sphi 0, %s101
      %s104 = sphi 0, %s103
      %s118 = sphi 0, %s104
      %s122 = sphi 0, %s122
      %s124 = sphi 0, %s122
      %s125 = sphi 0, %s124
      %s139 = sphi 0, %s125
      %s143 = sphi 0, %s143
      %s145 = sphi 0, %s143
      %s146 = sphi 0, %s145
      %s160 = sphi 0, %s146
      %s164 = sphi 0, %s164
      %s166 = sphi 0, %s164
      %s167 = sphi 0, %s166
      %s181 = sphi 0, %s167
      %s187 = sphi 0, %s189
      %s190 = sphi 0, %s187
      %s191 = sphi 0, %s190
      %s207 = sphi 0, %s191
      %s213 = sphi 0, %s215
      %s216 = sphi 0, %s213
      %s217 = sphi 0, %s216
      %s233 = sphi 0, %s217
      %s239 = sphi 0, %s241
      %s242 = sphi 0, %s239
      %s243 = sphi 0, %s242
      %s259 = sphi 0, %s243
      %s265 = sphi 0, %s267
      %s268 = sphi 0, %s265
      %s269 = sphi 0, %s268
      %s285 = sphi 0, %s269
      %s291 = sphi 0, %s293
      %s294 = sphi 0, %s291
      %s295 = sphi 0, %s294
      %s311 = sphi 0, %s295
      %s317 = sphi 0, %s319
      %s320 = sphi 0, %s317
      %s321 = sphi 0, %s320
      %s337 = sphi 0, %s321
      %s343 = sphi 0, %s345
      %s346 = sphi 0, %s343
      %s347 = sphi 0, %s346
      %s363 = sphi 0, %s347
      %s369 = sphi 0, %s371
      %s372 = sphi 0, %s369
      %s373 = sphi 0, %s372
      %s389 = sphi 0, %s373
      %s395 = sphi 0, %s397
      %s398 = sphi 0, %s395
      %s399 = sphi 0, %s398
      %s415 = sphi 0, %s399
      %s421 = sphi 0, %s423
      %s424 = sphi 0, %s421
      %s425 = sphi 0, %s424
      %s441 = sphi 0, %s425
      %s447 = sphi 0, %s449
      %s450 = sphi 0, %s447
      %s451 = sphi 0, %s450
      %s467 = sphi 0, %s451
      %s473 = sphi 0, %s475
      %s476 = sphi 0, %s473
      %s477 = sphi 0, %s476
      %s493 = sphi 0, %s477
      %s497 = sphi 0, %s497
      %s499 = sphi 0, %s497
      %s500 = sphi 0, %s499
      %s514 = sphi 0, %s500
      %s518 = sphi 0, %s518
      %s520 = sphi 0, %s518
      %s521 = sphi 0, %s520
      %s535 = sphi 0, %s521
      %s539 = sphi 0, %s539
      %s541 = sphi 0, %s539
      %s542 = sphi 0, %s541
      %s556 = sphi 0, %s542
      %s560 = sphi 0, %s560
      %s562 = sphi 0, %s560
      %s563 = sphi 0, %s562
      %s577 = sphi 0, %s563
      %s581 = sphi 0, %s581
      %s583 = sphi 0, %s581
      %s584 = sphi 0, %s583
      %s598 = sphi 0, %s584
    $region4: #{vit_forward.1} parent=1 // loop_header_branch
      %33 = sbr.rel (%p31) target = $region8
    $region5: #{vit_forward.1} parent=1 // loop_body
      %s35 = ssub.s32 %s30, 1
      %s36 = ssub.s32 %s30, 2
      %s37 = sadd.s32 %s30, 1
      %s39 = sadd.s32 %s38, 1
      %p42 = scmp.eq.s32.totalorder %s30, 1
      %p43 = scmp.ne.s32.totalorder %s38, %s40
      %p44 = scmp.eq.s32.totalorder %s30, 0
      %p45 = por %p43, %p44
      %p46 = scmp.ne.s32.totalorder %s38, %s40
      %p47 = scmp.eq.s32.totalorder %s35, 1
      %p48 = por %p46, %p47
      %p49 = scmp.ne.s32.totalorder %s40, %s41
      %p50 = scmp.eq.s32.totalorder %s35, 0
      %p51 = por %p49, %p50
      %p52 = scmp.ne.s32.totalorder %s40, %s41
      %p53 = scmp.eq.s32.totalorder %s36, 1
      %p54 = por %p52, %p53
      %p56 = scmp.ne.s32.totalorder %s41, %s55
      %p57 = scmp.eq.s32.totalorder %s36, 0
      %p58 = por %p56, %p57
      %s60 = sadd.s32 %s59, 1
      %p63 = scmp.eq.s32.totalorder %s30, 1
      %p64 = scmp.ne.s32.totalorder %s59, %s61
      %p65 = scmp.eq.s32.totalorder %s30, 0
      %p66 = por %p64, %p65
      %p67 = scmp.ne.s32.totalorder %s59, %s61
      %p68 = scmp.eq.s32.totalorder %s35, 1
      %p69 = por %p67, %p68
      %p70 = scmp.ne.s32.totalorder %s61, %s62
      %p71 = scmp.eq.s32.totalorder %s35, 0
      %p72 = por %p70, %p71
      %p73 = scmp.ne.s32.totalorder %s61, %s62
      %p74 = scmp.eq.s32.totalorder %s36, 1
      %p75 = por %p73, %p74
      %p77 = scmp.ne.s32.totalorder %s62, %s76
      %p78 = scmp.eq.s32.totalorder %s36, 0
      %p79 = por %p77, %p78
      %s81 = sadd.s32 %s80, 1
      %p84 = scmp.eq.s32.totalorder %s30, 1
      %p85 = scmp.ne.s32.totalorder %s80, %s82
      %p86 = scmp.eq.s32.totalorder %s30, 0
      %p87 = por %p85, %p86
      %p88 = scmp.ne.s32.totalorder %s80, %s82
      %p89 = scmp.eq.s32.totalorder %s35, 1
      %p90 = por %p88, %p89
      %p91 = scmp.ne.s32.totalorder %s82, %s83
      %p92 = scmp.eq.s32.totalorder %s35, 0
      %p93 = por %p91, %p92
      %p94 = scmp.ne.s32.totalorder %s82, %s83
      %p95 = scmp.eq.s32.totalorder %s36, 1
      %p96 = por %p94, %p95
      %p98 = scmp.ne.s32.totalorder %s83, %s97
      %p99 = scmp.eq.s32.totalorder %s36, 0
      %p100 = por %p98, %p99
      %s102 = sadd.s32 %s101, 1
      %p105 = scmp.eq.s32.totalorder %s30, 1
      %p106 = scmp.ne.s32.totalorder %s101, %s103
      %p107 = scmp.eq.s32.totalorder %s30, 0
      %p108 = por %p106, %p107
      %p109 = scmp.ne.s32.totalorder %s101, %s103
      %p110 = scmp.eq.s32.totalorder %s35, 1
      %p111 = por %p109, %p110
      %p112 = scmp.ne.s32.totalorder %s103, %s104
      %p113 = scmp.eq.s32.totalorder %s35, 0
      %p114 = por %p112, %p113
      %p115 = scmp.ne.s32.totalorder %s103, %s104
      %p116 = scmp.eq.s32.totalorder %s36, 1
      %p117 = por %p115, %p116
      %p119 = scmp.ne.s32.totalorder %s104, %s118
      %p120 = scmp.eq.s32.totalorder %s36, 0
      %p121 = por %p119, %p120
      %s123 = sadd.s32 %s122, 1
      %p126 = scmp.eq.s32.totalorder %s30, 1
      %p127 = scmp.ne.s32.totalorder %s122, %s124
      %p128 = scmp.eq.s32.totalorder %s30, 0
      %p129 = por %p127, %p128
      %p130 = scmp.ne.s32.totalorder %s122, %s124
      %p131 = scmp.eq.s32.totalorder %s35, 1
      %p132 = por %p130, %p131
      %p133 = scmp.ne.s32.totalorder %s124, %s125
      %p134 = scmp.eq.s32.totalorder %s35, 0
      %p135 = por %p133, %p134
      %p136 = scmp.ne.s32.totalorder %s124, %s125
      %p137 = scmp.eq.s32.totalorder %s36, 1
      %p138 = por %p136, %p137
      %p140 = scmp.ne.s32.totalorder %s125, %s139
      %p141 = scmp.eq.s32.totalorder %s36, 0
      %p142 = por %p140, %p141
      %s144 = sadd.s32 %s143, 1
      %p147 = scmp.eq.s32.totalorder %s30, 1
      %p148 = scmp.ne.s32.totalorder %s143, %s145
      %p149 = scmp.eq.s32.totalorder %s30, 0
      %p150 = por %p148, %p149
      %p151 = scmp.ne.s32.totalorder %s143, %s145
      %p152 = scmp.eq.s32.totalorder %s35, 1
      %p153 = por %p151, %p152
      %p154 = scmp.ne.s32.totalorder %s145, %s146
      %p155 = scmp.eq.s32.totalorder %s35, 0
      %p156 = por %p154, %p155
      %p157 = scmp.ne.s32.totalorder %s145, %s146
      %p158 = scmp.eq.s32.totalorder %s36, 1
      %p159 = por %p157, %p158
      %p161 = scmp.ne.s32.totalorder %s146, %s160
      %p162 = scmp.eq.s32.totalorder %s36, 0
      %p163 = por %p161, %p162
      %s165 = sadd.s32 %s164, 1
      %p168 = scmp.eq.s32.totalorder %s30, 1
      %p169 = scmp.ne.s32.totalorder %s164, %s166
      %p170 = scmp.eq.s32.totalorder %s30, 0
      %p171 = por %p169, %p170
      %p172 = scmp.ne.s32.totalorder %s164, %s166
      %p173 = scmp.eq.s32.totalorder %s35, 1
      %p174 = por %p172, %p173
      %p175 = scmp.ne.s32.totalorder %s166, %s167
      %p176 = scmp.eq.s32.totalorder %s35, 0
      %p177 = por %p175, %p176
      %p178 = scmp.ne.s32.totalorder %s166, %s167
      %p179 = scmp.eq.s32.totalorder %s36, 1
      %p180 = por %p178, %p179
      %p182 = scmp.ne.s32.totalorder %s167, %s181
      %p183 = scmp.eq.s32.totalorder %s36, 0
      %p184 = por %p182, %p183
      %s185 = ssub.s32 %s30, %s37
      %p186 = scmp.eq.s32.totalorder %s185, 0
      %s188 = sadd.s32 %s187, 1
      %s189 = scalar_select %p186, %s187, %s188
      %p192 = pneg %p186
      %p193 = scmp.eq.s32.totalorder %s30, 1
      %p194 = por %p192, %p193
      %p195 = scmp.ne.s32.totalorder %s187, %s190
      %p196 = scmp.eq.s32.totalorder %s30, 0
      %p197 = por %p195, %p196
      %p198 = scmp.ne.s32.totalorder %s187, %s190
      %p199 = scmp.eq.s32.totalorder %s35, 1
      %p200 = por %p198, %p199
      %p201 = scmp.ne.s32.totalorder %s190, %s191
      %p202 = scmp.eq.s32.totalorder %s35, 0
      %p203 = por %p201, %p202
      %p204 = scmp.ne.s32.totalorder %s190, %s191
      %p205 = scmp.eq.s32.totalorder %s36, 1
      %p206 = por %p204, %p205
      %p208 = scmp.ne.s32.totalorder %s191, %s207
      %p209 = scmp.eq.s32.totalorder %s36, 0
      %p210 = por %p208, %p209
      %s211 = ssub.s32 %s30, %s37
      %p212 = scmp.eq.s32.totalorder %s211, 0
      %s214 = sadd.s32 %s213, 1
      %s215 = scalar_select %p212, %s213, %s214
      %p218 = pneg %p212
      %p219 = scmp.eq.s32.totalorder %s30, 1
      %p220 = por %p218, %p219
      %p221 = scmp.ne.s32.totalorder %s213, %s216
      %p222 = scmp.eq.s32.totalorder %s30, 0
      %p223 = por %p221, %p222
      %p224 = scmp.ne.s32.totalorder %s213, %s216
      %p225 = scmp.eq.s32.totalorder %s35, 1
      %p226 = por %p224, %p225
      %p227 = scmp.ne.s32.totalorder %s216, %s217
      %p228 = scmp.eq.s32.totalorder %s35, 0
      %p229 = por %p227, %p228
      %p230 = scmp.ne.s32.totalorder %s216, %s217
      %p231 = scmp.eq.s32.totalorder %s36, 1
      %p232 = por %p230, %p231
      %p234 = scmp.ne.s32.totalorder %s217, %s233
      %p235 = scmp.eq.s32.totalorder %s36, 0
      %p236 = por %p234, %p235
      %s237 = ssub.s32 %s30, %s37
      %p238 = scmp.eq.s32.totalorder %s237, 0
      %s240 = sadd.s32 %s239, 1
      %s241 = scalar_select %p238, %s239, %s240
      %p244 = pneg %p238
      %p245 = scmp.eq.s32.totalorder %s30, 1
      %p246 = por %p244, %p245
      %p247 = scmp.ne.s32.totalorder %s239, %s242
      %p248 = scmp.eq.s32.totalorder %s30, 0
      %p249 = por %p247, %p248
      %p250 = scmp.ne.s32.totalorder %s239, %s242
      %p251 = scmp.eq.s32.totalorder %s35, 1
      %p252 = por %p250, %p251
      %p253 = scmp.ne.s32.totalorder %s242, %s243
      %p254 = scmp.eq.s32.totalorder %s35, 0
      %p255 = por %p253, %p254
      %p256 = scmp.ne.s32.totalorder %s242, %s243
      %p257 = scmp.eq.s32.totalorder %s36, 1
      %p258 = por %p256, %p257
      %p260 = scmp.ne.s32.totalorder %s243, %s259
      %p261 = scmp.eq.s32.totalorder %s36, 0
      %p262 = por %p260, %p261
      %s263 = ssub.s32 %s30, %s37
      %p264 = scmp.eq.s32.totalorder %s263, 0
      %s266 = sadd.s32 %s265, 1
      %s267 = scalar_select %p264, %s265, %s266
      %p270 = pneg %p264
      %p271 = scmp.eq.s32.totalorder %s30, 1
      %p272 = por %p270, %p271
      %p273 = scmp.ne.s32.totalorder %s265, %s268
      %p274 = scmp.eq.s32.totalorder %s30, 0
      %p275 = por %p273, %p274
      %p276 = scmp.ne.s32.totalorder %s265, %s268
      %p277 = scmp.eq.s32.totalorder %s35, 1
      %p278 = por %p276, %p277
      %p279 = scmp.ne.s32.totalorder %s268, %s269
      %p280 = scmp.eq.s32.totalorder %s35, 0
      %p281 = por %p279, %p280
      %p282 = scmp.ne.s32.totalorder %s268, %s269
      %p283 = scmp.eq.s32.totalorder %s36, 1
      %p284 = por %p282, %p283
      %p286 = scmp.ne.s32.totalorder %s269, %s285
      %p287 = scmp.eq.s32.totalorder %s36, 0
      %p288 = por %p286, %p287
      %s289 = ssub.s32 %s30, %s37
      %p290 = scmp.eq.s32.totalorder %s289, 0
      %s292 = sadd.s32 %s291, 1
      %s293 = scalar_select %p290, %s291, %s292
      %p296 = pneg %p290
      %p297 = scmp.eq.s32.totalorder %s30, 1
      %p298 = por %p296, %p297
      %p299 = scmp.ne.s32.totalorder %s291, %s294
      %p300 = scmp.eq.s32.totalorder %s30, 0
      %p301 = por %p299, %p300
      %p302 = scmp.ne.s32.totalorder %s291, %s294
      %p303 = scmp.eq.s32.totalorder %s35, 1
      %p304 = por %p302, %p303
      %p305 = scmp.ne.s32.totalorder %s294, %s295
      %p306 = scmp.eq.s32.totalorder %s35, 0
      %p307 = por %p305, %p306
      %p308 = scmp.ne.s32.totalorder %s294, %s295
      %p309 = scmp.eq.s32.totalorder %s36, 1
      %p310 = por %p308, %p309
      %p312 = scmp.ne.s32.totalorder %s295, %s311
      %p313 = scmp.eq.s32.totalorder %s36, 0
      %p314 = por %p312, %p313
      %s315 = ssub.s32 %s30, %s37
      %p316 = scmp.eq.s32.totalorder %s315, 0
      %s318 = sadd.s32 %s317, 1
      %s319 = scalar_select %p316, %s317, %s318
      %p322 = pneg %p316
      %p323 = scmp.eq.s32.totalorder %s30, 1
      %p324 = por %p322, %p323
      %p325 = scmp.ne.s32.totalorder %s317, %s320
      %p326 = scmp.eq.s32.totalorder %s30, 0
      %p327 = por %p325, %p326
      %p328 = scmp.ne.s32.totalorder %s317, %s320
      %p329 = scmp.eq.s32.totalorder %s35, 1
      %p330 = por %p328, %p329
      %p331 = scmp.ne.s32.totalorder %s320, %s321
      %p332 = scmp.eq.s32.totalorder %s35, 0
      %p333 = por %p331, %p332
      %p334 = scmp.ne.s32.totalorder %s320, %s321
      %p335 = scmp.eq.s32.totalorder %s36, 1
      %p336 = por %p334, %p335
      %p338 = scmp.ne.s32.totalorder %s321, %s337
      %p339 = scmp.eq.s32.totalorder %s36, 0
      %p340 = por %p338, %p339
      %s341 = ssub.s32 %s30, %s37
      %p342 = scmp.eq.s32.totalorder %s341, 0
      %s344 = sadd.s32 %s343, 1
      %s345 = scalar_select %p342, %s343, %s344
      %p348 = pneg %p342
      %p349 = scmp.eq.s32.totalorder %s30, 1
      %p350 = por %p348, %p349
      %p351 = scmp.ne.s32.totalorder %s343, %s346
      %p352 = scmp.eq.s32.totalorder %s30, 0
      %p353 = por %p351, %p352
      %p354 = scmp.ne.s32.totalorder %s343, %s346
      %p355 = scmp.eq.s32.totalorder %s35, 1
      %p356 = por %p354, %p355
      %p357 = scmp.ne.s32.totalorder %s346, %s347
      %p358 = scmp.eq.s32.totalorder %s35, 0
      %p359 = por %p357, %p358
      %p360 = scmp.ne.s32.totalorder %s346, %s347
      %p361 = scmp.eq.s32.totalorder %s36, 1
      %p362 = por %p360, %p361
      %p364 = scmp.ne.s32.totalorder %s347, %s363
      %p365 = scmp.eq.s32.totalorder %s36, 0
      %p366 = por %p364, %p365
      %s367 = ssub.s32 %s30, %s37
      %p368 = scmp.eq.s32.totalorder %s367, 0
      %s370 = sadd.s32 %s369, 1
      %s371 = scalar_select %p368, %s369, %s370
      %p374 = pneg %p368
      %p375 = scmp.eq.s32.totalorder %s30, 1
      %p376 = por %p374, %p375
      %p377 = scmp.ne.s32.totalorder %s369, %s372
      %p378 = scmp.eq.s32.totalorder %s30, 0
      %p379 = por %p377, %p378
      %p380 = scmp.ne.s32.totalorder %s369, %s372
      %p381 = scmp.eq.s32.totalorder %s35, 1
      %p382 = por %p380, %p381
      %p383 = scmp.ne.s32.totalorder %s372, %s373
      %p384 = scmp.eq.s32.totalorder %s35, 0
      %p385 = por %p383, %p384
      %p386 = scmp.ne.s32.totalorder %s372, %s373
      %p387 = scmp.eq.s32.totalorder %s36, 1
      %p388 = por %p386, %p387
      %p390 = scmp.ne.s32.totalorder %s373, %s389
      %p391 = scmp.eq.s32.totalorder %s36, 0
      %p392 = por %p390, %p391
      %s393 = ssub.s32 %s30, %s37
      %p394 = scmp.eq.s32.totalorder %s393, 0
      %s396 = sadd.s32 %s395, 1
      %s397 = scalar_select %p394, %s395, %s396
      %p400 = pneg %p394
      %p401 = scmp.eq.s32.totalorder %s30, 1
      %p402 = por %p400, %p401
      %p403 = scmp.ne.s32.totalorder %s395, %s398
      %p404 = scmp.eq.s32.totalorder %s30, 0
      %p405 = por %p403, %p404
      %p406 = scmp.ne.s32.totalorder %s395, %s398
      %p407 = scmp.eq.s32.totalorder %s35, 1
      %p408 = por %p406, %p407
      %p409 = scmp.ne.s32.totalorder %s398, %s399
      %p410 = scmp.eq.s32.totalorder %s35, 0
      %p411 = por %p409, %p410
      %p412 = scmp.ne.s32.totalorder %s398, %s399
      %p413 = scmp.eq.s32.totalorder %s36, 1
      %p414 = por %p412, %p413
      %p416 = scmp.ne.s32.totalorder %s399, %s415
      %p417 = scmp.eq.s32.totalorder %s36, 0
      %p418 = por %p416, %p417
      %s419 = ssub.s32 %s30, %s37
      %p420 = scmp.eq.s32.totalorder %s419, 0
      %s422 = sadd.s32 %s421, 1
      %s423 = scalar_select %p420, %s421, %s422
      %p426 = pneg %p420
      %p427 = scmp.eq.s32.totalorder %s30, 1
      %p428 = por %p426, %p427
      %p429 = scmp.ne.s32.totalorder %s421, %s424
      %p430 = scmp.eq.s32.totalorder %s30, 0
      %p431 = por %p429, %p430
      %p432 = scmp.ne.s32.totalorder %s421, %s424
      %p433 = scmp.eq.s32.totalorder %s35, 1
      %p434 = por %p432, %p433
      %p435 = scmp.ne.s32.totalorder %s424, %s425
      %p436 = scmp.eq.s32.totalorder %s35, 0
      %p437 = por %p435, %p436
      %p438 = scmp.ne.s32.totalorder %s424, %s425
      %p439 = scmp.eq.s32.totalorder %s36, 1
      %p440 = por %p438, %p439
      %p442 = scmp.ne.s32.totalorder %s425, %s441
      %p443 = scmp.eq.s32.totalorder %s36, 0
      %p444 = por %p442, %p443
      %s445 = ssub.s32 %s30, %s37
      %p446 = scmp.eq.s32.totalorder %s445, 0
      %s448 = sadd.s32 %s447, 1
      %s449 = scalar_select %p446, %s447, %s448
      %p452 = pneg %p446
      %p453 = scmp.eq.s32.totalorder %s30, 1
      %p454 = por %p452, %p453
      %p455 = scmp.ne.s32.totalorder %s447, %s450
      %p456 = scmp.eq.s32.totalorder %s30, 0
      %p457 = por %p455, %p456
      %p458 = scmp.ne.s32.totalorder %s447, %s450
      %p459 = scmp.eq.s32.totalorder %s35, 1
      %p460 = por %p458, %p459
      %p461 = scmp.ne.s32.totalorder %s450, %s451
      %p462 = scmp.eq.s32.totalorder %s35, 0
      %p463 = por %p461, %p462
      %p464 = scmp.ne.s32.totalorder %s450, %s451
      %p465 = scmp.eq.s32.totalorder %s36, 1
      %p466 = por %p464, %p465
      %p468 = scmp.ne.s32.totalorder %s451, %s467
      %p469 = scmp.eq.s32.totalorder %s36, 0
      %p470 = por %p468, %p469
      %s471 = ssub.s32 %s30, %s37
      %p472 = scmp.eq.s32.totalorder %s471, 0
      %s474 = sadd.s32 %s473, 1
      %s475 = scalar_select %p472, %s473, %s474
      %p478 = pneg %p472
      %p479 = scmp.eq.s32.totalorder %s30, 1
      %p480 = por %p478, %p479
      %p481 = scmp.ne.s32.totalorder %s473, %s476
      %p482 = scmp.eq.s32.totalorder %s30, 0
      %p483 = por %p481, %p482
      %p484 = scmp.ne.s32.totalorder %s473, %s476
      %p485 = scmp.eq.s32.totalorder %s35, 1
      %p486 = por %p484, %p485
      %p487 = scmp.ne.s32.totalorder %s476, %s477
      %p488 = scmp.eq.s32.totalorder %s35, 0
      %p489 = por %p487, %p488
      %p490 = scmp.ne.s32.totalorder %s476, %s477
      %p491 = scmp.eq.s32.totalorder %s36, 1
      %p492 = por %p490, %p491
      %p494 = scmp.ne.s32.totalorder %s477, %s493
      %p495 = scmp.eq.s32.totalorder %s36, 0
      %p496 = por %p494, %p495
      %s498 = sadd.s32 %s497, 1
      %p501 = scmp.eq.s32.totalorder %s30, 1
      %p502 = scmp.ne.s32.totalorder %s497, %s499
      %p503 = scmp.eq.s32.totalorder %s30, 0
      %p504 = por %p502, %p503
      %p505 = scmp.ne.s32.totalorder %s497, %s499
      %p506 = scmp.eq.s32.totalorder %s35, 1
      %p507 = por %p505, %p506
      %p508 = scmp.ne.s32.totalorder %s499, %s500
      %p509 = scmp.eq.s32.totalorder %s35, 0
      %p510 = por %p508, %p509
      %p511 = scmp.ne.s32.totalorder %s499, %s500
      %p512 = scmp.eq.s32.totalorder %s36, 1
      %p513 = por %p511, %p512
      %p515 = scmp.ne.s32.totalorder %s500, %s514
      %p516 = scmp.eq.s32.totalorder %s36, 0
      %p517 = por %p515, %p516
      %s519 = sadd.s32 %s518, 1
      %p522 = scmp.eq.s32.totalorder %s30, 1
      %p523 = scmp.ne.s32.totalorder %s518, %s520
      %p524 = scmp.eq.s32.totalorder %s30, 0
      %p525 = por %p523, %p524
      %p526 = scmp.ne.s32.totalorder %s518, %s520
      %p527 = scmp.eq.s32.totalorder %s35, 1
      %p528 = por %p526, %p527
      %p529 = scmp.ne.s32.totalorder %s520, %s521
      %p530 = scmp.eq.s32.totalorder %s35, 0
      %p531 = por %p529, %p530
      %p532 = scmp.ne.s32.totalorder %s520, %s521
      %p533 = scmp.eq.s32.totalorder %s36, 1
      %p534 = por %p532, %p533
      %p536 = scmp.ne.s32.totalorder %s521, %s535
      %p537 = scmp.eq.s32.totalorder %s36, 0
      %p538 = por %p536, %p537
      %s540 = sadd.s32 %s539, 1
      %p543 = scmp.eq.s32.totalorder %s30, 1
      %p544 = scmp.ne.s32.totalorder %s539, %s541
      %p545 = scmp.eq.s32.totalorder %s30, 0
      %p546 = por %p544, %p545
      %p547 = scmp.ne.s32.totalorder %s539, %s541
      %p548 = scmp.eq.s32.totalorder %s35, 1
      %p549 = por %p547, %p548
      %p550 = scmp.ne.s32.totalorder %s541, %s542
      %p551 = scmp.eq.s32.totalorder %s35, 0
      %p552 = por %p550, %p551
      %p553 = scmp.ne.s32.totalorder %s541, %s542
      %p554 = scmp.eq.s32.totalorder %s36, 1
      %p555 = por %p553, %p554
      %p557 = scmp.ne.s32.totalorder %s542, %s556
      %p558 = scmp.eq.s32.totalorder %s36, 0
      %p559 = por %p557, %p558
      %s561 = sadd.s32 %s560, 1
      %p564 = scmp.eq.s32.totalorder %s30, 1
      %p565 = scmp.ne.s32.totalorder %s560, %s562
      %p566 = scmp.eq.s32.totalorder %s30, 0
      %p567 = por %p565, %p566
      %p568 = scmp.ne.s32.totalorder %s560, %s562
      %p569 = scmp.eq.s32.totalorder %s35, 1
      %p570 = por %p568, %p569
      %p571 = scmp.ne.s32.totalorder %s562, %s563
      %p572 = scmp.eq.s32.totalorder %s35, 0
      %p573 = por %p571, %p572
      %p574 = scmp.ne.s32.totalorder %s562, %s563
      %p575 = scmp.eq.s32.totalorder %s36, 1
      %p576 = por %p574, %p575
      %p578 = scmp.ne.s32.totalorder %s563, %s577
      %p579 = scmp.eq.s32.totalorder %s36, 0
      %p580 = por %p578, %p579
      %s582 = sadd.s32 %s581, 1
      %p585 = scmp.eq.s32.totalorder %s30, 1
      %p586 = scmp.ne.s32.totalorder %s581, %s583
      %p587 = scmp.eq.s32.totalorder %s30, 0
      %p588 = por %p586, %p587
      %p589 = scmp.ne.s32.totalorder %s581, %s583
      %p590 = scmp.eq.s32.totalorder %s35, 1
      %p591 = por %p589, %p590
      %p592 = scmp.ne.s32.totalorder %s583, %s584
      %p593 = scmp.eq.s32.totalorder %s35, 0
      %p594 = por %p592, %p593
      %p595 = scmp.ne.s32.totalorder %s583, %s584
      %p596 = scmp.eq.s32.totalorder %s36, 1
      %p597 = por %p595, %p596
      %p599 = scmp.ne.s32.totalorder %s584, %s598
      %p600 = scmp.eq.s32.totalorder %s36, 0
      %p601 = por %p599, %p600
      %p602 = scmp.le.s32.totalorder 1, %s30
      %p603 = scmp.lt.s32.totalorder %s30, 3
      %p604 = pnand %p602, %p603
      %p605 = pneg %p604
      // Predicated region
      $region9: #{vit_forward.1} parent=5 // pred_check
        _
      $region10: #{vit_forward.1} parent=5 // pred_check_branch
        %607 = sbr.rel (%p604) target = $region12
      $region11: #{vit_forward.1} parent=5 // pred_region
        %s608 = ssub.s32 %s30, 1
        // Predicated region
        $region13: #{vit_forward.1} parent=11 // pred_check
          %p609 = pneg %p51
        $region14: #{vit_forward.1} parent=11 // pred_check_branch
          %611 = sbr.rel (%p609) target = $region16
        $region15: #{vit_forward.1} parent=11 // pred_region
          _
        $region16: #{vit_forward.1} parent=11 // pred_fallthru
          _
        // Predicated region
        $region17: #{vit_forward.1} parent=11 // pred_check
          %p612 = pneg %p72
        $region18: #{vit_forward.1} parent=11 // pred_check_branch
          %614 = sbr.rel (%p612) target = $region20
        $region19: #{vit_forward.1} parent=11 // pred_region
          _
        $region20: #{vit_forward.1} parent=11 // pred_fallthru
          _
        // Predicated region
        $region21: #{vit_forward.1} parent=11 // pred_check
          %p615 = pneg %p93
        $region22: #{vit_forward.1} parent=11 // pred_check_branch
          %617 = sbr.rel (%p615) target = $region24
        $region23: #{vit_forward.1} parent=11 // pred_region
          _
        $region24: #{vit_forward.1} parent=11 // pred_fallthru
          _
        // Predicated region
        $region25: #{vit_forward.1} parent=11 // pred_check
          %p618 = pneg %p114
        $region26: #{vit_forward.1} parent=11 // pred_check_branch
          %620 = sbr.rel (%p618) target = $region28
        $region27: #{vit_forward.1} parent=11 // pred_region
          _
        $region28: #{vit_forward.1} parent=11 // pred_fallthru
          _
        // Predicated region
        $region29: #{vit_forward.1} parent=11 // pred_check
          %p621 = pneg %p135
        $region30: #{vit_forward.1} parent=11 // pred_check_branch
          %623 = sbr.rel (%p621) target = $region32
        $region31: #{vit_forward.1} parent=11 // pred_region
          _
        $region32: #{vit_forward.1} parent=11 // pred_fallthru
          _
        // Predicated region
        $region33: #{vit_forward.1} parent=11 // pred_check
          %p624 = pneg %p156
        $region34: #{vit_forward.1} parent=11 // pred_check_branch
          %626 = sbr.rel (%p624) target = $region36
        $region35: #{vit_forward.1} parent=11 // pred_region
          _
        $region36: #{vit_forward.1} parent=11 // pred_fallthru
          _
        // Predicated region
        $region37: #{vit_forward.1} parent=11 // pred_check
          %p627 = pneg %p177
        $region38: #{vit_forward.1} parent=11 // pred_check_branch
          %629 = sbr.rel (%p627) target = $region40
        $region39: #{vit_forward.1} parent=11 // pred_region
          _
        $region40: #{vit_forward.1} parent=11 // pred_fallthru
          _
        // Predicated region
        $region41: #{vit_forward.1} parent=11 // pred_check
          %p630 = pneg %p510
        $region42: #{vit_forward.1} parent=11 // pred_check_branch
          %632 = sbr.rel (%p630) target = $region44
        $region43: #{vit_forward.1} parent=11 // pred_region
          _
        $region44: #{vit_forward.1} parent=11 // pred_fallthru
          _
        // Predicated region
        $region45: #{vit_forward.1} parent=11 // pred_check
          %p633 = pneg %p531
        $region46: #{vit_forward.1} parent=11 // pred_check_branch
          %635 = sbr.rel (%p633) target = $region48
        $region47: #{vit_forward.1} parent=11 // pred_region
          _
        $region48: #{vit_forward.1} parent=11 // pred_fallthru
          _
        // Predicated region
        $region49: #{vit_forward.1} parent=11 // pred_check
          %p636 = pneg %p552
        $region50: #{vit_forward.1} parent=11 // pred_check_branch
          %638 = sbr.rel (%p636) target = $region52
        $region51: #{vit_forward.1} parent=11 // pred_region
          _
        $region52: #{vit_forward.1} parent=11 // pred_fallthru
          _
        // Predicated region
        $region53: #{vit_forward.1} parent=11 // pred_check
          %p639 = pneg %p573
        $region54: #{vit_forward.1} parent=11 // pred_check_branch
          %641 = sbr.rel (%p639) target = $region56
        $region55: #{vit_forward.1} parent=11 // pred_region
          _
        $region56: #{vit_forward.1} parent=11 // pred_fallthru
          _
      $region12: #{vit_forward.1} parent=5 // pred_fallthru
        _
      %p642 = scmp.lt.s32.totalorder %s30, 2
      // Predicated region
      $region57: #{vit_forward.1} parent=5 // pred_check
        %p643 = pneg %p642
      $region58: #{vit_forward.1} parent=5 // pred_check_branch
        %645 = sbr.rel (%p643) target = $region60
      $region59: #{vit_forward.1} parent=5 // pred_region
        // Predicated region
        $region61: #{vit_forward.1} parent=59 // pred_check
          %p646 = pneg %p197
        $region62: #{vit_forward.1} parent=59 // pred_check_branch
          %648 = sbr.rel (%p646) target = $region64
        $region63: #{vit_forward.1} parent=59 // pred_region
          %p649 = scmp.lt.s32.totalorder %s30, 1
          %s650 = scalar_select %p649, %s30, 1
          %s651 = scalar_lea.vmem %s7, %s650
        $region64: #{vit_forward.1} parent=59 // pred_fallthru
          _
        // Predicated region
        $region65: #{vit_forward.1} parent=59 // pred_check
          %p652 = pneg %p223
        $region66: #{vit_forward.1} parent=59 // pred_check_branch
          %654 = sbr.rel (%p652) target = $region68
        $region67: #{vit_forward.1} parent=59 // pred_region
          %p655 = scmp.lt.s32.totalorder %s30, 1
          %s656 = scalar_select %p655, %s30, 1
          %s657 = scalar_lea.vmem %s8, %s656
        $region68: #{vit_forward.1} parent=59 // pred_fallthru
          _
        // Predicated region
        $region69: #{vit_forward.1} parent=59 // pred_check
          %p658 = pneg %p249
        $region70: #{vit_forward.1} parent=59 // pred_check_branch
          %660 = sbr.rel (%p658) target = $region72
        $region71: #{vit_forward.1} parent=59 // pred_region
          %p661 = scmp.lt.s32.totalorder %s30, 1
          %s662 = scalar_select %p661, %s30, 1
          %s663 = smul.addr %s662, 48
          %s664 = smul.addr %s663, 4
          %s665 = scalar_lea.vmem %s9, %s664
        $region72: #{vit_forward.1} parent=59 // pred_fallthru
          _
        // Predicated region
        $region73: #{vit_forward.1} parent=59 // pred_check
          %p666 = pneg %p275
        $region74: #{vit_forward.1} parent=59 // pred_check_branch
          %668 = sbr.rel (%p666) target = $region76
        $region75: #{vit_forward.1} parent=59 // pred_region
          %p669 = scmp.lt.s32.totalorder %s30, 1
          %s670 = scalar_select %p669, %s30, 1
          %s671 = smul.addr %s670, 3
          %s672 = scalar_lea.vmem %s10, %s671
        $region76: #{vit_forward.1} parent=59 // pred_fallthru
          _
        // Predicated region
        $region77: #{vit_forward.1} parent=59 // pred_check
          %p673 = pneg %p301
        $region78: #{vit_forward.1} parent=59 // pred_check_branch
          %675 = sbr.rel (%p673) target = $region80
        $region79: #{vit_forward.1} parent=59 // pred_region
          %p676 = scmp.lt.s32.totalorder %s30, 1
          %s677 = scalar_select %p676, %s30, 1
          %s678 = smul.addr %s677, 16
          %s679 = smul.addr %s678, 4
          %s680 = scalar_lea.vmem %s11, %s679
        $region80: #{vit_forward.1} parent=59 // pred_fallthru
          _
        // Predicated region
        $region81: #{vit_forward.1} parent=59 // pred_check
          %p681 = pneg %p327
        $region82: #{vit_forward.1} parent=59 // pred_check_branch
          %683 = sbr.rel (%p681) target = $region84
        $region83: #{vit_forward.1} parent=59 // pred_region
          %p684 = scmp.lt.s32.totalorder %s30, 1
          %s685 = scalar_select %p684, %s30, 1
          %s686 = scalar_lea.vmem %s12, %s685
        $region84: #{vit_forward.1} parent=59 // pred_fallthru
          _
        // Predicated region
        $region85: #{vit_forward.1} parent=59 // pred_check
          %p687 = pneg %p353
        $region86: #{vit_forward.1} parent=59 // pred_check_branch
          %689 = sbr.rel (%p687) target = $region88
        $region87: #{vit_forward.1} parent=59 // pred_region
          %p690 = scmp.lt.s32.totalorder %s30, 1
          %s691 = scalar_select %p690, %s30, 1
          %s692 = scalar_lea.vmem %s13, %s691
        $region88: #{vit_forward.1} parent=59 // pred_fallthru
          _
        // Predicated region
        $region89: #{vit_forward.1} parent=59 // pred_check
          %p693 = pneg %p379
        $region90: #{vit_forward.1} parent=59 // pred_check_branch
          %695 = sbr.rel (%p693) target = $region92
        $region91: #{vit_forward.1} parent=59 // pred_region
          %p696 = scmp.lt.s32.totalorder %s30, 1
          %s697 = scalar_select %p696, %s30, 1
          %s698 = scalar_lea.vmem %s14, %s697
        $region92: #{vit_forward.1} parent=59 // pred_fallthru
          _
        // Predicated region
        $region93: #{vit_forward.1} parent=59 // pred_check
          %p699 = pneg %p405
        $region94: #{vit_forward.1} parent=59 // pred_check_branch
          %701 = sbr.rel (%p699) target = $region96
        $region95: #{vit_forward.1} parent=59 // pred_region
          %p702 = scmp.lt.s32.totalorder %s30, 1
          %s703 = scalar_select %p702, %s30, 1
          %s704 = smul.addr %s703, 32
          %s705 = smul.addr %s704, 4
          %s706 = scalar_lea.vmem %s15, %s705
        $region96: #{vit_forward.1} parent=59 // pred_fallthru
          _
        // Predicated region
        $region97: #{vit_forward.1} parent=59 // pred_check
          %p707 = pneg %p431
        $region98: #{vit_forward.1} parent=59 // pred_check_branch
          %709 = sbr.rel (%p707) target = $region100
        $region99: #{vit_forward.1} parent=59 // pred_region
          %p710 = scmp.lt.s32.totalorder %s30, 1
          %s711 = scalar_select %p710, %s30, 1
          %s712 = smul.addr %s711, 2
          %s713 = scalar_lea.vmem %s16, %s712
        $region100: #{vit_forward.1} parent=59 // pred_fallthru
          _
        // Predicated region
        $region101: #{vit_forward.1} parent=59 // pred_check
          %p714 = pneg %p457
        $region102: #{vit_forward.1} parent=59 // pred_check_branch
          %716 = sbr.rel (%p714) target = $region104
        $region103: #{vit_forward.1} parent=59 // pred_region
          %p717 = scmp.lt.s32.totalorder %s30, 1
          %s718 = scalar_select %p717, %s30, 1
          %s719 = smul.addr %s718, 32
          %s720 = smul.addr %s719, 4
          %s721 = scalar_lea.vmem %s17, %s720
        $region104: #{vit_forward.1} parent=59 // pred_fallthru
          _
        // Predicated region
        $region105: #{vit_forward.1} parent=59 // pred_check
          %p722 = pneg %p483
        $region106: #{vit_forward.1} parent=59 // pred_check_branch
          %724 = sbr.rel (%p722) target = $region108
        $region107: #{vit_forward.1} parent=59 // pred_region
          %p725 = scmp.lt.s32.totalorder %s30, 1
          %s726 = scalar_select %p725, %s30, 1
          %s727 = scalar_lea.vmem %s18, %s726
        $region108: #{vit_forward.1} parent=59 // pred_fallthru
          _
      $region60: #{vit_forward.1} parent=5 // pred_fallthru
        _
      %p728 = scmp.le.s32.totalorder 1, %s30
      %p729 = scmp.lt.s32.totalorder %s30, 3
      %p730 = pnand %p728, %p729
      %p731 = pneg %p730
      // Predicated region
      $region109: #{vit_forward.1} parent=5 // pred_check
        _
      $region110: #{vit_forward.1} parent=5 // pred_check_branch
        %733 = sbr.rel (%p730) target = $region112
      $region111: #{vit_forward.1} parent=5 // pred_region
        %s734 = ssub.s32 %s30, 1
        %p735 = pneg %p51
        %p736 = pneg %p48
        %p737 = pneg %p72
        %p738 = pneg %p69
        %p739 = pneg %p93
        %p740 = pneg %p90
        %p741 = pneg %p114
        %p742 = pneg %p111
        %p743 = pneg %p135
        %p744 = pneg %p132
        %p745 = pneg %p156
        %p746 = pneg %p153
        %p747 = pneg %p177
        %p748 = pneg %p174
        %p749 = scmp.lt.s32.totalorder %s35, 1
        %s750 = scalar_select %p749, %s35, 1
        %s751 = scalar_lea.vmem %s7, %s750
        %p752 = pneg %p203
        %p753 = pneg %p200
        %p754 = scmp.lt.s32.totalorder %s35, 1
        %s755 = scalar_select %p754, %s35, 1
        %s756 = scalar_lea.vmem %s8, %s755
        %p757 = pneg %p229
        %p758 = pneg %p226
        %p759 = scmp.lt.s32.totalorder %s35, 1
        %s760 = scalar_select %p759, %s35, 1
        %s761 = smul.addr %s760, 48
        %s762 = smul.addr %s761, 4
        %s763 = scalar_lea.vmem %s9, %s762
        %p764 = pneg %p255
        %p765 = pneg %p252
        %p766 = scmp.lt.s32.totalorder %s35, 1
        %s767 = scalar_select %p766, %s35, 1
        %s768 = smul.addr %s767, 3
        %s769 = scalar_lea.vmem %s10, %s768
        %p770 = pneg %p281
        %p771 = pneg %p278
        %p772 = scmp.lt.s32.totalorder %s35, 1
        %s773 = scalar_select %p772, %s35, 1
        %s774 = smul.addr %s773, 16
        %s775 = smul.addr %s774, 4
        %s776 = scalar_lea.vmem %s11, %s775
        %p777 = pneg %p307
        %p778 = pneg %p304
        %p779 = scmp.lt.s32.totalorder %s35, 1
        %s780 = scalar_select %p779, %s35, 1
        %s781 = scalar_lea.vmem %s12, %s780
        %p782 = pneg %p333
        %p783 = pneg %p330
        %p784 = scmp.lt.s32.totalorder %s35, 1
        %s785 = scalar_select %p784, %s35, 1
        %s786 = scalar_lea.vmem %s13, %s785
        %p787 = pneg %p359
        %p788 = pneg %p356
        %p789 = scmp.lt.s32.totalorder %s35, 1
        %s790 = scalar_select %p789, %s35, 1
        %s791 = scalar_lea.vmem %s14, %s790
        %p792 = pneg %p385
        %p793 = pneg %p382
        %p794 = scmp.lt.s32.totalorder %s35, 1
        %s795 = scalar_select %p794, %s35, 1
        %s796 = smul.addr %s795, 32
        %s797 = smul.addr %s796, 4
        %s798 = scalar_lea.vmem %s15, %s797
        %p799 = pneg %p411
        %p800 = pneg %p408
        %p801 = scmp.lt.s32.totalorder %s35, 1
        %s802 = scalar_select %p801, %s35, 1
        %s803 = smul.addr %s802, 2
        %s804 = scalar_lea.vmem %s16, %s803
        %p805 = pneg %p437
        %p806 = pneg %p434
        %p807 = scmp.lt.s32.totalorder %s35, 1
        %s808 = scalar_select %p807, %s35, 1
        %s809 = smul.addr %s808, 32
        %s810 = smul.addr %s809, 4
        %s811 = scalar_lea.vmem %s17, %s810
        %p812 = pneg %p463
        %p813 = pneg %p460
        %p814 = scmp.lt.s32.totalorder %s35, 1
        %s815 = scalar_select %p814, %s35, 1
        %s816 = scalar_lea.vmem %s18, %s815
        %p817 = pneg %p489
        %p818 = pneg %p486
        %p819 = pneg %p510
        %p820 = pneg %p507
        %p821 = pneg %p531
        %p822 = pneg %p528
        %p823 = pneg %p552
        %p824 = pneg %p549
        %p825 = pneg %p573
        %p826 = pneg %p570
        %p827 = pneg %p594
        %p828 = pneg %p591
        %p829 = scmp.lt.s32.totalorder %s35, 1
        %s830 = scalar_select %p829, %s35, 1
        %s831 = scalar_lea.vmem %s7, %s830
        %p832 = scmp.lt.s32.totalorder %s35, 1
        %s833 = scalar_select %p832, %s35, 1
        %s834 = scalar_lea.vmem %s8, %s833
        %p835 = scmp.lt.s32.totalorder %s35, 1
        %s836 = scalar_select %p835, %s35, 1
        %s837 = smul.addr %s836, 48
        %s838 = smul.addr %s837, 4
        %s839 = scalar_lea.vmem %s9, %s838
        %p840 = scmp.lt.s32.totalorder %s35, 1
        %s841 = scalar_select %p840, %s35, 1
        %s842 = smul.addr %s841, 3
        %s843 = scalar_lea.vmem %s10, %s842
        %p844 = scmp.lt.s32.totalorder %s35, 1
        %s845 = scalar_select %p844, %s35, 1
        %s846 = smul.addr %s845, 16
        %s847 = smul.addr %s846, 4
        %s848 = scalar_lea.vmem %s11, %s847
        %p849 = scmp.lt.s32.totalorder %s35, 1
        %s850 = scalar_select %p849, %s35, 1
        %s851 = scalar_lea.vmem %s12, %s850
        %p852 = scmp.lt.s32.totalorder %s35, 1
        %s853 = scalar_select %p852, %s35, 1
        %s854 = scalar_lea.vmem %s13, %s853
        %p855 = scmp.lt.s32.totalorder %s35, 1
        %s856 = scalar_select %p855, %s35, 1
        %s857 = scalar_lea.vmem %s14, %s856
        %p858 = scmp.lt.s32.totalorder %s35, 1
        %s859 = scalar_select %p858, %s35, 1
        %s860 = smul.addr %s859, 32
        %s861 = smul.addr %s860, 4
        %s862 = scalar_lea.vmem %s15, %s861
        %p863 = scmp.lt.s32.totalorder %s35, 1
        %s864 = scalar_select %p863, %s35, 1
        %s865 = smul.addr %s864, 2
        %s866 = scalar_lea.vmem %s16, %s865
        %p867 = scmp.lt.s32.totalorder %s35, 1
        %s868 = scalar_select %p867, %s35, 1
        %s869 = smul.addr %s868, 32
        %s870 = smul.addr %s869, 4
        %s871 = scalar_lea.vmem %s17, %s870
        %p872 = scmp.lt.s32.totalorder %s35, 1
        %s873 = scalar_select %p872, %s35, 1
        %s874 = scalar_lea.vmem %s18, %s873
        %p876 = scmp.eq.s32.totalorder %s35, 0
        // Predicated region
        $region113: #{vit_forward.1} parent=111 // pred_check
          %p877 = pneg %p876
        $region114: #{vit_forward.1} parent=111 // pred_check_branch
          %879 = sbr.rel (%p877) target = $region116
        $region115: #{vit_forward.1} parent=111 // pred_region
          %v880 = vld [vmem:[%s0] sm:$0xff]
          %v881 = vld [vmem:[%s0 + $0x8] sm:$0xff]
          %v882 = vld [vmem:[%s0 + $0x10] sm:$0xff]
          %v883 = vld [vmem:[%s0 + $0x18] sm:$0xff]
          %v884 = vpack.c.bf16 %v881, %v880
          %v885 = vpack.c.bf16 %v883, %v882
          %v886 = vld [vmem:[%s1] sm:$0xf]
          %v887 = vld [vmem:[%s1 + $0x4] sm:$0xf]
          %v888 = vld [vmem:[%s1 + $0x8] sm:$0xf]
          %v889 = vld [vmem:[%s1 + $0xc] sm:$0xf]
          %v890 = vld [vmem:[%s1 + $0x10] sm:$0xf]
          %v891 = vld [vmem:[%s1 + $0x14] sm:$0xf]
          %v892 = vld [vmem:[%s2] sm:$0x1]
          %v894 = vperm.slane %v892, 0
          %v902 = vunpack.c.l.b16 %v886
          %v903 = vunpack.c.l.b16 %v887
          %v904 = vunpack.c.l.b16 %v888
          %v905 = vunpack.c.l.b16 %v889
          %v906 = vunpack.c.l.b16 %v890
          %v907 = vunpack.c.l.b16 %v891
          %v908 = vpack.c.b16 %v903, %v902
          %v909 = vpack.c.b16 %v905, %v904
          %v910 = vpack.c.b16 %v907, %v906
          %vm914 = vcmask 392192
          %v916 = vsel %vm914, %v884, 0
          %v919 = vsel %vm914, %v885, 0
          %921 = vmatpush.bf16.msra.mxu0 0
          %922 = vmatpush.bf16.msra.mxu0 0
          %923 = vmatpush.bf16.msra.mxu0 0
          %924 = vmatpush.bf16.msra.mxu0 0
          %925 = vmatpush.bf16.msra.mxu0 0
          %926 = vmatpush.bf16.msra.mxu0 %v910
          %927 = vmatpush.bf16.msra.mxu0 %v909
          %928 = vmatpush.bf16.msra.mxu0 %v908
          %929 = vmatmul.bf16.gmra.mxu0 %v916
          %v930 = vpop.f32.mrf.mxu0
          %v931 = vadd.f32 %v894, %v930
          %v932 = vpop.f32.mrf.mxu0
          %v933 = vadd.f32 %v894, %v932
          %934 = vmatmul.bf16.gmra.mxu0 %v919
          %v935 = vpop.f32.mrf.mxu0
          %v936 = vadd.f32 %v894, %v935
          %v937 = vpop.f32.mrf.mxu0
          %v938 = vadd.f32 %v894, %v937
          %939 = vdwg.mxu0
          %v940 = vld [vmem:[%s3] sm:$0x1]
          %v941 = vld [vmem:[%s4] sm:$0xff]
          %v942 = vld [vmem:[%s4 + $0x8] sm:$0xff]
          %v943 = vld [vmem:[%s4 + $0x10] sm:$0xff]
          %vm946 = vcmask 1040384
          %v947 = vrot.slane %v931, 7
          %v948 = vrot.slane %v933, 7
          %v949 = vsel %vm946, %v947, %v948
          %v953 = vsel %vm946, %v940, %v947
          %v954 = vsel %vm946, %v948, 0.0
          %v955 = vadd.f32 %v953, %v941
          %v956 = vadd.f32 %v949, %v942
          %v957 = vadd.f32 %v954, %v943
          %958 = vst [vmem:[#allocation2] sm:$0xff] %v955
          %959 = vst [vmem:[#allocation2 + $0x8] sm:$0xff] %v956
          %960 = vst [vmem:[#allocation2 + $0x10] sm:$0xff] %v957
          %v963 = vrot.slane %v936, 7
          %v964 = vrot.slane %v938, 7
          %v965 = vsel %vm946, %v963, %v964
          %v969 = vsel %vm946, %v940, %v963
          %v970 = vsel %vm946, %v964, 0.0
          %v971 = vadd.f32 %v969, %v941
          %v972 = vadd.f32 %v965, %v942
          %v973 = vadd.f32 %v970, %v943
          %974 = vst [vmem:[#allocation2 + $0x18] sm:$0xff] %v971
          %975 = vst [vmem:[#allocation2 + $0x20] sm:$0xff] %v972
          %976 = vst [vmem:[#allocation2 + $0x28] sm:$0xff] %v973
        $region116: #{vit_forward.1} parent=111 // pred_fallthru
          _
        %v977 = vld [vmem:[#allocation2] sm:$0xff]
        %v978 = vld [vmem:[#allocation2 + $0x8] sm:$0xff]
        %v979 = vld [vmem:[#allocation2 + $0x10] sm:$0xff]
        %v980 = vld [vmem:[#allocation2 + $0x18] sm:$0xff]
        %v981 = vld [vmem:[#allocation2 + $0x20] sm:$0xff]
        %v982 = vld [vmem:[#allocation2 + $0x28] sm:$0xff]
        %v983 = vld [vmem:[%s831] sm:$0x1]
        %v984 = vld [vmem:[%s834] sm:$0x1]
        %985 = vadd.xlane.f32.xlu0 %v977
        %v986 = vpop.xlane.xlu0 %985
        %987 = vadd.xlane.f32.xlu0 %v978
        %v988 = vpop.xlane.xlu0 %987
        %989 = vadd.xlane.f32.xlu0 %v979
        %v990 = vpop.xlane.xlu0 %989
        %991 = vadd.xlane.f32.xlu0 %v980
        %v992 = vpop.xlane.xlu0 %991
        %993 = vadd.xlane.f32.xlu0 %v981
        %v994 = vpop.xlane.xlu0 %993
        %995 = vadd.xlane.f32.xlu0 %v982
        %v996 = vpop.xlane.xlu0 %995
        %v997 = vrcp.pop 128.0
        %v998 = vmul.f32 128.0, %v997
        %v999 = vsub.f32 1.0, %v998
        %v1000 = vmul.f32 %v997, %v999
        %v1001 = vadd.f32 %v997, %v1000
        %vm1002 = vweird.f32 %v997
        %v1003 = vsel %vm1002, %v997, %v1001
        %v1004 = vmul.f32 %v986, %v1003
        %v1005 = vmul.f32 %v988, %v1003
        %v1006 = vmul.f32 %v990, %v1003
        %v1007 = vmul.f32 %v992, %v1003
        %v1008 = vmul.f32 %v994, %v1003
        %v1009 = vmul.f32 %v996, %v1003
        %v1010 = vsub.f32 %v977, %v1004
        %v1011 = vsub.f32 %v978, %v1005
        %v1012 = vsub.f32 %v979, %v1006
        %v1013 = vsub.f32 %v980, %v1007
        %v1014 = vsub.f32 %v981, %v1008
        %v1015 = vsub.f32 %v982, %v1009
        %v1016 = vmul.f32 %v1010, %v1010
        %v1017 = vmul.f32 %v1011, %v1011
        %v1018 = vmul.f32 %v1012, %v1012
        %v1019 = vmul.f32 %v1013, %v1013
        %v1020 = vmul.f32 %v1014, %v1014
        %v1021 = vmul.f32 %v1015, %v1015
        %1022 = vadd.xlane.f32.xlu0 %v1016
        %v1023 = vpop.xlane.xlu0 %1022
        %1024 = vadd.xlane.f32.xlu0 %v1017
        %v1025 = vpop.xlane.xlu0 %1024
        %1026 = vadd.xlane.f32.xlu0 %v1018
        %v1027 = vpop.xlane.xlu0 %1026
        %1028 = vadd.xlane.f32.xlu0 %v1019
        %v1029 = vpop.xlane.xlu0 %1028
        %1030 = vadd.xlane.f32.xlu0 %v1020
        %v1031 = vpop.xlane.xlu0 %1030
        %1032 = vadd.xlane.f32.xlu0 %v1021
        %v1033 = vpop.xlane.xlu0 %1032
        %v1034 = vmul.f32 %v1023, %v1003
        %v1035 = vmul.f32 %v1025, %v1003
        %v1036 = vmul.f32 %v1027, %v1003
        %v1037 = vmul.f32 %v1029, %v1003
        %v1038 = vmul.f32 %v1031, %v1003
        %v1039 = vmul.f32 %v1033, %v1003
        %v1040 = vadd.f32 %v1034, 1e-05
        %v1041 = vadd.f32 %v1035, 1e-05
        %v1042 = vadd.f32 %v1036, 1e-05
        %v1043 = vadd.f32 %v1037, 1e-05
        %v1044 = vadd.f32 %v1038, 1e-05
        %v1045 = vadd.f32 %v1039, 1e-05
        %v1046 = vrsqrt.pop %v1040
        %v1047 = vmul.f32 %v1046, %v1040
        %v1048 = vmul.f32 %v1047, %v1046
        %v1049 = vmul.f32 0.5, %v1048
        %v1050 = vsub.f32 1.5, %v1049
        %v1051 = vmul.f32 %v1046, %v1050
        %vm1052 = vweird.f32 %v1040
        %vm1053 = vweird.f32 %v1046
        %vm1054 = vmor %vm1052, %vm1053
        %v1055 = vsel %vm1054, %v1046, %v1051
        %v1056 = vrsqrt.pop %v1041
        %v1057 = vmul.f32 %v1056, %v1041
        %v1058 = vmul.f32 %v1057, %v1056
        %v1059 = vmul.f32 0.5, %v1058
        %v1060 = vsub.f32 1.5, %v1059
        %v1061 = vmul.f32 %v1056, %v1060
        %vm1062 = vweird.f32 %v1041
        %vm1063 = vweird.f32 %v1056
        %vm1064 = vmor %vm1062, %vm1063
        %v1065 = vsel %vm1064, %v1056, %v1061
        %v1066 = vrsqrt.pop %v1042
        %v1067 = vmul.f32 %v1066, %v1042
        %v1068 = vmul.f32 %v1067, %v1066
        %v1069 = vmul.f32 0.5, %v1068
        %v1070 = vsub.f32 1.5, %v1069
        %v1071 = vmul.f32 %v1066, %v1070
        %vm1072 = vweird.f32 %v1042
        %vm1073 = vweird.f32 %v1066
        %vm1074 = vmor %vm1072, %vm1073
        %v1075 = vsel %vm1074, %v1066, %v1071
        %v1076 = vrsqrt.pop %v1043
        %v1077 = vmul.f32 %v1076, %v1043
        %v1078 = vmul.f32 %v1077, %v1076
        %v1079 = vmul.f32 0.5, %v1078
        %v1080 = vsub.f32 1.5, %v1079
        %v1081 = vmul.f32 %v1076, %v1080
        %vm1082 = vweird.f32 %v1043
        %vm1083 = vweird.f32 %v1076
        %vm1084 = vmor %vm1082, %vm1083
        %v1085 = vsel %vm1084, %v1076, %v1081
        %v1086 = vrsqrt.pop %v1044
        %v1087 = vmul.f32 %v1086, %v1044
        %v1088 = vmul.f32 %v1087, %v1086
        %v1089 = vmul.f32 0.5, %v1088
        %v1090 = vsub.f32 1.5, %v1089
        %v1091 = vmul.f32 %v1086, %v1090
        %vm1092 = vweird.f32 %v1044
        %vm1093 = vweird.f32 %v1086
        %vm1094 = vmor %vm1092, %vm1093
        %v1095 = vsel %vm1094, %v1086, %v1091
        %v1096 = vrsqrt.pop %v1045
        %v1097 = vmul.f32 %v1096, %v1045
        %v1098 = vmul.f32 %v1097, %v1096
        %v1099 = vmul.f32 0.5, %v1098
        %v1100 = vsub.f32 1.5, %v1099
        %v1101 = vmul.f32 %v1096, %v1100
        %vm1102 = vweird.f32 %v1045
        %vm1103 = vweird.f32 %v1096
        %vm1104 = vmor %vm1102, %vm1103
        %v1105 = vsel %vm1104, %v1096, %v1101
        %v1106 = vmul.f32 %v1010, %v1055
        %v1107 = vmul.f32 %v1011, %v1065
        %v1108 = vmul.f32 %v1012, %v1075
        %v1109 = vmul.f32 %v1013, %v1085
        %v1110 = vmul.f32 %v1014, %v1095
        %v1111 = vmul.f32 %v1015, %v1105
        %v1113 = vperm.slane %v983, 0
        %v1115 = vmul.f32 %v1106, %v1113
        %v1116 = vmul.f32 %v1107, %v1113
        %v1117 = vmul.f32 %v1108, %v1113
        %v1118 = vmul.f32 %v1109, %v1113
        %v1119 = vmul.f32 %v1110, %v1113
        %v1120 = vmul.f32 %v1111, %v1113
        %v1122 = vperm.slane %v984, 0
        %v1124 = vadd.f32 %v1115, %v1122
        %v1125 = vadd.f32 %v1116, %v1122
        %v1126 = vadd.f32 %v1117, %v1122
        %v1127 = vadd.f32 %v1118, %v1122
        %v1128 = vadd.f32 %v1119, %v1122
        %v1129 = vadd.f32 %v1120, %v1122
        %v1130 = vpack.c.bf16 %v1125, %v1124
        %v1131 = vpack.c.bf16 %v1127, %v1126
        %v1132 = vpack.c.bf16 %v1129, %v1128
        %v1133 = vld [vmem:[%s839] sm:$0xff]
        %v1134 = vld [vmem:[%s839 + $0x8] sm:$0xf]
        %v1135 = vld [vmem:[%s839 + $0xc] sm:$0xff]
        %v1136 = vld [vmem:[%s839 + $0x14] sm:$0xf]
        %v1137 = vld [vmem:[%s839 + $0x18] sm:$0xff]
        %v1138 = vld [vmem:[%s839 + $0x20] sm:$0xf]
        %v1139 = vld [vmem:[%s839 + $0x24] sm:$0xff]
        %v1140 = vld [vmem:[%s839 + $0x2c] sm:$0xf]
        %v1141 = vld [vmem:[%s839 + $0x30] sm:$0xff]
        %v1142 = vld [vmem:[%s839 + $0x38] sm:$0xf]
        %v1143 = vld [vmem:[%s839 + $0x3c] sm:$0xff]
        %v1144 = vld [vmem:[%s839 + $0x44] sm:$0xf]
        %v1145 = vld [vmem:[%s839 + $0x48] sm:$0xff]
        %v1146 = vld [vmem:[%s839 + $0x50] sm:$0xf]
        %v1147 = vld [vmem:[%s839 + $0x54] sm:$0xff]
        %v1148 = vld [vmem:[%s839 + $0x5c] sm:$0xf]
        %v1149 = vld [vmem:[%s839 + $0x60] sm:$0xff]
        %v1150 = vld [vmem:[%s839 + $0x68] sm:$0xf]
        %v1151 = vld [vmem:[%s839 + $0x6c] sm:$0xff]
        %v1152 = vld [vmem:[%s839 + $0x74] sm:$0xf]
        %v1153 = vld [vmem:[%s839 + $0x78] sm:$0xff]
        %v1154 = vld [vmem:[%s839 + $0x80] sm:$0xf]
        %v1155 = vld [vmem:[%s839 + $0x84] sm:$0xff]
        %v1156 = vld [vmem:[%s839 + $0x8c] sm:$0xf]
        %v1157 = vld [vmem:[%s839 + $0x90] sm:$0xff]
        %v1158 = vld [vmem:[%s839 + $0x98] sm:$0xf]
        %v1159 = vld [vmem:[%s839 + $0x9c] sm:$0xff]
        %v1160 = vld [vmem:[%s839 + $0xa4] sm:$0xf]
        %v1161 = vld [vmem:[%s839 + $0xa8] sm:$0xff]
        %v1162 = vld [vmem:[%s839 + $0xb0] sm:$0xf]
        %v1163 = vld [vmem:[%s839 + $0xb4] sm:$0xff]
        %v1164 = vld [vmem:[%s839 + $0xbc] sm:$0xf]
        %v1165 = vld [vmem:[%s843] sm:$0x7]
        %v1167 = vperm.slane %v1165, 0
        %v1168 = vperm.slane %v1165, 1
        %v1169 = vperm.slane %v1165, 2
        %v1205 = vunpack.c.l.b16 %v1133
        %v1206 = vunpack.c.h.b16 %v1133
        %v1207 = vunpack.c.l.b16 %v1134
        %v1208 = vunpack.c.l.b16 %v1135
        %v1209 = vunpack.c.h.b16 %v1135
        %v1210 = vunpack.c.l.b16 %v1136
        %v1211 = vunpack.c.l.b16 %v1137
        %v1212 = vunpack.c.h.b16 %v1137
        %v1213 = vunpack.c.l.b16 %v1138
        %v1214 = vunpack.c.l.b16 %v1139
        %v1215 = vunpack.c.h.b16 %v1139
        %v1216 = vunpack.c.l.b16 %v1140
        %v1217 = vunpack.c.l.b16 %v1141
        %v1218 = vunpack.c.h.b16 %v1141
        %v1219 = vunpack.c.l.b16 %v1142
        %v1220 = vunpack.c.l.b16 %v1143
        %v1221 = vunpack.c.h.b16 %v1143
        %v1222 = vunpack.c.l.b16 %v1144
        %v1223 = vunpack.c.l.b16 %v1145
        %v1224 = vunpack.c.h.b16 %v1145
        %v1225 = vunpack.c.l.b16 %v1146
        %v1226 = vunpack.c.l.b16 %v1147
        %v1227 = vunpack.c.h.b16 %v1147
        %v1228 = vunpack.c.l.b16 %v1148
        %v1229 = vunpack.c.l.b16 %v1149
        %v1230 = vunpack.c.h.b16 %v1149
        %v1231 = vunpack.c.l.b16 %v1150
        %v1232 = vunpack.c.l.b16 %v1151
        %v1233 = vunpack.c.h.b16 %v1151
        %v1234 = vunpack.c.l.b16 %v1152
        %v1235 = vunpack.c.l.b16 %v1153
        %v1236 = vunpack.c.h.b16 %v1153
        %v1237 = vunpack.c.l.b16 %v1154
        %v1238 = vunpack.c.l.b16 %v1155
        %v1239 = vunpack.c.h.b16 %v1155
        %v1240 = vunpack.c.l.b16 %v1156
        %v1241 = vunpack.c.l.b16 %v1157
        %v1242 = vunpack.c.h.b16 %v1157
        %v1243 = vunpack.c.l.b16 %v1158
        %v1244 = vunpack.c.l.b16 %v1159
        %v1245 = vunpack.c.h.b16 %v1159
        %v1246 = vunpack.c.l.b16 %v1160
        %v1247 = vunpack.c.l.b16 %v1161
        %v1248 = vunpack.c.h.b16 %v1161
        %v1249 = vunpack.c.l.b16 %v1162
        %v1250 = vunpack.c.l.b16 %v1163
        %v1251 = vunpack.c.h.b16 %v1163
        %v1252 = vunpack.c.l.b16 %v1164
        %v1253 = vpack.c.b16 %v1208, %v1205
        %v1254 = vpack.c.b16 %v1209, %v1206
        %v1255 = vpack.c.b16 %v1210, %v1207
        %v1256 = vpack.c.b16 %v1214, %v1211
        %v1257 = vpack.c.b16 %v1215, %v1212
        %v1258 = vpack.c.b16 %v1216, %v1213
        %v1259 = vpack.c.b16 %v1220, %v1217
        %v1260 = vpack.c.b16 %v1221, %v1218
        %v1261 = vpack.c.b16 %v1222, %v1219
        %v1262 = vpack.c.b16 %v1226, %v1223
        %v1263 = vpack.c.b16 %v1227, %v1224
        %v1264 = vpack.c.b16 %v1228, %v1225
        %v1265 = vpack.c.b16 %v1232, %v1229
        %v1266 = vpack.c.b16 %v1233, %v1230
        %v1267 = vpack.c.b16 %v1234, %v1231
        %v1268 = vpack.c.b16 %v1238, %v1235
        %v1269 = vpack.c.b16 %v1239, %v1236
        %v1270 = vpack.c.b16 %v1240, %v1237
        %v1271 = vpack.c.b16 %v1244, %v1241
        %v1272 = vpack.c.b16 %v1245, %v1242
        %v1273 = vpack.c.b16 %v1246, %v1243
        %v1274 = vpack.c.b16 %v1250, %v1247
        %v1275 = vpack.c.b16 %v1251, %v1248
        %v1276 = vpack.c.b16 %v1252, %v1249
        %1301 = vmatpush.bf16.msra.mxu0 %v1274
        %1302 = vmatpush.bf16.msra.mxu0 %v1271
        %1303 = vmatpush.bf16.msra.mxu0 %v1268
        %1304 = vmatpush.bf16.msra.mxu0 %v1265
        %1305 = vmatpush.bf16.msra.mxu0 %v1262
        %1306 = vmatpush.bf16.msra.mxu0 %v1259
        %1307 = vmatpush.bf16.msra.mxu0 %v1256
        %1308 = vmatpush.bf16.msra.mxu0 %v1253
        %1309 = vmatmul.bf16.gmra.mxu0 %v1130
        %v1310 = vpop.f32.mrf.mxu0
        %v1311 = vadd.f32 %v1167, %v1310
        %v1312 = vpop.f32.mrf.mxu0
        %v1313 = vadd.f32 %v1167, %v1312
        %1314 = vmatmul.bf16.gmra.mxu0 %v1131
        %v1315 = vpop.f32.mrf.mxu0
        %v1316 = vadd.f32 %v1167, %v1315
        %v1317 = vpop.f32.mrf.mxu0
        %v1318 = vadd.f32 %v1167, %v1317
        %1319 = vmatmul.bf16.gmra.mxu0 %v1132
        %v1320 = vpop.f32.mrf.mxu0
        %v1321 = vadd.f32 %v1167, %v1320
        %v1322 = vpop.f32.mrf.mxu0
        %v1323 = vadd.f32 %v1167, %v1322
        %1324 = vdwg.mxu0
        %1325 = vmatpush.bf16.msra.mxu0 %v1275
        %1326 = vmatpush.bf16.msra.mxu0 %v1272
        %1327 = vmatpush.bf16.msra.mxu0 %v1269
        %1328 = vmatpush.bf16.msra.mxu0 %v1266
        %1329 = vmatpush.bf16.msra.mxu0 %v1263
        %1330 = vmatpush.bf16.msra.mxu0 %v1260
        %1331 = vmatpush.bf16.msra.mxu0 %v1257
        %1332 = vmatpush.bf16.msra.mxu0 %v1254
        %1333 = vmatmul.bf16.gmra.mxu0 %v1130
        %v1334 = vpop.f32.mrf.mxu0
        %v1335 = vadd.f32 %v1168, %v1334
        %v1336 = vpop.f32.mrf.mxu0
        %v1337 = vadd.f32 %v1168, %v1336
        %1338 = vmatmul.bf16.gmra.mxu0 %v1131
        %v1339 = vpop.f32.mrf.mxu0
        %v1340 = vadd.f32 %v1168, %v1339
        %v1341 = vpop.f32.mrf.mxu0
        %v1342 = vadd.f32 %v1168, %v1341
        %1343 = vmatmul.bf16.gmra.mxu0 %v1132
        %v1344 = vpop.f32.mrf.mxu0
        %v1345 = vadd.f32 %v1168, %v1344
        %v1346 = vpop.f32.mrf.mxu0
        %v1347 = vadd.f32 %v1168, %v1346
        %1348 = vdwg.mxu0
        %1349 = vmatpush.bf16.msra.mxu0 %v1276
        %1350 = vmatpush.bf16.msra.mxu0 %v1273
        %1351 = vmatpush.bf16.msra.mxu0 %v1270
        %1352 = vmatpush.bf16.msra.mxu0 %v1267
        %1353 = vmatpush.bf16.msra.mxu0 %v1264
        %1354 = vmatpush.bf16.msra.mxu0 %v1261
        %1355 = vmatpush.bf16.msra.mxu0 %v1258
        %1356 = vmatpush.bf16.msra.mxu0 %v1255
        %1357 = vmatmul.bf16.gmra.mxu0 %v1130
        %v1358 = vpop.f32.mrf.mxu0
        %v1359 = vadd.f32 %v1169, %v1358
        %v1360 = vpop.f32.mrf.mxu0
        %v1361 = vadd.f32 %v1169, %v1360
        %1362 = vmatmul.bf16.gmra.mxu0 %v1131
        %v1363 = vpop.f32.mrf.mxu0
        %v1364 = vadd.f32 %v1169, %v1363
        %v1365 = vpop.f32.mrf.mxu0
        %v1366 = vadd.f32 %v1169, %v1365
        %1367 = vmatmul.bf16.gmra.mxu0 %v1132
        %v1368 = vpop.f32.mrf.mxu0
        %v1369 = vadd.f32 %v1169, %v1368
        %v1370 = vpop.f32.mrf.mxu0
        %v1371 = vadd.f32 %v1169, %v1370
        %1372 = vdwg.mxu0
        %v1373 = vmul.f32 %v1311, 0.17677669
        %v1374 = vmul.f32 %v1313, 0.17677669
        %v1375 = vmul.f32 %v1316, 0.17677669
        %v1376 = vmul.f32 %v1318, 0.17677669
        %v1377 = vmul.f32 %v1321, 0.17677669
        %v1378 = vmul.f32 %v1323, 0.17677669
        %v1379 = vmul.f32 %v1373, %v1335
        %v1380 = vmul.f32 %v1374, %v1337
        %v1381 = vmul.f32 %v1375, %v1340
        %v1382 = vmul.f32 %v1373, %v1342
        %v1383 = vmul.f32 %v1374, %v1345
        %v1384 = vmul.f32 %v1375, %v1347
        %v1385 = vmul.f32 %v1376, %v1335
        %v1386 = vmul.f32 %v1377, %v1337
        %v1387 = vmul.f32 %v1378, %v1340
        %v1388 = vmul.f32 %v1376, %v1342
        %v1389 = vmul.f32 %v1377, %v1345
        %v1390 = vmul.f32 %v1378, %v1347
        %v1391 = vpack.c.bf16 %v1380, %v1379
        %v1392 = vpack.c.bf16 %v1382, %v1381
        %v1393 = vpack.c.bf16 %v1384, %v1383
        %v1394 = vpack.c.bf16 %v1386, %v1385
        %v1395 = vpack.c.bf16 %v1388, %v1387
        %v1396 = vpack.c.bf16 %v1390, %v1389
        %v1397 = vld [vmem:[%s5] sm:$0xf]
        %v1398 = vld [vmem:[%s5 + $0x4] sm:$0xf]
        %v1399 = vld [vmem:[%s5 + $0x8] sm:$0xf]
        %v1400 = vld [vmem:[%s5 + $0xc] sm:$0xf]
        %v1401 = vld [vmem:[%s5 + $0x10] sm:$0xf]
        %v1402 = vld [vmem:[%s5 + $0x14] sm:$0xf]
        %v1403 = vld [vmem:[%s5 + $0x18] sm:$0xf]
        %v1404 = vld [vmem:[%s5 + $0x1c] sm:$0xf]
        %v1405 = vld [vmem:[%s5 + $0x20] sm:$0xf]
        %v1406 = vld [vmem:[%s5 + $0x24] sm:$0xf]
        %v1407 = vld [vmem:[%s5 + $0x28] sm:$0xf]
        %v1408 = vld [vmem:[%s5 + $0x2c] sm:$0xf]
        %v1409 = vld [vmem:[%s5 + $0x30] sm:$0xf]
        %v1410 = vld [vmem:[%s5 + $0x34] sm:$0xf]
        %v1411 = vld [vmem:[%s5 + $0x38] sm:$0xf]
        %v1412 = vld [vmem:[%s5 + $0x3c] sm:$0xf]
        %v1429 = vunpack.c.l.b16 %v1397
        %v1430 = vunpack.c.l.b16 %v1398
        %v1431 = vunpack.c.l.b16 %v1399
        %v1432 = vunpack.c.l.b16 %v1400
        %v1433 = vunpack.c.l.b16 %v1401
        %v1434 = vunpack.c.l.b16 %v1402
        %v1435 = vunpack.c.l.b16 %v1403
        %v1436 = vunpack.c.l.b16 %v1404
        %v1437 = vunpack.c.l.b16 %v1405
        %v1438 = vunpack.c.l.b16 %v1406
        %v1439 = vunpack.c.l.b16 %v1407
        %v1440 = vunpack.c.l.b16 %v1408
        %v1441 = vunpack.c.l.b16 %v1409
        %v1442 = vunpack.c.l.b16 %v1410
        %v1443 = vunpack.c.l.b16 %v1411
        %v1444 = vunpack.c.l.b16 %v1412
        %v1445 = vpack.c.b16 %v1430, %v1429
        %v1446 = vpack.c.b16 %v1432, %v1431
        %v1447 = vpack.c.b16 %v1434, %v1433
        %v1448 = vpack.c.b16 %v1436, %v1435
        %v1449 = vpack.c.b16 %v1438, %v1437
        %v1450 = vpack.c.b16 %v1440, %v1439
        %v1451 = vpack.c.b16 %v1442, %v1441
        %v1452 = vpack.c.b16 %v1444, %v1443
        %1461 = vmatpush.bf16.msra.mxu0 %v1452
        %1462 = vmatpush.bf16.msra.mxu0 %v1451
        %1463 = vmatpush.bf16.msra.mxu0 %v1450
        %1464 = vmatpush.bf16.msra.mxu0 %v1449
        %1465 = vmatpush.bf16.msra.mxu0 %v1448
        %1466 = vmatpush.bf16.msra.mxu0 %v1447
        %1467 = vmatpush.bf16.msra.mxu0 %v1446
        %1468 = vmatpush.bf16.msra.mxu0 %v1445
        %1469 = vmatmul.bf16.gmra.mxu0 %v1391
        %v1470 = vpop.f32.mrf.mxu0
        %v1471 = vadd.f32 0.0, %v1470
        %v1472 = vpop.f32.mrf.mxu0
        %v1473 = vadd.f32 0.0, %v1472
        %1474 = vmatmul.bf16.gmra.mxu0 %v1392
        %v1475 = vpop.f32.mrf.mxu0
        %v1476 = vadd.f32 0.0, %v1475
        %v1477 = vpop.f32.mrf.mxu0
        %v1478 = vadd.f32 0.0, %v1477
        %1479 = vmatmul.bf16.gmra.mxu0 %v1393
        %v1480 = vpop.f32.mrf.mxu0
        %v1481 = vadd.f32 0.0, %v1480
        %v1482 = vpop.f32.mrf.mxu0
        %v1483 = vadd.f32 0.0, %v1482
        %1484 = vmatmul.bf16.gmra.mxu0 %v1394
        %v1485 = vpop.f32.mrf.mxu0
        %v1486 = vadd.f32 0.0, %v1485
        %v1487 = vpop.f32.mrf.mxu0
        %v1488 = vadd.f32 0.0, %v1487
        %1489 = vmatmul.bf16.gmra.mxu0 %v1395
        %v1490 = vpop.f32.mrf.mxu0
        %v1491 = vadd.f32 0.0, %v1490
        %v1492 = vpop.f32.mrf.mxu0
        %v1493 = vadd.f32 0.0, %v1492
        %1494 = vmatmul.bf16.gmra.mxu0 %v1396
        %v1495 = vpop.f32.mrf.mxu0
        %v1496 = vadd.f32 0.0, %v1495
        %v1497 = vpop.f32.mrf.mxu0
        %v1498 = vadd.f32 0.0, %v1497
        %1499 = vdwg.mxu0
        %vm1500 = vcmask 31744
        %v1501 = vsel %vm1500, %v1471, -inf
        %v1502 = vsel %vm1500, %v1478, -inf
        %v1503 = vmax.f32 %v1501, %v1502
        %v1504 = vsel %vm1500, %v1473, -inf
        %v1505 = vsel %vm1500, %v1481, -inf
        %v1506 = vmax.f32 %v1504, %v1505
        %v1507 = vsel %vm1500, %v1476, -inf
        %v1508 = vsel %vm1500, %v1483, -inf
        %v1509 = vmax.f32 %v1507, %v1508
        %v1510 = vsel %vm1500, %v1486, -inf
        %v1511 = vsel %vm1500, %v1493, -inf
        %v1512 = vmax.f32 %v1510, %v1511
        %v1513 = vsel %vm1500, %v1488, -inf
        %v1514 = vsel %vm1500, %v1496, -inf
        %v1515 = vmax.f32 %v1513, %v1514
        %v1516 = vsel %vm1500, %v1491, -inf
        %v1517 = vsel %vm1500, %v1498, -inf
        %v1518 = vmax.f32 %v1516, %v1517
        %v1519 = vsub.f32 %v1471, %v1503
        %v1520 = vsub.f32 %v1473, %v1506
        %v1521 = vsub.f32 %v1476, %v1509
        %v1522 = vsub.f32 %v1478, %v1503
        %v1523 = vsub.f32 %v1481, %v1506
        %v1524 = vsub.f32 %v1483, %v1509
        %v1525 = vsub.f32 %v1486, %v1512
        %v1526 = vsub.f32 %v1488, %v1515
        %v1527 = vsub.f32 %v1491, %v1518
        %v1528 = vsub.f32 %v1493, %v1512
        %v1529 = vsub.f32 %v1496, %v1515
        %v1530 = vsub.f32 %v1498, %v1518
        %v1531 = vmul.f32 %v1519, 1.442695
        %v1532 = vpow.pop %v1531
        %v1533 = vmul.f32 %v1520, 1.442695
        %v1534 = vpow.pop %v1533
        %v1535 = vmul.f32 %v1521, 1.442695
        %v1536 = vpow.pop %v1535
        %v1537 = vmul.f32 %v1522, 1.442695
        %v1538 = vpow.pop %v1537
        %v1539 = vmul.f32 %v1523, 1.442695
        %v1540 = vpow.pop %v1539
        %v1541 = vmul.f32 %v1524, 1.442695
        %v1542 = vpow.pop %v1541
        %v1543 = vmul.f32 %v1525, 1.442695
        %v1544 = vpow.pop %v1543
        %v1545 = vmul.f32 %v1526, 1.442695
        %v1546 = vpow.pop %v1545
        %v1547 = vmul.f32 %v1527, 1.442695
        %v1548 = vpow.pop %v1547
        %v1549 = vmul.f32 %v1528, 1.442695
        %v1550 = vpow.pop %v1549
        %v1551 = vmul.f32 %v1529, 1.442695
        %v1552 = vpow.pop %v1551
        %v1553 = vmul.f32 %v1530, 1.442695
        %v1554 = vpow.pop %v1553
        %v1555 = vsel %vm1500, %v1532, 0.0
        %v1556 = vsel %vm1500, %v1538, 0.0
        %v1557 = vadd.f32 %v1555, %v1556
        %v1558 = vsel %vm1500, %v1534, 0.0
        %v1559 = vsel %vm1500, %v1540, 0.0
        %v1560 = vadd.f32 %v1558, %v1559
        %v1561 = vsel %vm1500, %v1536, 0.0
        %v1562 = vsel %vm1500, %v1542, 0.0
        %v1563 = vadd.f32 %v1561, %v1562
        %v1564 = vsel %vm1500, %v1544, 0.0
        %v1565 = vsel %vm1500, %v1550, 0.0
        %v1566 = vadd.f32 %v1564, %v1565
        %v1567 = vsel %vm1500, %v1546, 0.0
        %v1568 = vsel %vm1500, %v1552, 0.0
        %v1569 = vadd.f32 %v1567, %v1568
        %v1570 = vsel %vm1500, %v1548, 0.0
        %v1571 = vsel %vm1500, %v1554, 0.0
        %v1572 = vadd.f32 %v1570, %v1571
        %v1573 = vrcp.pop %v1557
        %v1574 = vrcp.pop %v1560
        %v1575 = vrcp.pop %v1563
        %v1576 = vrcp.pop %v1566
        %v1577 = vrcp.pop %v1569
        %v1578 = vrcp.pop %v1572
        %v1579 = vmul.f32 %v1532, %v1573
        %v1580 = vmul.f32 %v1534, %v1574
        %v1581 = vmul.f32 %v1536, %v1575
        %v1582 = vmul.f32 %v1538, %v1573
        %v1583 = vmul.f32 %v1540, %v1574
        %v1584 = vmul.f32 %v1542, %v1575
        %v1585 = vmul.f32 %v1544, %v1576
        %v1586 = vmul.f32 %v1546, %v1577
        %v1587 = vmul.f32 %v1548, %v1578
        %v1588 = vmul.f32 %v1550, %v1576
        %v1589 = vmul.f32 %v1552, %v1577
        %v1590 = vmul.f32 %v1554, %v1578
        %v1591 = vpack.c.bf16 %v1580, %v1579
        %v1592 = vpack.c.bf16 %v1582, %v1581
        %v1593 = vpack.c.bf16 %v1584, %v1583
        %v1594 = vpack.c.bf16 %v1586, %v1585
        %v1595 = vpack.c.bf16 %v1588, %v1587
        %v1596 = vpack.c.bf16 %v1590, %v1589
        %v1597 = vld [vmem:[%s6] sm:$0x3]
        %v1599 = vsel %vm1500, %v1591, 0
        %v1602 = vsel %vm1500, %v1592, 0
        %v1605 = vsel %vm1500, %v1593, 0
        %v1608 = vsel %vm1500, %v1594, 0
        %v1611 = vsel %vm1500, %v1595, 0
        %v1614 = vsel %vm1500, %v1596, 0
        %vm1616 = vcmask 1041408
        %v1618 = vsel %vm1616, %v1597, 0
        %1620 = vmatpush.bf16.msra.mxu0 0
        %1621 = vmatpush.bf16.msra.mxu0 0
        %1622 = vmatpush.bf16.msra.mxu0 0
        %1623 = vmatpush.bf16.msra.mxu0 0
        %1624 = vmatpush.bf16.msra.mxu0 0
        %1625 = vmatpush.bf16.msra.mxu0 0
        %1626 = vmatpush.bf16.msra.mxu0 0
        %1627 = vmatpush.bf16.msra.mxu0 %v1618
        %1628 = vmatmul.bf16.gmra.mxu0 %v1599
        %v1629 = vpop.f32.mrf.mxu0
        %v1630 = vadd.f32 0.0, %v1629
        %v1631 = vpop.f32.mrf.mxu0
        %v1632 = vadd.f32 0.0, %v1631
        %1633 = vmatmul.bf16.gmra.mxu0 %v1602
        %v1634 = vpop.f32.mrf.mxu0
        %v1635 = vadd.f32 0.0, %v1634
        %v1636 = vpop.f32.mrf.mxu0
        %v1637 = vadd.f32 0.0, %v1636
        %1638 = vmatmul.bf16.gmra.mxu0 %v1605
        %v1639 = vpop.f32.mrf.mxu0
        %v1640 = vadd.f32 0.0, %v1639
        %v1641 = vpop.f32.mrf.mxu0
        %v1642 = vadd.f32 0.0, %v1641
        %1643 = vmatmul.bf16.gmra.mxu0 %v1608
        %v1644 = vpop.f32.mrf.mxu0
        %v1645 = vadd.f32 0.0, %v1644
        %v1646 = vpop.f32.mrf.mxu0
        %v1647 = vadd.f32 0.0, %v1646
        %1648 = vmatmul.bf16.gmra.mxu0 %v1611
        %v1649 = vpop.f32.mrf.mxu0
        %v1650 = vadd.f32 0.0, %v1649
        %v1651 = vpop.f32.mrf.mxu0
        %v1652 = vadd.f32 0.0, %v1651
        %1653 = vmatmul.bf16.gmra.mxu0 %v1614
        %v1654 = vpop.f32.mrf.mxu0
        %v1655 = vadd.f32 0.0, %v1654
        %v1656 = vpop.f32.mrf.mxu0
        %v1657 = vadd.f32 0.0, %v1656
        %1658 = vdwg.mxu0
        %v1659 = vmul.f32 %v1630, %v1359
        %v1660 = vmul.f32 %v1632, %v1361
        %v1661 = vmul.f32 %v1635, %v1364
        %v1662 = vmul.f32 %v1637, %v1366
        %v1663 = vmul.f32 %v1640, %v1369
        %v1664 = vmul.f32 %v1642, %v1371
        %v1665 = vmul.f32 %v1645, %v1359
        %v1666 = vmul.f32 %v1647, %v1361
        %v1667 = vmul.f32 %v1650, %v1364
        %v1668 = vmul.f32 %v1652, %v1366
        %v1669 = vmul.f32 %v1655, %v1369
        %v1670 = vmul.f32 %v1657, %v1371
        %v1671 = vadd.f32 %v1659, %v1662
        %v1672 = vadd.f32 %v1660, %v1663
        %v1673 = vadd.f32 %v1661, %v1664
        %v1674 = vadd.f32 %v1665, %v1668
        %v1675 = vadd.f32 %v1666, %v1669
        %v1676 = vadd.f32 %v1667, %v1670
        %v1677 = vpack.c.bf16 %v1672, %v1671
        %v1678 = vpack.c.bf16 %v1674, %v1673
        %v1679 = vpack.c.bf16 %v1676, %v1675
        %v1680 = vld [vmem:[%s848] sm:$0xf]
        %v1681 = vld [vmem:[%s848 + $0x4] sm:$0xf]
        %v1682 = vld [vmem:[%s848 + $0x8] sm:$0xf]
        %v1683 = vld [vmem:[%s848 + $0xc] sm:$0xf]
        %v1684 = vld [vmem:[%s848 + $0x10] sm:$0xf]
        %v1685 = vld [vmem:[%s848 + $0x14] sm:$0xf]
        %v1686 = vld [vmem:[%s848 + $0x18] sm:$0xf]
        %v1687 = vld [vmem:[%s848 + $0x1c] sm:$0xf]
        %v1688 = vld [vmem:[%s848 + $0x20] sm:$0xf]
        %v1689 = vld [vmem:[%s848 + $0x24] sm:$0xf]
        %v1690 = vld [vmem:[%s848 + $0x28] sm:$0xf]
        %v1691 = vld [vmem:[%s848 + $0x2c] sm:$0xf]
        %v1692 = vld [vmem:[%s848 + $0x30] sm:$0xf]
        %v1693 = vld [vmem:[%s848 + $0x34] sm:$0xf]
        %v1694 = vld [vmem:[%s848 + $0x38] sm:$0xf]
        %v1695 = vld [vmem:[%s848 + $0x3c] sm:$0xf]
        %v1696 = vld [vmem:[%s851] sm:$0x1]
        %v1698 = vperm.slane %v1696, 0
        %v1716 = vunpack.c.l.b16 %v1680
        %v1717 = vunpack.c.l.b16 %v1681
        %v1718 = vunpack.c.l.b16 %v1682
        %v1719 = vunpack.c.l.b16 %v1683
        %v1720 = vunpack.c.l.b16 %v1684
        %v1721 = vunpack.c.l.b16 %v1685
        %v1722 = vunpack.c.l.b16 %v1686
        %v1723 = vunpack.c.l.b16 %v1687
        %v1724 = vunpack.c.l.b16 %v1688
        %v1725 = vunpack.c.l.b16 %v1689
        %v1726 = vunpack.c.l.b16 %v1690
        %v1727 = vunpack.c.l.b16 %v1691
        %v1728 = vunpack.c.l.b16 %v1692
        %v1729 = vunpack.c.l.b16 %v1693
        %v1730 = vunpack.c.l.b16 %v1694
        %v1731 = vunpack.c.l.b16 %v1695
        %v1732 = vpack.c.b16 %v1717, %v1716
        %v1733 = vpack.c.b16 %v1719, %v1718
        %v1734 = vpack.c.b16 %v1721, %v1720
        %v1735 = vpack.c.b16 %v1723, %v1722
        %v1736 = vpack.c.b16 %v1725, %v1724
        %v1737 = vpack.c.b16 %v1727, %v1726
        %v1738 = vpack.c.b16 %v1729, %v1728
        %v1739 = vpack.c.b16 %v1731, %v1730
        %1748 = vmatpush.bf16.msra.mxu0 %v1739
        %1749 = vmatpush.bf16.msra.mxu0 %v1738
        %1750 = vmatpush.bf16.msra.mxu0 %v1737
        %1751 = vmatpush.bf16.msra.mxu0 %v1736
        %1752 = vmatpush.bf16.msra.mxu0 %v1735
        %1753 = vmatpush.bf16.msra.mxu0 %v1734
        %1754 = vmatpush.bf16.msra.mxu0 %v1733
        %1755 = vmatpush.bf16.msra.mxu0 %v1732
        %1756 = vmatmul.bf16.gmra.mxu0 %v1677
        %v1757 = vpop.f32.mrf.mxu0
        %v1758 = vadd.f32 %v1698, %v1757
        %v1759 = vpop.f32.mrf.mxu0
        %v1760 = vadd.f32 %v1698, %v1759
        %1761 = vmatmul.bf16.gmra.mxu0 %v1678
        %v1762 = vpop.f32.mrf.mxu0
        %v1763 = vadd.f32 %v1698, %v1762
        %v1764 = vpop.f32.mrf.mxu0
        %v1765 = vadd.f32 %v1698, %v1764
        %1766 = vmatmul.bf16.gmra.mxu0 %v1679
        %v1767 = vpop.f32.mrf.mxu0
        %v1768 = vadd.f32 %v1698, %v1767
        %v1769 = vpop.f32.mrf.mxu0
        %v1770 = vadd.f32 %v1698, %v1769
        %1771 = vdwg.mxu0
        %v1772 = vadd.f32 %v977, %v1758
        %v1773 = vadd.f32 %v978, %v1760
        %v1774 = vadd.f32 %v979, %v1763
        %v1775 = vadd.f32 %v980, %v1765
        %v1776 = vadd.f32 %v981, %v1768
        %v1777 = vadd.f32 %v982, %v1770
        %v1778 = vld [vmem:[%s854] sm:$0x1]
        %v1779 = vld [vmem:[%s857] sm:$0x1]
        %1780 = vadd.xlane.f32.xlu0 %v1772
        %v1781 = vpop.xlane.xlu0 %1780
        %1782 = vadd.xlane.f32.xlu0 %v1773
        %v1783 = vpop.xlane.xlu0 %1782
        %1784 = vadd.xlane.f32.xlu0 %v1774
        %v1785 = vpop.xlane.xlu0 %1784
        %1786 = vadd.xlane.f32.xlu0 %v1775
        %v1787 = vpop.xlane.xlu0 %1786
        %1788 = vadd.xlane.f32.xlu0 %v1776
        %v1789 = vpop.xlane.xlu0 %1788
        %1790 = vadd.xlane.f32.xlu0 %v1777
        %v1791 = vpop.xlane.xlu0 %1790
        %v1792 = vmul.f32 %v1781, %v1003
        %v1793 = vmul.f32 %v1783, %v1003
        %v1794 = vmul.f32 %v1785, %v1003
        %v1795 = vmul.f32 %v1787, %v1003
        %v1796 = vmul.f32 %v1789, %v1003
        %v1797 = vmul.f32 %v1791, %v1003
        %v1798 = vsub.f32 %v1772, %v1792
        %v1799 = vsub.f32 %v1773, %v1793
        %v1800 = vsub.f32 %v1774, %v1794
        %v1801 = vsub.f32 %v1775, %v1795
        %v1802 = vsub.f32 %v1776, %v1796
        %v1803 = vsub.f32 %v1777, %v1797
        %v1804 = vmul.f32 %v1798, %v1798
        %v1805 = vmul.f32 %v1799, %v1799
        %v1806 = vmul.f32 %v1800, %v1800
        %v1807 = vmul.f32 %v1801, %v1801
        %v1808 = vmul.f32 %v1802, %v1802
        %v1809 = vmul.f32 %v1803, %v1803
        %1810 = vadd.xlane.f32.xlu0 %v1804
        %v1811 = vpop.xlane.xlu0 %1810
        %1812 = vadd.xlane.f32.xlu0 %v1805
        %v1813 = vpop.xlane.xlu0 %1812
        %1814 = vadd.xlane.f32.xlu0 %v1806
        %v1815 = vpop.xlane.xlu0 %1814
        %1816 = vadd.xlane.f32.xlu0 %v1807
        %v1817 = vpop.xlane.xlu0 %1816
        %1818 = vadd.xlane.f32.xlu0 %v1808
        %v1819 = vpop.xlane.xlu0 %1818
        %1820 = vadd.xlane.f32.xlu0 %v1809
        %v1821 = vpop.xlane.xlu0 %1820
        %v1822 = vmul.f32 %v1811, %v1003
        %v1823 = vmul.f32 %v1813, %v1003
        %v1824 = vmul.f32 %v1815, %v1003
        %v1825 = vmul.f32 %v1817, %v1003
        %v1826 = vmul.f32 %v1819, %v1003
        %v1827 = vmul.f32 %v1821, %v1003
        %v1828 = vadd.f32 %v1822, 1e-05
        %v1829 = vadd.f32 %v1823, 1e-05
        %v1830 = vadd.f32 %v1824, 1e-05
        %v1831 = vadd.f32 %v1825, 1e-05
        %v1832 = vadd.f32 %v1826, 1e-05
        %v1833 = vadd.f32 %v1827, 1e-05
        %v1834 = vrsqrt.pop %v1828
        %v1835 = vmul.f32 %v1834, %v1828
        %v1836 = vmul.f32 %v1835, %v1834
        %v1837 = vmul.f32 0.5, %v1836
        %v1838 = vsub.f32 1.5, %v1837
        %v1839 = vmul.f32 %v1834, %v1838
        %vm1840 = vweird.f32 %v1828
        %vm1841 = vweird.f32 %v1834
        %vm1842 = vmor %vm1840, %vm1841
        %v1843 = vsel %vm1842, %v1834, %v1839
        %v1844 = vrsqrt.pop %v1829
        %v1845 = vmul.f32 %v1844, %v1829
        %v1846 = vmul.f32 %v1845, %v1844
        %v1847 = vmul.f32 0.5, %v1846
        %v1848 = vsub.f32 1.5, %v1847
        %v1849 = vmul.f32 %v1844, %v1848
        %vm1850 = vweird.f32 %v1829
        %vm1851 = vweird.f32 %v1844
        %vm1852 = vmor %vm1850, %vm1851
        %v1853 = vsel %vm1852, %v1844, %v1849
        %v1854 = vrsqrt.pop %v1830
        %v1855 = vmul.f32 %v1854, %v1830
        %v1856 = vmul.f32 %v1855, %v1854
        %v1857 = vmul.f32 0.5, %v1856
        %v1858 = vsub.f32 1.5, %v1857
        %v1859 = vmul.f32 %v1854, %v1858
        %vm1860 = vweird.f32 %v1830
        %vm1861 = vweird.f32 %v1854
        %vm1862 = vmor %vm1860, %vm1861
        %v1863 = vsel %vm1862, %v1854, %v1859
        %v1864 = vrsqrt.pop %v1831
        %v1865 = vmul.f32 %v1864, %v1831
        %v1866 = vmul.f32 %v1865, %v1864
        %v1867 = vmul.f32 0.5, %v1866
        %v1868 = vsub.f32 1.5, %v1867
        %v1869 = vmul.f32 %v1864, %v1868
        %vm1870 = vweird.f32 %v1831
        %vm1871 = vweird.f32 %v1864
        %vm1872 = vmor %vm1870, %vm1871
        %v1873 = vsel %vm1872, %v1864, %v1869
        %v1874 = vrsqrt.pop %v1832
        %v1875 = vmul.f32 %v1874, %v1832
        %v1876 = vmul.f32 %v1875, %v1874
        %v1877 = vmul.f32 0.5, %v1876
        %v1878 = vsub.f32 1.5, %v1877
        %v1879 = vmul.f32 %v1874, %v1878
        %vm1880 = vweird.f32 %v1832
        %vm1881 = vweird.f32 %v1874
        %vm1882 = vmor %vm1880, %vm1881
        %v1883 = vsel %vm1882, %v1874, %v1879
        %v1884 = vrsqrt.pop %v1833
        %v1885 = vmul.f32 %v1884, %v1833
        %v1886 = vmul.f32 %v1885, %v1884
        %v1887 = vmul.f32 0.5, %v1886
        %v1888 = vsub.f32 1.5, %v1887
        %v1889 = vmul.f32 %v1884, %v1888
        %vm1890 = vweird.f32 %v1833
        %vm1891 = vweird.f32 %v1884
        %vm1892 = vmor %vm1890, %vm1891
        %v1893 = vsel %vm1892, %v1884, %v1889
        %v1894 = vmul.f32 %v1798, %v1843
        %v1895 = vmul.f32 %v1799, %v1853
        %v1896 = vmul.f32 %v1800, %v1863
        %v1897 = vmul.f32 %v1801, %v1873
        %v1898 = vmul.f32 %v1802, %v1883
        %v1899 = vmul.f32 %v1803, %v1893
        %v1901 = vperm.slane %v1778, 0
        %v1903 = vmul.f32 %v1894, %v1901
        %v1904 = vmul.f32 %v1895, %v1901
        %v1905 = vmul.f32 %v1896, %v1901
        %v1906 = vmul.f32 %v1897, %v1901
        %v1907 = vmul.f32 %v1898, %v1901
        %v1908 = vmul.f32 %v1899, %v1901
        %v1910 = vperm.slane %v1779, 0
        %v1912 = vadd.f32 %v1903, %v1910
        %v1913 = vadd.f32 %v1904, %v1910
        %v1914 = vadd.f32 %v1905, %v1910
        %v1915 = vadd.f32 %v1906, %v1910
        %v1916 = vadd.f32 %v1907, %v1910
        %v1917 = vadd.f32 %v1908, %v1910
        %v1918 = vpack.c.bf16 %v1913, %v1912
        %v1919 = vpack.c.bf16 %v1915, %v1914
        %v1920 = vpack.c.bf16 %v1917, %v1916
        %v1921 = vld [vmem:[%s862] sm:$0xff]
        %v1922 = vld [vmem:[%s862 + $0x8] sm:$0xff]
        %v1923 = vld [vmem:[%s862 + $0x10] sm:$0xff]
        %v1924 = vld [vmem:[%s862 + $0x18] sm:$0xff]
        %v1925 = vld [vmem:[%s862 + $0x20] sm:$0xff]
        %v1926 = vld [vmem:[%s862 + $0x28] sm:$0xff]
        %v1927 = vld [vmem:[%s862 + $0x30] sm:$0xff]
        %v1928 = vld [vmem:[%s862 + $0x38] sm:$0xff]
        %v1929 = vld [vmem:[%s862 + $0x40] sm:$0xff]
        %v1930 = vld [vmem:[%s862 + $0x48] sm:$0xff]
        %v1931 = vld [vmem:[%s862 + $0x50] sm:$0xff]
        %v1932 = vld [vmem:[%s862 + $0x58] sm:$0xff]
        %v1933 = vld [vmem:[%s862 + $0x60] sm:$0xff]
        %v1934 = vld [vmem:[%s862 + $0x68] sm:$0xff]
        %v1935 = vld [vmem:[%s862 + $0x70] sm:$0xff]
        %v1936 = vld [vmem:[%s862 + $0x78] sm:$0xff]
        %v1937 = vld [vmem:[%s866] sm:$0x3]
        %v1939 = vperm.slane %v1937, 0
        %v1940 = vperm.slane %v1937, 1
        %v1959 = vunpack.c.l.b16 %v1921
        %v1960 = vunpack.c.h.b16 %v1921
        %v1961 = vunpack.c.l.b16 %v1922
        %v1962 = vunpack.c.h.b16 %v1922
        %v1963 = vunpack.c.l.b16 %v1923
        %v1964 = vunpack.c.h.b16 %v1923
        %v1965 = vunpack.c.l.b16 %v1924
        %v1966 = vunpack.c.h.b16 %v1924
        %v1967 = vunpack.c.l.b16 %v1925
        %v1968 = vunpack.c.h.b16 %v1925
        %v1969 = vunpack.c.l.b16 %v1926
        %v1970 = vunpack.c.h.b16 %v1926
        %v1971 = vunpack.c.l.b16 %v1927
        %v1972 = vunpack.c.h.b16 %v1927
        %v1973 = vunpack.c.l.b16 %v1928
        %v1974 = vunpack.c.h.b16 %v1928
        %v1975 = vunpack.c.l.b16 %v1929
        %v1976 = vunpack.c.h.b16 %v1929
        %v1977 = vunpack.c.l.b16 %v1930
        %v1978 = vunpack.c.h.b16 %v1930
        %v1979 = vunpack.c.l.b16 %v1931
        %v1980 = vunpack.c.h.b16 %v1931
        %v1981 = vunpack.c.l.b16 %v1932
        %v1982 = vunpack.c.h.b16 %v1932
        %v1983 = vunpack.c.l.b16 %v1933
        %v1984 = vunpack.c.h.b16 %v1933
        %v1985 = vunpack.c.l.b16 %v1934
        %v1986 = vunpack.c.h.b16 %v1934
        %v1987 = vunpack.c.l.b16 %v1935
        %v1988 = vunpack.c.h.b16 %v1935
        %v1989 = vunpack.c.l.b16 %v1936
        %v1990 = vunpack.c.h.b16 %v1936
        %v1991 = vpack.c.b16 %v1961, %v1959
        %v1992 = vpack.c.b16 %v1962, %v1960
        %v1993 = vpack.c.b16 %v1965, %v1963
        %v1994 = vpack.c.b16 %v1966, %v1964
        %v1995 = vpack.c.b16 %v1969, %v1967
        %v1996 = vpack.c.b16 %v1970, %v1968
        %v1997 = vpack.c.b16 %v1973, %v1971
        %v1998 = vpack.c.b16 %v1974, %v1972
        %v1999 = vpack.c.b16 %v1977, %v1975
        %v2000 = vpack.c.b16 %v1978, %v1976
        %v2001 = vpack.c.b16 %v1981, %v1979
        %v2002 = vpack.c.b16 %v1982, %v1980
        %v2003 = vpack.c.b16 %v1985, %v1983
        %v2004 = vpack.c.b16 %v1986, %v1984
        %v2005 = vpack.c.b16 %v1989, %v1987
        %v2006 = vpack.c.b16 %v1990, %v1988
        %2023 = vmatpush.bf16.msra.mxu0 %v2005
        %2024 = vmatpush.bf16.msra.mxu0 %v2003
        %2025 = vmatpush.bf16.msra.mxu0 %v2001
        %2026 = vmatpush.bf16.msra.mxu0 %v1999
        %2027 = vmatpush.bf16.msra.mxu0 %v1997
        %2028 = vmatpush.bf16.msra.mxu0 %v1995
        %2029 = vmatpush.bf16.msra.mxu0 %v1993
        %2030 = vmatpush.bf16.msra.mxu0 %v1991
        %2031 = vmatmul.bf16.gmra.mxu0 %v1918
        %v2032 = vpop.f32.mrf.mxu0
        %v2033 = vadd.f32 %v1939, %v2032
        %v2034 = vpop.f32.mrf.mxu0
        %v2035 = vadd.f32 %v1939, %v2034
        %2036 = vmatmul.bf16.gmra.mxu0 %v1919
        %v2037 = vpop.f32.mrf.mxu0
        %v2038 = vadd.f32 %v1939, %v2037
        %v2039 = vpop.f32.mrf.mxu0
        %v2040 = vadd.f32 %v1939, %v2039
        %2041 = vmatmul.bf16.gmra.mxu0 %v1920
        %v2042 = vpop.f32.mrf.mxu0
        %v2043 = vadd.f32 %v1939, %v2042
        %v2044 = vpop.f32.mrf.mxu0
        %v2045 = vadd.f32 %v1939, %v2044
        %2046 = vdwg.mxu0
        %2047 = vmatpush.bf16.msra.mxu0 %v2006
        %2048 = vmatpush.bf16.msra.mxu0 %v2004
        %2049 = vmatpush.bf16.msra.mxu0 %v2002
        %2050 = vmatpush.bf16.msra.mxu0 %v2000
        %2051 = vmatpush.bf16.msra.mxu0 %v1998
        %2052 = vmatpush.bf16.msra.mxu0 %v1996
        %2053 = vmatpush.bf16.msra.mxu0 %v1994
        %2054 = vmatpush.bf16.msra.mxu0 %v1992
        %2055 = vmatmul.bf16.gmra.mxu0 %v1918
        %v2056 = vpop.f32.mrf.mxu0
        %v2057 = vadd.f32 %v1940, %v2056
        %v2058 = vpop.f32.mrf.mxu0
        %v2059 = vadd.f32 %v1940, %v2058
        %2060 = vmatmul.bf16.gmra.mxu0 %v1919
        %v2061 = vpop.f32.mrf.mxu0
        %v2062 = vadd.f32 %v1940, %v2061
        %v2063 = vpop.f32.mrf.mxu0
        %v2064 = vadd.f32 %v1940, %v2063
        %2065 = vmatmul.bf16.gmra.mxu0 %v1920
        %v2066 = vpop.f32.mrf.mxu0
        %v2067 = vadd.f32 %v1940, %v2066
        %v2068 = vpop.f32.mrf.mxu0
        %v2069 = vadd.f32 %v1940, %v2068
        %2070 = vdwg.mxu0
        %v2071 = vmul.f32 %v2033, 0.5
        %v2072 = vmul.f32 %v2057, 0.5
        %v2073 = vmul.f32 %v2035, 0.5
        %v2074 = vmul.f32 %v2059, 0.5
        %v2075 = vmul.f32 %v2038, 0.5
        %v2076 = vmul.f32 %v2062, 0.5
        %v2077 = vmul.f32 %v2040, 0.5
        %v2078 = vmul.f32 %v2064, 0.5
        %v2079 = vmul.f32 %v2043, 0.5
        %v2080 = vmul.f32 %v2067, 0.5
        %v2081 = vmul.f32 %v2045, 0.5
        %v2082 = vmul.f32 %v2069, 0.5
        %v2083 = vmul.f32 %v2033, 0.70710677
        %v2084 = vmul.f32 %v2057, 0.70710677
        %v2085 = vmul.f32 %v2035, 0.70710677
        %v2086 = vmul.f32 %v2059, 0.70710677
        %v2087 = vmul.f32 %v2038, 0.70710677
        %v2088 = vmul.f32 %v2062, 0.70710677
        %v2089 = vmul.f32 %v2040, 0.70710677
        %v2090 = vmul.f32 %v2064, 0.70710677
        %v2091 = vmul.f32 %v2043, 0.70710677
        %v2092 = vmul.f32 %v2067, 0.70710677
        %v2093 = vmul.f32 %v2045, 0.70710677
        %v2094 = vmul.f32 %v2069, 0.70710677
        %v2095 = vmul.f32 %v2083, %v2083
        %v2096 = vmin.f32 16.0, %v2095
        %v2097 = vmul.f32 %v2096, 2.1237322e-06
        %v2098 = vadd.f32 %v2097, 0.00028619796
        %v2099 = vmul.f32 %v2096, %v2098
        %v2100 = vadd.f32 %v2099, 0.0036580483
        %v2101 = vmul.f32 %v2096, %v2100
        %v2102 = vadd.f32 %v2101, 0.05243302
        %v2103 = vmul.f32 %v2096, %v2102
        %v2104 = vadd.f32 %v2103, 0.18741608
        %v2105 = vmul.f32 %v2096, %v2104
        %v2106 = vadd.f32 %v2105, 1.1283791
        %v2107 = vmul.f32 %v2083, %v2106
        %v2108 = vmul.f32 %v2096, 3.8918573e-05
        %v2109 = vadd.f32 %v2108, 0.001143296
        %v2110 = vmul.f32 %v2096, %v2109
        %v2111 = vadd.f32 %v2110, 0.014752088
        %v2112 = vmul.f32 %v2096, %v2111
        %v2113 = vadd.f32 %v2112, 0.112945676
        %v2114 = vmul.f32 %v2096, %v2113
        %v2115 = vadd.f32 %v2114, 0.4994258
        %v2116 = vmul.f32 %v2096, %v2115
        %v2117 = vadd.f32 %v2116, 1.0
        %v2118 = vrcp.pop %v2117
        %v2119 = vmul.f32 %v2117, %v2118
        %v2120 = vsub.f32 1.0, %v2119
        %v2121 = vmul.f32 %v2118, %v2120
        %v2122 = vadd.f32 %v2118, %v2121
        %vm2123 = vweird.f32 %v2117
        %vm2124 = vweird.f32 %v2118
        %vm2125 = vmor %vm2123, %vm2124
        %v2126 = vsel %vm2125, %v2118, %v2122
        %v2127 = vand.u32 2147483647, %v2117
        %vm2128 = vcmp.eq.f32.partialorder %v2127, 8.507059e+37
        %v2129 = vand.u32 %v2117, 2147483648
        %v2130 = vor.u32 1.1754944e-38, %v2129
        %v2131 = vsel %vm2128, %v2130, %v2126
        %v2132 = vmul.f32 %v2107, %v2131
        %v2133 = vmin.f32 %v2132, 1.0
        %v2134 = vmax.f32 %v2133, -1.0
        %v2135 = vmul.f32 %v2084, %v2084
        %v2136 = vmin.f32 16.0, %v2135
        %v2137 = vmul.f32 %v2136, 2.1237322e-06
        %v2138 = vadd.f32 %v2137, 0.00028619796
        %v2139 = vmul.f32 %v2136, %v2138
        %v2140 = vadd.f32 %v2139, 0.0036580483
        %v2141 = vmul.f32 %v2136, %v2140
        %v2142 = vadd.f32 %v2141, 0.05243302
        %v2143 = vmul.f32 %v2136, %v2142
        %v2144 = vadd.f32 %v2143, 0.18741608
        %v2145 = vmul.f32 %v2136, %v2144
        %v2146 = vadd.f32 %v2145, 1.1283791
        %v2147 = vmul.f32 %v2084, %v2146
        %v2148 = vmul.f32 %v2136, 3.8918573e-05
        %v2149 = vadd.f32 %v2148, 0.001143296
        %v2150 = vmul.f32 %v2136, %v2149
        %v2151 = vadd.f32 %v2150, 0.014752088
        %v2152 = vmul.f32 %v2136, %v2151
        %v2153 = vadd.f32 %v2152, 0.112945676
        %v2154 = vmul.f32 %v2136, %v2153
        %v2155 = vadd.f32 %v2154, 0.4994258
        %v2156 = vmul.f32 %v2136, %v2155
        %v2157 = vadd.f32 %v2156, 1.0
        %v2158 = vrcp.pop %v2157
        %v2159 = vmul.f32 %v2157, %v2158
        %v2160 = vsub.f32 1.0, %v2159
        %v2161 = vmul.f32 %v2158, %v2160
        %v2162 = vadd.f32 %v2158, %v2161
        %vm2163 = vweird.f32 %v2157
        %vm2164 = vweird.f32 %v2158
        %vm2165 = vmor %vm2163, %vm2164
        %v2166 = vsel %vm2165, %v2158, %v2162
        %v2167 = vand.u32 2147483647, %v2157
        %vm2168 = vcmp.eq.f32.partialorder %v2167, 8.507059e+37
        %v2169 = vand.u32 %v2157, 2147483648
        %v2170 = vor.u32 1.1754944e-38, %v2169
        %v2171 = vsel %vm2168, %v2170, %v2166
        %v2172 = vmul.f32 %v2147, %v2171
        %v2173 = vmin.f32 %v2172, 1.0
        %v2174 = vmax.f32 %v2173, -1.0
        %v2175 = vmul.f32 %v2085, %v2085
        %v2176 = vmin.f32 16.0, %v2175
        %v2177 = vmul.f32 %v2176, 2.1237322e-06
        %v2178 = vadd.f32 %v2177, 0.00028619796
        %v2179 = vmul.f32 %v2176, %v2178
        %v2180 = vadd.f32 %v2179, 0.0036580483
        %v2181 = vmul.f32 %v2176, %v2180
        %v2182 = vadd.f32 %v2181, 0.05243302
        %v2183 = vmul.f32 %v2176, %v2182
        %v2184 = vadd.f32 %v2183, 0.18741608
        %v2185 = vmul.f32 %v2176, %v2184
        %v2186 = vadd.f32 %v2185, 1.1283791
        %v2187 = vmul.f32 %v2085, %v2186
        %v2188 = vmul.f32 %v2176, 3.8918573e-05
        %v2189 = vadd.f32 %v2188, 0.001143296
        %v2190 = vmul.f32 %v2176, %v2189
        %v2191 = vadd.f32 %v2190, 0.014752088
        %v2192 = vmul.f32 %v2176, %v2191
        %v2193 = vadd.f32 %v2192, 0.112945676
        %v2194 = vmul.f32 %v2176, %v2193
        %v2195 = vadd.f32 %v2194, 0.4994258
        %v2196 = vmul.f32 %v2176, %v2195
        %v2197 = vadd.f32 %v2196, 1.0
        %v2198 = vrcp.pop %v2197
        %v2199 = vmul.f32 %v2197, %v2198
        %v2200 = vsub.f32 1.0, %v2199
        %v2201 = vmul.f32 %v2198, %v2200
        %v2202 = vadd.f32 %v2198, %v2201
        %vm2203 = vweird.f32 %v2197
        %vm2204 = vweird.f32 %v2198
        %vm2205 = vmor %vm2203, %vm2204
        %v2206 = vsel %vm2205, %v2198, %v2202
        %v2207 = vand.u32 2147483647, %v2197
        %vm2208 = vcmp.eq.f32.partialorder %v2207, 8.507059e+37
        %v2209 = vand.u32 %v2197, 2147483648
        %v2210 = vor.u32 1.1754944e-38, %v2209
        %v2211 = vsel %vm2208, %v2210, %v2206
        %v2212 = vmul.f32 %v2187, %v2211
        %v2213 = vmin.f32 %v2212, 1.0
        %v2214 = vmax.f32 %v2213, -1.0
        %v2215 = vmul.f32 %v2086, %v2086
        %v2216 = vmin.f32 16.0, %v2215
        %v2217 = vmul.f32 %v2216, 2.1237322e-06
        %v2218 = vadd.f32 %v2217, 0.00028619796
        %v2219 = vmul.f32 %v2216, %v2218
        %v2220 = vadd.f32 %v2219, 0.0036580483
        %v2221 = vmul.f32 %v2216, %v2220
        %v2222 = vadd.f32 %v2221, 0.05243302
        %v2223 = vmul.f32 %v2216, %v2222
        %v2224 = vadd.f32 %v2223, 0.18741608
        %v2225 = vmul.f32 %v2216, %v2224
        %v2226 = vadd.f32 %v2225, 1.1283791
        %v2227 = vmul.f32 %v2086, %v2226
        %v2228 = vmul.f32 %v2216, 3.8918573e-05
        %v2229 = vadd.f32 %v2228, 0.001143296
        %v2230 = vmul.f32 %v2216, %v2229
        %v2231 = vadd.f32 %v2230, 0.014752088
        %v2232 = vmul.f32 %v2216, %v2231
        %v2233 = vadd.f32 %v2232, 0.112945676
        %v2234 = vmul.f32 %v2216, %v2233
        %v2235 = vadd.f32 %v2234, 0.4994258
        %v2236 = vmul.f32 %v2216, %v2235
        %v2237 = vadd.f32 %v2236, 1.0
        %v2238 = vrcp.pop %v2237
        %v2239 = vmul.f32 %v2237, %v2238
        %v2240 = vsub.f32 1.0, %v2239
        %v2241 = vmul.f32 %v2238, %v2240
        %v2242 = vadd.f32 %v2238, %v2241
        %vm2243 = vweird.f32 %v2237
        %vm2244 = vweird.f32 %v2238
        %vm2245 = vmor %vm2243, %vm2244
        %v2246 = vsel %vm2245, %v2238, %v2242
        %v2247 = vand.u32 2147483647, %v2237
        %vm2248 = vcmp.eq.f32.partialorder %v2247, 8.507059e+37
        %v2249 = vand.u32 %v2237, 2147483648
        %v2250 = vor.u32 1.1754944e-38, %v2249
        %v2251 = vsel %vm2248, %v2250, %v2246
        %v2252 = vmul.f32 %v2227, %v2251
        %v2253 = vmin.f32 %v2252, 1.0
        %v2254 = vmax.f32 %v2253, -1.0
        %v2255 = vmul.f32 %v2087, %v2087
        %v2256 = vmin.f32 16.0, %v2255
        %v2257 = vmul.f32 %v2256, 2.1237322e-06
        %v2258 = vadd.f32 %v2257, 0.00028619796
        %v2259 = vmul.f32 %v2256, %v2258
        %v2260 = vadd.f32 %v2259, 0.0036580483
        %v2261 = vmul.f32 %v2256, %v2260
        %v2262 = vadd.f32 %v2261, 0.05243302
        %v2263 = vmul.f32 %v2256, %v2262
        %v2264 = vadd.f32 %v2263, 0.18741608
        %v2265 = vmul.f32 %v2256, %v2264
        %v2266 = vadd.f32 %v2265, 1.1283791
        %v2267 = vmul.f32 %v2087, %v2266
        %v2268 = vmul.f32 %v2256, 3.8918573e-05
        %v2269 = vadd.f32 %v2268, 0.001143296
        %v2270 = vmul.f32 %v2256, %v2269
        %v2271 = vadd.f32 %v2270, 0.014752088
        %v2272 = vmul.f32 %v2256, %v2271
        %v2273 = vadd.f32 %v2272, 0.112945676
        %v2274 = vmul.f32 %v2256, %v2273
        %v2275 = vadd.f32 %v2274, 0.4994258
        %v2276 = vmul.f32 %v2256, %v2275
        %v2277 = vadd.f32 %v2276, 1.0
        %v2278 = vrcp.pop %v2277
        %v2279 = vmul.f32 %v2277, %v2278
        %v2280 = vsub.f32 1.0, %v2279
        %v2281 = vmul.f32 %v2278, %v2280
        %v2282 = vadd.f32 %v2278, %v2281
        %vm2283 = vweird.f32 %v2277
        %vm2284 = vweird.f32 %v2278
        %vm2285 = vmor %vm2283, %vm2284
        %v2286 = vsel %vm2285, %v2278, %v2282
        %v2287 = vand.u32 2147483647, %v2277
        %vm2288 = vcmp.eq.f32.partialorder %v2287, 8.507059e+37
        %v2289 = vand.u32 %v2277, 2147483648
        %v2290 = vor.u32 1.1754944e-38, %v2289
        %v2291 = vsel %vm2288, %v2290, %v2286
        %v2292 = vmul.f32 %v2267, %v2291
        %v2293 = vmin.f32 %v2292, 1.0
        %v2294 = vmax.f32 %v2293, -1.0
        %v2295 = vmul.f32 %v2088, %v2088
        %v2296 = vmin.f32 16.0, %v2295
        %v2297 = vmul.f32 %v2296, 2.1237322e-06
        %v2298 = vadd.f32 %v2297, 0.00028619796
        %v2299 = vmul.f32 %v2296, %v2298
        %v2300 = vadd.f32 %v2299, 0.0036580483
        %v2301 = vmul.f32 %v2296, %v2300
        %v2302 = vadd.f32 %v2301, 0.05243302
        %v2303 = vmul.f32 %v2296, %v2302
        %v2304 = vadd.f32 %v2303, 0.18741608
        %v2305 = vmul.f32 %v2296, %v2304
        %v2306 = vadd.f32 %v2305, 1.1283791
        %v2307 = vmul.f32 %v2088, %v2306
        %v2308 = vmul.f32 %v2296, 3.8918573e-05
        %v2309 = vadd.f32 %v2308, 0.001143296
        %v2310 = vmul.f32 %v2296, %v2309
        %v2311 = vadd.f32 %v2310, 0.014752088
        %v2312 = vmul.f32 %v2296, %v2311
        %v2313 = vadd.f32 %v2312, 0.112945676
        %v2314 = vmul.f32 %v2296, %v2313
        %v2315 = vadd.f32 %v2314, 0.4994258
        %v2316 = vmul.f32 %v2296, %v2315
        %v2317 = vadd.f32 %v2316, 1.0
        %v2318 = vrcp.pop %v2317
        %v2319 = vmul.f32 %v2317, %v2318
        %v2320 = vsub.f32 1.0, %v2319
        %v2321 = vmul.f32 %v2318, %v2320
        %v2322 = vadd.f32 %v2318, %v2321
        %vm2323 = vweird.f32 %v2317
        %vm2324 = vweird.f32 %v2318
        %vm2325 = vmor %vm2323, %vm2324
        %v2326 = vsel %vm2325, %v2318, %v2322
        %v2327 = vand.u32 2147483647, %v2317
        %vm2328 = vcmp.eq.f32.partialorder %v2327, 8.507059e+37
        %v2329 = vand.u32 %v2317, 2147483648
        %v2330 = vor.u32 1.1754944e-38, %v2329
        %v2331 = vsel %vm2328, %v2330, %v2326
        %v2332 = vmul.f32 %v2307, %v2331
        %v2333 = vmin.f32 %v2332, 1.0
        %v2334 = vmax.f32 %v2333, -1.0
        %v2335 = vmul.f32 %v2089, %v2089
        %v2336 = vmin.f32 16.0, %v2335
        %v2337 = vmul.f32 %v2336, 2.1237322e-06
        %v2338 = vadd.f32 %v2337, 0.00028619796
        %v2339 = vmul.f32 %v2336, %v2338
        %v2340 = vadd.f32 %v2339, 0.0036580483
        %v2341 = vmul.f32 %v2336, %v2340
        %v2342 = vadd.f32 %v2341, 0.05243302
        %v2343 = vmul.f32 %v2336, %v2342
        %v2344 = vadd.f32 %v2343, 0.18741608
        %v2345 = vmul.f32 %v2336, %v2344
        %v2346 = vadd.f32 %v2345, 1.1283791
        %v2347 = vmul.f32 %v2089, %v2346
        %v2348 = vmul.f32 %v2336, 3.8918573e-05
        %v2349 = vadd.f32 %v2348, 0.001143296
        %v2350 = vmul.f32 %v2336, %v2349
        %v2351 = vadd.f32 %v2350, 0.014752088
        %v2352 = vmul.f32 %v2336, %v2351
        %v2353 = vadd.f32 %v2352, 0.112945676
        %v2354 = vmul.f32 %v2336, %v2353
        %v2355 = vadd.f32 %v2354, 0.4994258
        %v2356 = vmul.f32 %v2336, %v2355
        %v2357 = vadd.f32 %v2356, 1.0
        %v2358 = vrcp.pop %v2357
        %v2359 = vmul.f32 %v2357, %v2358
        %v2360 = vsub.f32 1.0, %v2359
        %v2361 = vmul.f32 %v2358, %v2360
        %v2362 = vadd.f32 %v2358, %v2361
        %vm2363 = vweird.f32 %v2357
        %vm2364 = vweird.f32 %v2358
        %vm2365 = vmor %vm2363, %vm2364
        %v2366 = vsel %vm2365, %v2358, %v2362
        %v2367 = vand.u32 2147483647, %v2357
        %vm2368 = vcmp.eq.f32.partialorder %v2367, 8.507059e+37
        %v2369 = vand.u32 %v2357, 2147483648
        %v2370 = vor.u32 1.1754944e-38, %v2369
        %v2371 = vsel %vm2368, %v2370, %v2366
        %v2372 = vmul.f32 %v2347, %v2371
        %v2373 = vmin.f32 %v2372, 1.0
        %v2374 = vmax.f32 %v2373, -1.0
        %v2375 = vmul.f32 %v2090, %v2090
        %v2376 = vmin.f32 16.0, %v2375
        %v2377 = vmul.f32 %v2376, 2.1237322e-06
        %v2378 = vadd.f32 %v2377, 0.00028619796
        %v2379 = vmul.f32 %v2376, %v2378
        %v2380 = vadd.f32 %v2379, 0.0036580483
        %v2381 = vmul.f32 %v2376, %v2380
        %v2382 = vadd.f32 %v2381, 0.05243302
        %v2383 = vmul.f32 %v2376, %v2382
        %v2384 = vadd.f32 %v2383, 0.18741608
        %v2385 = vmul.f32 %v2376, %v2384
        %v2386 = vadd.f32 %v2385, 1.1283791
        %v2387 = vmul.f32 %v2090, %v2386
        %v2388 = vmul.f32 %v2376, 3.8918573e-05
        %v2389 = vadd.f32 %v2388, 0.001143296
        %v2390 = vmul.f32 %v2376, %v2389
        %v2391 = vadd.f32 %v2390, 0.014752088
        %v2392 = vmul.f32 %v2376, %v2391
        %v2393 = vadd.f32 %v2392, 0.112945676
        %v2394 = vmul.f32 %v2376, %v2393
        %v2395 = vadd.f32 %v2394, 0.4994258
        %v2396 = vmul.f32 %v2376, %v2395
        %v2397 = vadd.f32 %v2396, 1.0
        %v2398 = vrcp.pop %v2397
        %v2399 = vmul.f32 %v2397, %v2398
        %v2400 = vsub.f32 1.0, %v2399
        %v2401 = vmul.f32 %v2398, %v2400
        %v2402 = vadd.f32 %v2398, %v2401
        %vm2403 = vweird.f32 %v2397
        %vm2404 = vweird.f32 %v2398
        %vm2405 = vmor %vm2403, %vm2404
        %v2406 = vsel %vm2405, %v2398, %v2402
        %v2407 = vand.u32 2147483647, %v2397
        %vm2408 = vcmp.eq.f32.partialorder %v2407, 8.507059e+37
        %v2409 = vand.u32 %v2397, 2147483648
        %v2410 = vor.u32 1.1754944e-38, %v2409
        %v2411 = vsel %vm2408, %v2410, %v2406
        %v2412 = vmul.f32 %v2387, %v2411
        %v2413 = vmin.f32 %v2412, 1.0
        %v2414 = vmax.f32 %v2413, -1.0
        %v2415 = vmul.f32 %v2091, %v2091
        %v2416 = vmin.f32 16.0, %v2415
        %v2417 = vmul.f32 %v2416, 2.1237322e-06
        %v2418 = vadd.f32 %v2417, 0.00028619796
        %v2419 = vmul.f32 %v2416, %v2418
        %v2420 = vadd.f32 %v2419, 0.0036580483
        %v2421 = vmul.f32 %v2416, %v2420
        %v2422 = vadd.f32 %v2421, 0.05243302
        %v2423 = vmul.f32 %v2416, %v2422
        %v2424 = vadd.f32 %v2423, 0.18741608
        %v2425 = vmul.f32 %v2416, %v2424
        %v2426 = vadd.f32 %v2425, 1.1283791
        %v2427 = vmul.f32 %v2091, %v2426
        %v2428 = vmul.f32 %v2416, 3.8918573e-05
        %v2429 = vadd.f32 %v2428, 0.001143296
        %v2430 = vmul.f32 %v2416, %v2429
        %v2431 = vadd.f32 %v2430, 0.014752088
        %v2432 = vmul.f32 %v2416, %v2431
        %v2433 = vadd.f32 %v2432, 0.112945676
        %v2434 = vmul.f32 %v2416, %v2433
        %v2435 = vadd.f32 %v2434, 0.4994258
        %v2436 = vmul.f32 %v2416, %v2435
        %v2437 = vadd.f32 %v2436, 1.0
        %v2438 = vrcp.pop %v2437
        %v2439 = vmul.f32 %v2437, %v2438
        %v2440 = vsub.f32 1.0, %v2439
        %v2441 = vmul.f32 %v2438, %v2440
        %v2442 = vadd.f32 %v2438, %v2441
        %vm2443 = vweird.f32 %v2437
        %vm2444 = vweird.f32 %v2438
        %vm2445 = vmor %vm2443, %vm2444
        %v2446 = vsel %vm2445, %v2438, %v2442
        %v2447 = vand.u32 2147483647, %v2437
        %vm2448 = vcmp.eq.f32.partialorder %v2447, 8.507059e+37
        %v2449 = vand.u32 %v2437, 2147483648
        %v2450 = vor.u32 1.1754944e-38, %v2449
        %v2451 = vsel %vm2448, %v2450, %v2446
        %v2452 = vmul.f32 %v2427, %v2451
        %v2453 = vmin.f32 %v2452, 1.0
        %v2454 = vmax.f32 %v2453, -1.0
        %v2455 = vmul.f32 %v2092, %v2092
        %v2456 = vmin.f32 16.0, %v2455
        %v2457 = vmul.f32 %v2456, 2.1237322e-06
        %v2458 = vadd.f32 %v2457, 0.00028619796
        %v2459 = vmul.f32 %v2456, %v2458
        %v2460 = vadd.f32 %v2459, 0.0036580483
        %v2461 = vmul.f32 %v2456, %v2460
        %v2462 = vadd.f32 %v2461, 0.05243302
        %v2463 = vmul.f32 %v2456, %v2462
        %v2464 = vadd.f32 %v2463, 0.18741608
        %v2465 = vmul.f32 %v2456, %v2464
        %v2466 = vadd.f32 %v2465, 1.1283791
        %v2467 = vmul.f32 %v2092, %v2466
        %v2468 = vmul.f32 %v2456, 3.8918573e-05
        %v2469 = vadd.f32 %v2468, 0.001143296
        %v2470 = vmul.f32 %v2456, %v2469
        %v2471 = vadd.f32 %v2470, 0.014752088
        %v2472 = vmul.f32 %v2456, %v2471
        %v2473 = vadd.f32 %v2472, 0.112945676
        %v2474 = vmul.f32 %v2456, %v2473
        %v2475 = vadd.f32 %v2474, 0.4994258
        %v2476 = vmul.f32 %v2456, %v2475
        %v2477 = vadd.f32 %v2476, 1.0
        %v2478 = vrcp.pop %v2477
        %v2479 = vmul.f32 %v2477, %v2478
        %v2480 = vsub.f32 1.0, %v2479
        %v2481 = vmul.f32 %v2478, %v2480
        %v2482 = vadd.f32 %v2478, %v2481
        %vm2483 = vweird.f32 %v2477
        %vm2484 = vweird.f32 %v2478
        %vm2485 = vmor %vm2483, %vm2484
        %v2486 = vsel %vm2485, %v2478, %v2482
        %v2487 = vand.u32 2147483647, %v2477
        %vm2488 = vcmp.eq.f32.partialorder %v2487, 8.507059e+37
        %v2489 = vand.u32 %v2477, 2147483648
        %v2490 = vor.u32 1.1754944e-38, %v2489
        %v2491 = vsel %vm2488, %v2490, %v2486
        %v2492 = vmul.f32 %v2467, %v2491
        %v2493 = vmin.f32 %v2492, 1.0
        %v2494 = vmax.f32 %v2493, -1.0
        %v2495 = vmul.f32 %v2093, %v2093
        %v2496 = vmin.f32 16.0, %v2495
        %v2497 = vmul.f32 %v2496, 2.1237322e-06
        %v2498 = vadd.f32 %v2497, 0.00028619796
        %v2499 = vmul.f32 %v2496, %v2498
        %v2500 = vadd.f32 %v2499, 0.0036580483
        %v2501 = vmul.f32 %v2496, %v2500
        %v2502 = vadd.f32 %v2501, 0.05243302
        %v2503 = vmul.f32 %v2496, %v2502
        %v2504 = vadd.f32 %v2503, 0.18741608
        %v2505 = vmul.f32 %v2496, %v2504
        %v2506 = vadd.f32 %v2505, 1.1283791
        %v2507 = vmul.f32 %v2093, %v2506
        %v2508 = vmul.f32 %v2496, 3.8918573e-05
        %v2509 = vadd.f32 %v2508, 0.001143296
        %v2510 = vmul.f32 %v2496, %v2509
        %v2511 = vadd.f32 %v2510, 0.014752088
        %v2512 = vmul.f32 %v2496, %v2511
        %v2513 = vadd.f32 %v2512, 0.112945676
        %v2514 = vmul.f32 %v2496, %v2513
        %v2515 = vadd.f32 %v2514, 0.4994258
        %v2516 = vmul.f32 %v2496, %v2515
        %v2517 = vadd.f32 %v2516, 1.0
        %v2518 = vrcp.pop %v2517
        %v2519 = vmul.f32 %v2517, %v2518
        %v2520 = vsub.f32 1.0, %v2519
        %v2521 = vmul.f32 %v2518, %v2520
        %v2522 = vadd.f32 %v2518, %v2521
        %vm2523 = vweird.f32 %v2517
        %vm2524 = vweird.f32 %v2518
        %vm2525 = vmor %vm2523, %vm2524
        %v2526 = vsel %vm2525, %v2518, %v2522
        %v2527 = vand.u32 2147483647, %v2517
        %vm2528 = vcmp.eq.f32.partialorder %v2527, 8.507059e+37
        %v2529 = vand.u32 %v2517, 2147483648
        %v2530 = vor.u32 1.1754944e-38, %v2529
        %v2531 = vsel %vm2528, %v2530, %v2526
        %v2532 = vmul.f32 %v2507, %v2531
        %v2533 = vmin.f32 %v2532, 1.0
        %v2534 = vmax.f32 %v2533, -1.0
        %v2535 = vmul.f32 %v2094, %v2094
        %v2536 = vmin.f32 16.0, %v2535
        %v2537 = vmul.f32 %v2536, 2.1237322e-06
        %v2538 = vadd.f32 %v2537, 0.00028619796
        %v2539 = vmul.f32 %v2536, %v2538
        %v2540 = vadd.f32 %v2539, 0.0036580483
        %v2541 = vmul.f32 %v2536, %v2540
        %v2542 = vadd.f32 %v2541, 0.05243302
        %v2543 = vmul.f32 %v2536, %v2542
        %v2544 = vadd.f32 %v2543, 0.18741608
        %v2545 = vmul.f32 %v2536, %v2544
        %v2546 = vadd.f32 %v2545, 1.1283791
        %v2547 = vmul.f32 %v2094, %v2546
        %v2548 = vmul.f32 %v2536, 3.8918573e-05
        %v2549 = vadd.f32 %v2548, 0.001143296
        %v2550 = vmul.f32 %v2536, %v2549
        %v2551 = vadd.f32 %v2550, 0.014752088
        %v2552 = vmul.f32 %v2536, %v2551
        %v2553 = vadd.f32 %v2552, 0.112945676
        %v2554 = vmul.f32 %v2536, %v2553
        %v2555 = vadd.f32 %v2554, 0.4994258
        %v2556 = vmul.f32 %v2536, %v2555
        %v2557 = vadd.f32 %v2556, 1.0
        %v2558 = vrcp.pop %v2557
        %v2559 = vmul.f32 %v2557, %v2558
        %v2560 = vsub.f32 1.0, %v2559
        %v2561 = vmul.f32 %v2558, %v2560
        %v2562 = vadd.f32 %v2558, %v2561
        %vm2563 = vweird.f32 %v2557
        %vm2564 = vweird.f32 %v2558
        %vm2565 = vmor %vm2563, %vm2564
        %v2566 = vsel %vm2565, %v2558, %v2562
        %v2567 = vand.u32 2147483647, %v2557
        %vm2568 = vcmp.eq.f32.partialorder %v2567, 8.507059e+37
        %v2569 = vand.u32 %v2557, 2147483648
        %v2570 = vor.u32 1.1754944e-38, %v2569
        %v2571 = vsel %vm2568, %v2570, %v2566
        %v2572 = vmul.f32 %v2547, %v2571
        %v2573 = vmin.f32 %v2572, 1.0
        %v2574 = vmax.f32 %v2573, -1.0
        %v2575 = vadd.f32 %v2134, 1.0
        %v2576 = vadd.f32 %v2174, 1.0
        %v2577 = vadd.f32 %v2214, 1.0
        %v2578 = vadd.f32 %v2254, 1.0
        %v2579 = vadd.f32 %v2294, 1.0
        %v2580 = vadd.f32 %v2334, 1.0
        %v2581 = vadd.f32 %v2374, 1.0
        %v2582 = vadd.f32 %v2414, 1.0
        %v2583 = vadd.f32 %v2454, 1.0
        %v2584 = vadd.f32 %v2494, 1.0
        %v2585 = vadd.f32 %v2534, 1.0
        %v2586 = vadd.f32 %v2574, 1.0
        %v2587 = vmul.f32 %v2071, %v2575
        %v2588 = vmul.f32 %v2072, %v2576
        %v2589 = vmul.f32 %v2073, %v2577
        %v2590 = vmul.f32 %v2074, %v2578
        %v2591 = vmul.f32 %v2075, %v2579
        %v2592 = vmul.f32 %v2076, %v2580
        %v2593 = vmul.f32 %v2077, %v2581
        %v2594 = vmul.f32 %v2078, %v2582
        %v2595 = vmul.f32 %v2079, %v2583
        %v2596 = vmul.f32 %v2080, %v2584
        %v2597 = vmul.f32 %v2081, %v2585
        %v2598 = vmul.f32 %v2082, %v2586
        %v2599 = vpack.c.bf16 %v2589, %v2587
        %v2600 = vpack.c.bf16 %v2590, %v2588
        %v2601 = vpack.c.bf16 %v2593, %v2591
        %v2602 = vpack.c.bf16 %v2594, %v2592
        %v2603 = vpack.c.bf16 %v2597, %v2595
        %v2604 = vpack.c.bf16 %v2598, %v2596
        %v2605 = vld [vmem:[%s871] sm:$0xf]
        %v2606 = vld [vmem:[%s871 + $0x4] sm:$0xf]
        %v2607 = vld [vmem:[%s871 + $0x8] sm:$0xf]
        %v2608 = vld [vmem:[%s871 + $0xc] sm:$0xf]
        %v2609 = vld [vmem:[%s871 + $0x10] sm:$0xf]
        %v2610 = vld [vmem:[%s871 + $0x14] sm:$0xf]
        %v2611 = vld [vmem:[%s871 + $0x18] sm:$0xf]
        %v2612 = vld [vmem:[%s871 + $0x1c] sm:$0xf]
        %v2613 = vld [vmem:[%s871 + $0x20] sm:$0xf]
        %v2614 = vld [vmem:[%s871 + $0x24] sm:$0xf]
        %v2615 = vld [vmem:[%s871 + $0x28] sm:$0xf]
        %v2616 = vld [vmem:[%s871 + $0x2c] sm:$0xf]
        %v2617 = vld [vmem:[%s871 + $0x30] sm:$0xf]
        %v2618 = vld [vmem:[%s871 + $0x34] sm:$0xf]
        %v2619 = vld [vmem:[%s871 + $0x38] sm:$0xf]
        %v2620 = vld [vmem:[%s871 + $0x3c] sm:$0xf]
        %v2621 = vld [vmem:[%s871 + $0x40] sm:$0xf]
        %v2622 = vld [vmem:[%s871 + $0x44] sm:$0xf]
        %v2623 = vld [vmem:[%s871 + $0x48] sm:$0xf]
        %v2624 = vld [vmem:[%s871 + $0x4c] sm:$0xf]
        %v2625 = vld [vmem:[%s871 + $0x50] sm:$0xf]
        %v2626 = vld [vmem:[%s871 + $0x54] sm:$0xf]
        %v2627 = vld [vmem:[%s871 + $0x58] sm:$0xf]
        %v2628 = vld [vmem:[%s871 + $0x5c] sm:$0xf]
        %v2629 = vld [vmem:[%s871 + $0x60] sm:$0xf]
        %v2630 = vld [vmem:[%s871 + $0x64] sm:$0xf]
        %v2631 = vld [vmem:[%s871 + $0x68] sm:$0xf]
        %v2632 = vld [vmem:[%s871 + $0x6c] sm:$0xf]
        %v2633 = vld [vmem:[%s871 + $0x70] sm:$0xf]
        %v2634 = vld [vmem:[%s871 + $0x74] sm:$0xf]
        %v2635 = vld [vmem:[%s871 + $0x78] sm:$0xf]
        %v2636 = vld [vmem:[%s871 + $0x7c] sm:$0xf]
        %v2637 = vld [vmem:[%s874] sm:$0x1]
        %v2639 = vperm.slane %v2637, 0
        %v2673 = vunpack.c.l.b16 %v2605
        %v2674 = vunpack.c.l.b16 %v2606
        %v2675 = vunpack.c.l.b16 %v2607
        %v2676 = vunpack.c.l.b16 %v2608
        %v2677 = vunpack.c.l.b16 %v2609
        %v2678 = vunpack.c.l.b16 %v2610
        %v2679 = vunpack.c.l.b16 %v2611
        %v2680 = vunpack.c.l.b16 %v2612
        %v2681 = vunpack.c.l.b16 %v2613
        %v2682 = vunpack.c.l.b16 %v2614
        %v2683 = vunpack.c.l.b16 %v2615
        %v2684 = vunpack.c.l.b16 %v2616
        %v2685 = vunpack.c.l.b16 %v2617
        %v2686 = vunpack.c.l.b16 %v2618
        %v2687 = vunpack.c.l.b16 %v2619
        %v2688 = vunpack.c.l.b16 %v2620
        %v2689 = vunpack.c.l.b16 %v2621
        %v2690 = vunpack.c.l.b16 %v2622
        %v2691 = vunpack.c.l.b16 %v2623
        %v2692 = vunpack.c.l.b16 %v2624
        %v2693 = vunpack.c.l.b16 %v2625
        %v2694 = vunpack.c.l.b16 %v2626
        %v2695 = vunpack.c.l.b16 %v2627
        %v2696 = vunpack.c.l.b16 %v2628
        %v2697 = vunpack.c.l.b16 %v2629
        %v2698 = vunpack.c.l.b16 %v2630
        %v2699 = vunpack.c.l.b16 %v2631
        %v2700 = vunpack.c.l.b16 %v2632
        %v2701 = vunpack.c.l.b16 %v2633
        %v2702 = vunpack.c.l.b16 %v2634
        %v2703 = vunpack.c.l.b16 %v2635
        %v2704 = vunpack.c.l.b16 %v2636
        %v2705 = vpack.c.b16 %v2674, %v2673
        %v2706 = vpack.c.b16 %v2676, %v2675
        %v2707 = vpack.c.b16 %v2678, %v2677
        %v2708 = vpack.c.b16 %v2680, %v2679
        %v2709 = vpack.c.b16 %v2682, %v2681
        %v2710 = vpack.c.b16 %v2684, %v2683
        %v2711 = vpack.c.b16 %v2686, %v2685
        %v2712 = vpack.c.b16 %v2688, %v2687
        %v2713 = vpack.c.b16 %v2690, %v2689
        %v2714 = vpack.c.b16 %v2692, %v2691
        %v2715 = vpack.c.b16 %v2694, %v2693
        %v2716 = vpack.c.b16 %v2696, %v2695
        %v2717 = vpack.c.b16 %v2698, %v2697
        %v2718 = vpack.c.b16 %v2700, %v2699
        %v2719 = vpack.c.b16 %v2702, %v2701
        %v2720 = vpack.c.b16 %v2704, %v2703
        %2737 = vmatpush.bf16.msra.mxu0 %v2712
        %2738 = vmatpush.bf16.msra.mxu0 %v2711
        %2739 = vmatpush.bf16.msra.mxu0 %v2710
        %2740 = vmatpush.bf16.msra.mxu0 %v2709
        %2741 = vmatpush.bf16.msra.mxu0 %v2708
        %2742 = vmatpush.bf16.msra.mxu0 %v2707
        %2743 = vmatpush.bf16.msra.mxu0 %v2706
        %2744 = vmatpush.bf16.msra.mxu0 %v2705
        %2745 = vmatmul.bf16.gmra.mxu0 %v2599
        %v2746 = vpop.f32.mrf.mxu0
        %v2747 = vadd.f32 %v2639, %v2746
        %v2748 = vpop.f32.mrf.mxu0
        %v2749 = vadd.f32 %v2639, %v2748
        %2750 = vmatmul.bf16.gmra.mxu0 %v2601
        %v2751 = vpop.f32.mrf.mxu0
        %v2752 = vadd.f32 %v2639, %v2751
        %v2753 = vpop.f32.mrf.mxu0
        %v2754 = vadd.f32 %v2639, %v2753
        %2755 = vmatmul.bf16.gmra.mxu0 %v2603
        %v2756 = vpop.f32.mrf.mxu0
        %v2757 = vadd.f32 %v2639, %v2756
        %v2758 = vpop.f32.mrf.mxu0
        %v2759 = vadd.f32 %v2639, %v2758
        %2760 = vdwg.mxu0
        %2761 = vmatpush.bf16.msra.mxu0 %v2720
        %2762 = vmatpush.bf16.msra.mxu0 %v2719
        %2763 = vmatpush.bf16.msra.mxu0 %v2718
        %2764 = vmatpush.bf16.msra.mxu0 %v2717
        %2765 = vmatpush.bf16.msra.mxu0 %v2716
        %2766 = vmatpush.bf16.msra.mxu0 %v2715
        %2767 = vmatpush.bf16.msra.mxu0 %v2714
        %2768 = vmatpush.bf16.msra.mxu0 %v2713
        %2769 = vmatmul.bf16.gmra.mxu0 %v2600
        %v2770 = vpop.f32.mrf.mxu0
        %v2771 = vadd.f32 %v2747, %v2770
        %v2772 = vpop.f32.mrf.mxu0
        %v2773 = vadd.f32 %v2749, %v2772
        %2774 = vmatmul.bf16.gmra.mxu0 %v2602
        %v2775 = vpop.f32.mrf.mxu0
        %v2776 = vadd.f32 %v2752, %v2775
        %v2777 = vpop.f32.mrf.mxu0
        %v2778 = vadd.f32 %v2754, %v2777
        %2779 = vmatmul.bf16.gmra.mxu0 %v2604
        %v2780 = vpop.f32.mrf.mxu0
        %v2781 = vadd.f32 %v2757, %v2780
        %v2782 = vpop.f32.mrf.mxu0
        %v2783 = vadd.f32 %v2759, %v2782
        %2784 = vdwg.mxu0
        %v2785 = vadd.f32 %v1772, %v2771
        %v2786 = vadd.f32 %v1773, %v2773
        %v2787 = vadd.f32 %v1774, %v2776
        %v2788 = vadd.f32 %v1775, %v2778
        %v2789 = vadd.f32 %v1776, %v2781
        %v2790 = vadd.f32 %v1777, %v2783
        %2791 = vst [vmem:[#allocation2] sm:$0xff] %v2785
        %2792 = vst [vmem:[#allocation2 + $0x8] sm:$0xff] %v2786
        %2793 = vst [vmem:[#allocation2 + $0x10] sm:$0xff] %v2787
        %2794 = vst [vmem:[#allocation2 + $0x18] sm:$0xff] %v2788
        %2795 = vst [vmem:[#allocation2 + $0x20] sm:$0xff] %v2789
        %2796 = vst [vmem:[#allocation2 + $0x28] sm:$0xff] %v2790
        %p2797 = scmp.eq.s32.totalorder %s35, 1
        // Predicated region
        $region117: #{vit_forward.1} parent=111 // pred_check
          %p2798 = pneg %p2797
        $region118: #{vit_forward.1} parent=111 // pred_check_branch
          %2800 = sbr.rel (%p2798) target = $region120
        $region119: #{vit_forward.1} parent=111 // pred_region
          %v2801 = vld [vmem:[#allocation2] sm:$0x1]
          %v2802 = vld [vmem:[#allocation2 + $0x18] sm:$0x1]
          %v2804 = vrot.slane %v2802, 7
          %vm2806 = vcmask 1040384
          %v2807 = vsel %vm2806, %v2801, %v2804
          %v2808 = vld [vmem:[%s19] sm:$0x1]
          %v2809 = vld [vmem:[%s20] sm:$0x1]
          %v2810 = vsel %vm1616, %v2807, 0.0
          %2811 = vadd.xlane.f32.xlu0 %v2810
          %v2812 = vpop.xlane.xlu0 %2811
          %v2813 = vmul.f32 %v2812, %v1003
          %v2814 = vsub.f32 %v2807, %v2813
          %v2815 = vmul.f32 %v2814, %v2814
          %v2816 = vsel %vm1616, %v2815, 0.0
          %2817 = vadd.xlane.f32.xlu0 %v2816
          %v2818 = vpop.xlane.xlu0 %2817
          %v2819 = vmul.f32 %v2818, %v1003
          %v2820 = vadd.f32 %v2819, 1e-05
          %v2821 = vrsqrt.pop %v2820
          %v2822 = vmul.f32 %v2821, %v2820
          %v2823 = vmul.f32 %v2822, %v2821
          %v2824 = vmul.f32 0.5, %v2823
          %v2825 = vsub.f32 1.5, %v2824
          %v2826 = vmul.f32 %v2821, %v2825
          %vm2827 = vweird.f32 %v2820
          %vm2828 = vweird.f32 %v2821
          %vm2829 = vmor %vm2827, %vm2828
          %v2830 = vsel %vm2829, %v2821, %v2826
          %v2831 = vmul.f32 %v2814, %v2830
          %v2833 = vperm.slane %v2808, 0
          %v2835 = vmul.f32 %v2831, %v2833
          %v2837 = vperm.slane %v2809, 0
          %v2839 = vadd.f32 %v2835, %v2837
          %v2840 = vpack.c.bf16 %v2839, %v2839
          %v2841 = vld [vmem:[%s21] sm:$0xf]
          %v2842 = vld [vmem:[%s21 + $0x4] sm:$0xf]
          %v2843 = vld [vmem:[%s21 + $0x8] sm:$0xf]
          %v2844 = vld [vmem:[%s21 + $0xc] sm:$0xf]
          %v2845 = vld [vmem:[%s21 + $0x10] sm:$0xf]
          %v2846 = vld [vmem:[%s21 + $0x14] sm:$0xf]
          %v2847 = vld [vmem:[%s21 + $0x18] sm:$0xf]
          %v2848 = vld [vmem:[%s21 + $0x1c] sm:$0xf]
          %v2849 = vld [vmem:[%s21 + $0x20] sm:$0xf]
          %v2850 = vld [vmem:[%s21 + $0x24] sm:$0xf]
          %v2851 = vld [vmem:[%s21 + $0x28] sm:$0xf]
          %v2852 = vld [vmem:[%s21 + $0x2c] sm:$0xf]
          %v2853 = vld [vmem:[%s21 + $0x30] sm:$0xf]
          %v2854 = vld [vmem:[%s21 + $0x34] sm:$0xf]
          %v2855 = vld [vmem:[%s21 + $0x38] sm:$0xf]
          %v2856 = vld [vmem:[%s21 + $0x3c] sm:$0xf]
          %v2857 = vld [vmem:[%s22] sm:$0x1]
          %v2859 = vperm.slane %v2857, 0
          %v2877 = vunpack.c.l.b16 %v2841
          %v2878 = vunpack.c.l.b16 %v2842
          %v2879 = vunpack.c.l.b16 %v2843
          %v2880 = vunpack.c.l.b16 %v2844
          %v2881 = vunpack.c.l.b16 %v2845
          %v2882 = vunpack.c.l.b16 %v2846
          %v2883 = vunpack.c.l.b16 %v2847
          %v2884 = vunpack.c.l.b16 %v2848
          %v2885 = vunpack.c.l.b16 %v2849
          %v2886 = vunpack.c.l.b16 %v2850
          %v2887 = vunpack.c.l.b16 %v2851
          %v2888 = vunpack.c.l.b16 %v2852
          %v2889 = vunpack.c.l.b16 %v2853
          %v2890 = vunpack.c.l.b16 %v2854
          %v2891 = vunpack.c.l.b16 %v2855
          %v2892 = vunpack.c.l.b16 %v2856
          %v2893 = vpack.c.b16 %v2878, %v2877
          %v2894 = vpack.c.b16 %v2880, %v2879
          %v2895 = vpack.c.b16 %v2882, %v2881
          %v2896 = vpack.c.b16 %v2884, %v2883
          %v2897 = vpack.c.b16 %v2886, %v2885
          %v2898 = vpack.c.b16 %v2888, %v2887
          %v2899 = vpack.c.b16 %v2890, %v2889
          %v2900 = vpack.c.b16 %v2892, %v2891
          %2909 = vmatpush.bf16.msra.mxu0 %v2900
          %2910 = vmatpush.bf16.msra.mxu0 %v2899
          %2911 = vmatpush.bf16.msra.mxu0 %v2898
          %2912 = vmatpush.bf16.msra.mxu0 %v2897
          %2913 = vmatpush.bf16.msra.mxu0 %v2896
          %2914 = vmatpush.bf16.msra.mxu0 %v2895
          %2915 = vmatpush.bf16.msra.mxu0 %v2894
          %2916 = vmatpush.bf16.msra.mxu0 %v2893
          %2917 = vmatmul.bf16.gmra.mxu0 %v2840
          %v2918 = vpop.f32.mrf.mxu0
          %v2919 = vadd.f32 %v2859, %v2918
          %v2920 = vpop.f32.mrf.mxu0
          %2921 = vdwg.mxu0
          %2922 = vst [vmem:[#allocation3] sm:$0x3] %v2919
        $region120: #{vit_forward.1} parent=111 // pred_fallthru
          _
        // Predicated region
        $region121: #{vit_forward.1} parent=111 // pred_check
          %p2923 = pneg %p591
        $region122: #{vit_forward.1} parent=111 // pred_check_branch
          %2925 = sbr.rel (%p2923) target = $region124
        $region123: #{vit_forward.1} parent=111 // pred_region
          %2927 = vsyncadd [#allocation4], 0
          %s2929 = sshll.u32 [#allocation3], 4
          %s2930 = int_to_ptr.vmem [resolvable:$true] %s2929
          %s2931 = sshll.u32 %s23, 4
          %s2932 = int_to_ptr.hbm [resolvable:$true] %s2931
          %2934 = dma.vmem_to_hbm [thread:$0]  %s2930, 32, %s2932, [#allocation4]
        $region124: #{vit_forward.1} parent=111 // pred_fallthru
          _
        // Predicated region
        $region125: #{vit_forward.1} parent=111 // pred_check
          %p2935 = pneg %p591
        $region126: #{vit_forward.1} parent=111 // pred_check_branch
          %2937 = sbr.rel (%p2935) target = $region128
        $region127: #{vit_forward.1} parent=111 // pred_region
          %2939 = dma.done [#allocation4], 32
        $region128: #{vit_forward.1} parent=111 // pred_fallthru
          _
      $region112: #{vit_forward.1} parent=5 // pred_fallthru
        _
      %p2940 = scmp.le.s32.totalorder 2, %s30
      // Predicated region
      $region129: #{vit_forward.1} parent=5 // pred_check
        %p2941 = pneg %p2940
      $region130: #{vit_forward.1} parent=5 // pred_check_branch
        %2943 = sbr.rel (%p2941) target = $region132
      $region131: #{vit_forward.1} parent=5 // pred_region
        %s2944 = ssub.s32 %s30, 2
      $region132: #{vit_forward.1} parent=5 // pred_fallthru
        _
    $region6: #{vit_forward.1} parent=1 // loop_footer
      %s34 = sadd.s32 1, %s30
    $region7: #{vit_forward.1} parent=1 // loop_footer_branch
      %29 = sbr.rel target = $region3
    $region8: #{vit_forward.1} parent=1 // loop_exit
      _
    %2945 = vsyncpa [#allocation4], 1
    %s2946 = scalar_lea.sflag [#allocation4], 1
    %2947 = vsyncpa %s2946, 1

</llo_original>
